<compile_context>
chip_gen: v6e
topology: v6e:2x2x1
jax: 0.10.0
libtpu: 0.0.40
codegen_flags: <defaults>
</compile_context>

<pallas_src>
import functools
import math

import jax
import jax.numpy as jnp
from jax.experimental import pallas as pl
from jax.experimental.pallas import tpu as pltpu


def _round_up(x, m):
    return ((x + m - 1) // m) * m


def _tpu_vmem_and_cores():
    """Best-effort query of per-core VMEM capacity and TensorCore count."""
    vmem_bytes = 128 * 1024 * 1024          # v5e / v6e default
    num_tc = 1
    try:
        info = pltpu.get_tpu_info()
        vmem_bytes = int(info.vmem_capacity_bytes)
    except Exception:
        pass
    try:
        kind = jax.devices()[0].device_kind.lower()
        if "v7" in kind:                    # v7x: 64 MiB VMEM per TC, 2 TCs per chip
            num_tc = 2
            vmem_bytes = min(vmem_bytes, 64 * 1024 * 1024)
    except Exception:
        pass
    return vmem_bytes, num_tc


def mha_kernel(x_ref, wqkv_ref, bqkv_ref, wp_ref, bp_ref, o_ref, *,
               num_heads, head_dim, embed_dim, batch_tile, padded_seq,
               seq_len, approx_reciprocal):
    """One grid step processes `batch_tile` batch elements:
    fused QKV projection, batched per-(batch, head) attention with f32 softmax,
    single fused output projection."""
    H, hd, E = num_heads, head_dim, embed_dim
    Bt, Np, N = batch_tile, padded_seq, seq_len
    M = Bt * Np
    G = Bt * H

    # ---- fused QKV projection: one lane-dense (M, E) @ (E, 3E) MXU call -----------
    x = x_ref[...].reshape(M, E).astype(jnp.bfloat16)
    # bias add + bf16 cast fused: only one bf16 qkv slab stays live.
    # 1/sqrt(hd) is pre-folded into the Q columns of wqkv / bqkv on the host.
    qkv = (jnp.dot(x, wqkv_ref[...], preferred_element_type=jnp.float32)
           + bqkv_ref[...]).astype(jnp.bfloat16)                     # (M, 3E)

    def split_heads(t):                                              # (M, E) -> (G, Np, hd)
        t = t.reshape(Bt, Np, H, hd)
        return jnp.transpose(t, (0, 2, 1, 3)).reshape(G, Np, hd)

    q = split_heads(qkv[:, 0 * E:1 * E])
    k = split_heads(qkv[:, 1 * E:2 * E])
    v = split_heads(qkv[:, 2 * E:3 * E])

    # ---- attention core: batched dot_generals over all (batch, head) pairs --------
    s = jnp.einsum('gqd,gkd->gqk', q, k,
                   preferred_element_type=jnp.float32)               # (G, Np, Np) f32
    if Np > N:
        # mask padded keys (static shapes; padded query rows are discarded on host)
        key_idx = jax.lax.broadcasted_iota(jnp.int32, (1, 1, Np), 2)
        s = jnp.where(key_idx < N, s, -1e30)

    s = s - jnp.max(s, axis=-1, keepdims=True)                       # stable softmax, f32
    p = jnp.exp(s)
    denom = jnp.sum(p, axis=-1, keepdims=True)
    if approx_reciprocal:
        p = p * pl.reciprocal(denom, approx=True)                    # EUP slot (~free)
    else:
        p = p / denom
    # TODO(synk): attn_dropout omitted (identity in eval mode).

    ctx = jnp.einsum('gqk,gkd->gqd', p.astype(jnp.bfloat16), v,
                     preferred_element_type=jnp.float32)             # (G, Np, hd) f32

    # ---- output projection: single (M, E) @ (E, E) MXU call (K = E) ---------------
    ctx = ctx.astype(jnp.bfloat16).reshape(Bt, H, Np, hd)
    ctx = jnp.transpose(ctx, (0, 2, 1, 3)).reshape(M, E)
    y = jnp.dot(ctx, wp_ref[...], preferred_element_type=jnp.float32) + bp_ref[...]
    # TODO(synk): proj_dropout omitted (identity in eval mode).
    o_ref[...] = y.reshape(Bt, Np, E).astype(o_ref.dtype)


def multi_head_attention(x, w_qkv, b_qkv, w_proj, b_proj, *, num_heads,
                         batch_tile=None, approx_reciprocal=True):
    """x: (B, N, E). w_qkv: (E, 3E) (already transposed vs torch's (3E, E)).
    b_qkv: (3E,). w_proj: (E, E) (transposed). b_proj: (E,)."""
    B, N, E = x.shape
    H = num_heads
    hd = E // H
    assert hd * H == E, "embed_dim must be divisible by num_heads"

    vmem_cap, num_tc = _tpu_vmem_and_cores()

    # ---- host-side sequence padding (keeps sublane tiles full; masked in-kernel) ---
    Np = _round_up(N, 8)
    x_p = x if Np == N else jnp.pad(x, ((0, 0), (0, Np - N), (0, 0)))

    # ---- batch-tile selection: generation-aware slab target, megacore-friendly -----
    slab_target = 512 if vmem_cap >= 96 * 1024 * 1024 else 256       # halve on v7x
    if batch_tile is None:
        batch_tile = 1
        for cand in range(1, B + 1):
            if B % cand:
                continue
            if cand * Np > slab_target:
                continue
            if num_tc > 1 and B >= num_tc and (B // cand) < num_tc:
                continue       # keep >= 2 grid steps so both v7x TCs get work
            batch_tile = cand
    Bt = batch_tile
    assert B % Bt == 0

    scale = 1.0 / math.sqrt(hd)

    # ---- host-side repack (runs once, outside the kernel) --------------------------
    #  * single fused (E, 3E) QKV weight, bf16, with 1/sqrt(hd) folded into Q cols
    #  * original (E, E) projection weight, bf16; biases stay f32
    wqkv = jnp.concatenate([w_qkv[:, :E] * scale, w_qkv[:, E:]], axis=1)
    wqkv = wqkv.astype(jnp.bfloat16)                                  # (E, 3E)
    bqkv = jnp.concatenate([b_qkv[:E] * scale, b_qkv[E:]]).reshape(1, 3 * E)
    bqkv = bqkv.astype(jnp.float32)
    wp = w_proj.astype(jnp.bfloat16)                                  # (E, E)
    bp = b_proj.reshape(1, E).astype(jnp.float32)

    kernel = functools.partial(
        mha_kernel, num_heads=H, head_dim=hd, embed_dim=E,
        batch_tile=Bt, padded_seq=Np, seq_len=N,
        approx_reciprocal=approx_reciprocal)

    # ---- VMEM budget derived from the real estimate AND the chip's capacity --------
    M = Bt * Np
    G = Bt * H
    f32b, bf16b = 4, 2
    vmem_est = (
        2 * 2 * Bt * Np * E * x.dtype.itemsize          # x + out blocks, double-buffered
        + (E * 3 * E + E * E) * bf16b                   # weights (single-buffered)
        + 4 * E * f32b                                  # biases
        + M * E * bf16b                                 # x bf16 copy
        + M * 3 * E * (f32b + bf16b)                    # qkv slab (transient f32 + bf16)
        + 3 * G * Np * hd * bf16b                       # head-major q / k / v
        + G * Np * Np * (f32b + bf16b)                  # scores f32 + probs bf16
        + G * Np * hd * (f32b + bf16b)                  # ctx
        + M * E * (f32b + bf16b)                        # ctx flat + projection result
    )
    vmem_limit = int(min(max(int(1.5 * vmem_est), 32 * 1024 * 1024), vmem_cap // 2))

    grid = (B // Bt,)
    out_shape = jax.ShapeDtypeStruct((B, Np, E), x.dtype)

    def build(single_buffer_weights):
        # Constant (grid-invariant) weights/biases: single-buffer to save VMEM.
        wmode = dict(pipeline_mode=pl.Buffered(1)) if single_buffer_weights else {}
        return pl.pallas_call(
            kernel,
            out_shape=out_shape,
            grid_spec=pltpu.PrefetchScalarGridSpec(
                num_scalar_prefetch=0,
                grid=grid,
                in_specs=[
                    pl.BlockSpec((Bt, Np, E), lambda i: (i, 0, 0)),
                    pl.BlockSpec((E, 3 * E), lambda i: (0, 0), **wmode),
                    pl.BlockSpec((1, 3 * E), lambda i: (0, 0), **wmode),
                    pl.BlockSpec((E, E), lambda i: (0, 0), **wmode),
                    pl.BlockSpec((1, E), lambda i: (0, 0), **wmode),
                ],
                out_specs=pl.BlockSpec((Bt, Np, E), lambda i: (i, 0, 0)),
            ),
            compiler_params=pltpu.CompilerParams(
                dimension_semantics=("parallel",),
                vmem_limit_bytes=vmem_limit),
        )

    try:
        out = build(True)(x_p, wqkv, bqkv, wp, bp)
    except Exception:
        # Fallback: default double-buffering if Buffered(1) is rejected by this jax.
        out = build(False)(x_p, wqkv, bqkv, wp, bp)

    if Np != N:
        out = out[:, :N, :]
    return out


def mha_reference(x, w_qkv, b_qkv, w_proj, b_proj, *, num_heads):
    """Pure-JAX f32 reference mirroring the PyTorch forward (eval mode)."""
    B, N, E = x.shape
    hd = E // num_heads
    qkv = x @ w_qkv + b_qkv                                   # (B, N, 3E)
    qkv = qkv.reshape(B, N, 3, num_heads, hd)
    qkv = jnp.transpose(qkv, (2, 0, 3, 1, 4))                 # (3, B, H, N, hd)
    q, k, v = qkv[0], qkv[1], qkv[2]
    attn = (q @ jnp.swapaxes(k, -2, -1)) * (hd ** -0.5)
    attn = jax.nn.softmax(attn, axis=-1)
    out = attn @ v                                            # (B, H, N, hd)
    out = jnp.transpose(out, (0, 2, 1, 3)).reshape(B, N, E)
    return out @ w_proj + b_proj


if __name__ == "__main__":
    # Small shapes consistent with the module: batch=2, num_patches=8, embed_dim=32, heads=4.
    B, N, E, H = 2, 8, 32, 4

    key = jax.random.PRNGKey(0)
    kx, kw1, kb1, kw2, kb2 = jax.random.split(key, 5)

    x = jax.random.normal(kx, (B, N, E), dtype=jnp.float32)

    # nn.Linear-style deterministic init (uniform in +/- 1/sqrt(fan_in)).
    lim = 1.0 / math.sqrt(E)
    # Stored already transposed relative to torch's (out, in) layout: (in, out).
    w_qkv = jax.random.uniform(kw1, (E, 3 * E), minval=-lim, maxval=lim, dtype=jnp.float32)
    b_qkv = jax.random.uniform(kb1, (3 * E,), minval=-lim, maxval=lim, dtype=jnp.float32)
    w_proj = jax.random.uniform(kw2, (E, E), minval=-lim, maxval=lim, dtype=jnp.float32)
    b_proj = jax.random.uniform(kb2, (E,), minval=-lim, maxval=lim, dtype=jnp.float32)

    out = multi_head_attention(x, w_qkv, b_qkv, w_proj, b_proj, num_heads=H)
    out = jax.block_until_ready(out)

    ref = mha_reference(x, w_qkv, b_qkv, w_proj, b_proj, num_heads=H)
    assert out.shape == (B, N, E)
    # bf16 MXU inputs (f32 accumulation) vs an all-f32 reference -> looser tolerance.
    assert jnp.allclose(out, ref, atol=3e-2, rtol=3e-2), "mismatch vs. JAX reference"

    print("KERNEL_OK")
</pallas_src>

<mosaic_0001>
module attributes {stable_mosaic.version = 11 : i64} {
  func.func @mha_kernel(%arg0: i32, %arg1: memref<2x8x32xf32, #tpu.memory_space<vmem>>, %arg2: memref<32x96xbf16, #tpu.memory_space<vmem>>, %arg3: memref<1x96xf32, #tpu.memory_space<vmem>>, %arg4: memref<32x32xbf16, #tpu.memory_space<vmem>>, %arg5: memref<1x32xf32, #tpu.memory_space<vmem>>, %arg6: memref<2x8x32xf32, #tpu.memory_space<vmem>>) attributes {dimension_semantics = [#tpu.dimension_semantics<parallel>], iteration_bounds = array<i64: 1>, scalar_prefetch = 0 : i64, scratch_operands = 0 : i64, tpu.core_type = #tpu.core_type<tc>, window_params = [{transform_indices = @transform_0, window_bounds = array<i64: 2, 8, 32>}, {pipeline_mode = #tpu.pipeline_mode<synchronous>, transform_indices = @transform_1, window_bounds = array<i64: 32, 96>}, {pipeline_mode = #tpu.pipeline_mode<synchronous>, transform_indices = @transform_2, window_bounds = array<i64: 1, 96>}, {pipeline_mode = #tpu.pipeline_mode<synchronous>, transform_indices = @transform_3, window_bounds = array<i64: 32, 32>}, {pipeline_mode = #tpu.pipeline_mode<synchronous>, transform_indices = @transform_4, window_bounds = array<i64: 1, 32>}, {transform_indices = @transform_5, window_bounds = array<i64: 2, 8, 32>}]} {
    %c0 = arith.constant 0 : index
    %c0_0 = arith.constant 0 : index
    %c0_1 = arith.constant 0 : index
    %0 = vector.load %arg1[%c0, %c0_0, %c0_1] : memref<2x8x32xf32, #tpu.memory_space<vmem>>, vector<2x8x32xf32>
    %1 = vector.shape_cast %0 : vector<2x8x32xf32> to vector<16x32xf32>
    %2 = arith.truncf %1 : vector<16x32xf32> to vector<16x32xbf16>
    %c0_2 = arith.constant 0 : index
    %c0_3 = arith.constant 0 : index
    %3 = vector.load %arg2[%c0_2, %c0_3] : memref<32x96xbf16, #tpu.memory_space<vmem>>, vector<32x96xbf16>
    %cst = arith.constant dense<0.000000e+00> : vector<16x96xf32>
    %4 = tpu.matmul %2, %3, %cst {dimension_numbers = #tpu.dot_dimension_numbers<[1], [0], [0], [1], [0, 0, 1, 1], [], []>} : vector<16x32xbf16>, vector<32x96xbf16>, vector<16x96xf32> -> vector<16x96xf32>
    %c0_4 = arith.constant 0 : index
    %c0_5 = arith.constant 0 : index
    %5 = vector.load %arg3[%c0_4, %c0_5] : memref<1x96xf32, #tpu.memory_space<vmem>>, vector<1x96xf32>
    %6 = vector.broadcast %5 : vector<1x96xf32> to vector<16x96xf32>
    %7 = arith.addf %4, %6 : vector<16x96xf32>
    %8 = arith.truncf %7 : vector<16x96xf32> to vector<16x96xbf16>
    %9 = vector.extract_strided_slice %8 {offsets = [0, 0], sizes = [16, 32], strides = [1, 1]} : vector<16x96xbf16> to vector<16x32xbf16>
    %10 = vector.shape_cast %9 : vector<16x32xbf16> to vector<2x8x4x8xbf16>
    %11 = tpu.transpose %10, [0, 2, 1, 3] : vector<2x8x4x8xbf16> -> vector<2x4x8x8xbf16>
    %12 = vector.shape_cast %11 : vector<2x4x8x8xbf16> to vector<8x8x8xbf16>
    %13 = vector.extract_strided_slice %8 {offsets = [0, 32], sizes = [16, 32], strides = [1, 1]} : vector<16x96xbf16> to vector<16x32xbf16>
    %14 = vector.shape_cast %13 : vector<16x32xbf16> to vector<2x8x4x8xbf16>
    %15 = tpu.transpose %14, [0, 2, 1, 3] : vector<2x8x4x8xbf16> -> vector<2x4x8x8xbf16>
    %16 = vector.shape_cast %15 : vector<2x4x8x8xbf16> to vector<8x8x8xbf16>
    %17 = vector.extract_strided_slice %8 {offsets = [0, 64], sizes = [16, 32], strides = [1, 1]} : vector<16x96xbf16> to vector<16x32xbf16>
    %18 = vector.shape_cast %17 : vector<16x32xbf16> to vector<2x8x4x8xbf16>
    %19 = tpu.transpose %18, [0, 2, 1, 3] : vector<2x8x4x8xbf16> -> vector<2x4x8x8xbf16>
    %20 = vector.shape_cast %19 : vector<2x4x8x8xbf16> to vector<8x8x8xbf16>
    "tpu.trace_start"() <{level = 10 : i32, message = "gqd,gkd->gqk"}> : () -> ()
    %cst_6 = arith.constant dense<0.000000e+00> : vector<8x8x8xf32>
    %21 = tpu.matmul %12, %16, %cst_6 {dimension_numbers = #tpu.dot_dimension_numbers<[2], [2], [1], [1], [0, 0, 0, 1, 1, 1], [0], [0]>} : vector<8x8x8xbf16>, vector<8x8x8xbf16>, vector<8x8x8xf32> -> vector<8x8x8xf32>
    "tpu.trace_stop"() : () -> ()
    %cst_7 = arith.constant dense<0xFF800000> : vector<8x8xf32>
    %22 = vector.multi_reduction <maximumf>, %21, %cst_7 [2] : vector<8x8x8xf32> to vector<8x8xf32>
    %23 = vector.shape_cast %22 : vector<8x8xf32> to vector<8x8x1xf32>
    %24 = vector.broadcast %23 : vector<8x8x1xf32> to vector<8x8x8xf32>
    %25 = arith.subf %21, %24 : vector<8x8x8xf32>
    %26 = math.exp %25 : vector<8x8x8xf32>
    %cst_8 = arith.constant dense<0.000000e+00> : vector<8x8xf32>
    %27 = vector.multi_reduction <add>, %26, %cst_8 [2] : vector<8x8x8xf32> to vector<8x8xf32>
    %28 = vector.shape_cast %27 : vector<8x8xf32> to vector<8x8x1xf32>
    %29 = tpu.reciprocal %28 {approx = true} : vector<8x8x1xf32> -> vector<8x8x1xf32>
    %30 = vector.broadcast %29 : vector<8x8x1xf32> to vector<8x8x8xf32>
    %31 = arith.mulf %26, %30 : vector<8x8x8xf32>
    %32 = arith.truncf %31 : vector<8x8x8xf32> to vector<8x8x8xbf16>
    "tpu.trace_start"() <{level = 10 : i32, message = "gqk,gkd->gqd"}> : () -> ()
    %cst_9 = arith.constant dense<0.000000e+00> : vector<8x8x8xf32>
    %33 = tpu.matmul %32, %20, %cst_9 {dimension_numbers = #tpu.dot_dimension_numbers<[2], [1], [1], [2], [0, 0, 0, 1, 1, 2], [0], [0]>} : vector<8x8x8xbf16>, vector<8x8x8xbf16>, vector<8x8x8xf32> -> vector<8x8x8xf32>
    "tpu.trace_stop"() : () -> ()
    %34 = arith.truncf %33 : vector<8x8x8xf32> to vector<8x8x8xbf16>
    %35 = vector.shape_cast %34 : vector<8x8x8xbf16> to vector<2x4x8x8xbf16>
    %36 = tpu.transpose %35, [0, 2, 1, 3] : vector<2x4x8x8xbf16> -> vector<2x8x4x8xbf16>
    %37 = vector.shape_cast %36 : vector<2x8x4x8xbf16> to vector<16x32xbf16>
    %c0_10 = arith.constant 0 : index
    %c0_11 = arith.constant 0 : index
    %38 = vector.load %arg4[%c0_10, %c0_11] : memref<32x32xbf16, #tpu.memory_space<vmem>>, vector<32x32xbf16>
    %cst_12 = arith.constant dense<0.000000e+00> : vector<16x32xf32>
    %39 = tpu.matmul %37, %38, %cst_12 {dimension_numbers = #tpu.dot_dimension_numbers<[1], [0], [0], [1], [0, 0, 1, 1], [], []>} : vector<16x32xbf16>, vector<32x32xbf16>, vector<16x32xf32> -> vector<16x32xf32>
    %c0_13 = arith.constant 0 : index
    %c0_14 = arith.constant 0 : index
    %40 = vector.load %arg5[%c0_13, %c0_14] : memref<1x32xf32, #tpu.memory_space<vmem>>, vector<1x32xf32>
    %41 = vector.broadcast %40 : vector<1x32xf32> to vector<16x32xf32>
    %42 = arith.addf %39, %41 : vector<16x32xf32>
    %43 = vector.shape_cast %42 : vector<16x32xf32> to vector<2x8x32xf32>
    %c0_15 = arith.constant 0 : index
    %c0_16 = arith.constant 0 : index
    %c0_17 = arith.constant 0 : index
    %44 = vector.load %arg6[%c0_15, %c0_16, %c0_17] : memref<2x8x32xf32, #tpu.memory_space<vmem>>, vector<2x8x32xf32>
    tpu.vector_store %arg6[%c0_15, %c0_16, %c0_17], %43 {strides = array<i32>} : memref<2x8x32xf32, #tpu.memory_space<vmem>>, vector<2x8x32xf32>,
    return
  }
  func.func @transform_0(%arg0: i32) -> (i32, i32, i32) {
    %c0_i32 = arith.constant 0 : i32
    %c0_i32_0 = arith.constant 0 : i32
    %c0_i32_1 = arith.constant 0 : i32
    return %arg0, %c0_i32, %c0_i32_0 : i32, i32, i32
  }
  func.func @transform_1(%arg0: i32) -> (i32, i32) {
    %c0_i32 = arith.constant 0 : i32
    %c0_i32_0 = arith.constant 0 : i32
    %c0_i32_1 = arith.constant 0 : i32
    return %c0_i32, %c0_i32_0 : i32, i32
  }
  func.func @transform_2(%arg0: i32) -> (i32, i32) {
    %c0_i32 = arith.constant 0 : i32
    %c0_i32_0 = arith.constant 0 : i32
    %c0_i32_1 = arith.constant 0 : i32
    return %c0_i32, %c0_i32_0 : i32, i32
  }
  func.func @transform_3(%arg0: i32) -> (i32, i32) {
    %c0_i32 = arith.constant 0 : i32
    %c0_i32_0 = arith.constant 0 : i32
    %c0_i32_1 = arith.constant 0 : i32
    return %c0_i32, %c0_i32_0 : i32, i32
  }
  func.func @transform_4(%arg0: i32) -> (i32, i32) {
    %c0_i32 = arith.constant 0 : i32
    %c0_i32_0 = arith.constant 0 : i32
    %c0_i32_1 = arith.constant 0 : i32
    return %c0_i32, %c0_i32_0 : i32, i32
  }
  func.func @transform_5(%arg0: i32) -> (i32, i32, i32) {
    %c0_i32 = arith.constant 0 : i32
    %c0_i32_0 = arith.constant 0 : i32
    %c0_i32_1 = arith.constant 0 : i32
    return %arg0, %c0_i32, %c0_i32_0 : i32, i32, i32
  }
}

module attributes {stable_mosaic.version = 11 : i64} {
  func.func @mha_kernel(%arg0: i32, %arg1: memref<2x8x32xf32, #tpu.memory_space<vmem>>, %arg2: memref<32x96xbf16, #tpu.memory_space<vmem>>, %arg3: memref<1x96xf32, #tpu.memory_space<vmem>>, %arg4: memref<32x32xbf16, #tpu.memory_space<vmem>>, %arg5: memref<1x32xf32, #tpu.memory_space<vmem>>, %arg6: memref<2x8x32xf32, #tpu.memory_space<vmem>>) attributes {dimension_semantics = [#tpu.dimension_semantics<parallel>], iteration_bounds = array<i64: 1>, scalar_prefetch = 0 : i64, scratch_operands = 0 : i64, tpu.core_type = #tpu.core_type<tc>, window_params = [{transform_indices = @transform_0, window_bounds = array<i64: 2, 8, 32>}, {pipeline_mode = #tpu.pipeline_mode<synchronous>, transform_indices = @transform_1, window_bounds = array<i64: 32, 96>}, {pipeline_mode = #tpu.pipeline_mode<synchronous>, transform_indices = @transform_2, window_bounds = array<i64: 1, 96>}, {pipeline_mode = #tpu.pipeline_mode<synchronous>, transform_indices = @transform_3, window_bounds = array<i64: 32, 32>}, {pipeline_mode = #tpu.pipeline_mode<synchronous>, transform_indices = @transform_4, window_bounds = array<i64: 1, 32>}, {transform_indices = @transform_5, window_bounds = array<i64: 2, 8, 32>}]} {
    %c0 = arith.constant 0 : index
    %c0_0 = arith.constant 0 : index
    %c0_1 = arith.constant 0 : index
    %0 = vector.load %arg1[%c0, %c0_0, %c0_1] : memref<2x8x32xf32, #tpu.memory_space<vmem>>, vector<2x8x32xf32>
    %1 = vector.shape_cast %0 : vector<2x8x32xf32> to vector<16x32xf32>
    %2 = arith.truncf %1 : vector<16x32xf32> to vector<16x32xbf16>
    %c0_2 = arith.constant 0 : index
    %c0_3 = arith.constant 0 : index
    %3 = vector.load %arg2[%c0_2, %c0_3] : memref<32x96xbf16, #tpu.memory_space<vmem>>, vector<32x96xbf16>
    %cst = arith.constant dense<0.000000e+00> : vector<16x96xf32>
    %4 = tpu.matmul %2, %3, %cst {dimension_numbers = #tpu.dot_dimension_numbers<[1], [0], [0], [1], [0, 0, 1, 1], [], []>} : vector<16x32xbf16>, vector<32x96xbf16>, vector<16x96xf32> -> vector<16x96xf32>
    %c0_4 = arith.constant 0 : index
    %c0_5 = arith.constant 0 : index
    %5 = vector.load %arg3[%c0_4, %c0_5] : memref<1x96xf32, #tpu.memory_space<vmem>>, vector<1x96xf32>
    %6 = vector.broadcast %5 : vector<1x96xf32> to vector<16x96xf32>
    %7 = arith.addf %4, %6 : vector<16x96xf32>
    %8 = arith.truncf %7 : vector<16x96xf32> to vector<16x96xbf16>
    %9 = vector.extract_strided_slice %8 {offsets = [0, 0], sizes = [16, 32], strides = [1, 1]} : vector<16x96xbf16> to vector<16x32xbf16>
    %10 = vector.shape_cast %9 : vector<16x32xbf16> to vector<2x8x4x8xbf16>
    %11 = tpu.transpose %10, [0, 2, 1, 3] : vector<2x8x4x8xbf16> -> vector<2x4x8x8xbf16>
    %12 = vector.shape_cast %11 : vector<2x4x8x8xbf16> to vector<8x8x8xbf16>
    %13 = vector.extract_strided_slice %8 {offsets = [0, 32], sizes = [16, 32], strides = [1, 1]} : vector<16x96xbf16> to vector<16x32xbf16>
    %14 = vector.shape_cast %13 : vector<16x32xbf16> to vector<2x8x4x8xbf16>
    %15 = tpu.transpose %14, [0, 2, 1, 3] : vector<2x8x4x8xbf16> -> vector<2x4x8x8xbf16>
    %16 = vector.shape_cast %15 : vector<2x4x8x8xbf16> to vector<8x8x8xbf16>
    %17 = vector.extract_strided_slice %8 {offsets = [0, 64], sizes = [16, 32], strides = [1, 1]} : vector<16x96xbf16> to vector<16x32xbf16>
    %18 = vector.shape_cast %17 : vector<16x32xbf16> to vector<2x8x4x8xbf16>
    %19 = tpu.transpose %18, [0, 2, 1, 3] : vector<2x8x4x8xbf16> -> vector<2x4x8x8xbf16>
    %20 = vector.shape_cast %19 : vector<2x4x8x8xbf16> to vector<8x8x8xbf16>
    "tpu.trace_start"() <{level = 10 : i32, message = "gqd,gkd->gqk"}> : () -> ()
    %cst_6 = arith.constant dense<0.000000e+00> : vector<8x8x8xf32>
    %21 = tpu.matmul %12, %16, %cst_6 {dimension_numbers = #tpu.dot_dimension_numbers<[2], [2], [1], [1], [0, 0, 0, 1, 1, 1], [0], [0]>} : vector<8x8x8xbf16>, vector<8x8x8xbf16>, vector<8x8x8xf32> -> vector<8x8x8xf32>
    "tpu.trace_stop"() : () -> ()
    %cst_7 = arith.constant dense<0xFF800000> : vector<8x8xf32>
    %22 = vector.multi_reduction <maximumf>, %21, %cst_7 [2] : vector<8x8x8xf32> to vector<8x8xf32>
    %23 = vector.shape_cast %22 : vector<8x8xf32> to vector<8x8x1xf32>
    %24 = vector.broadcast %23 : vector<8x8x1xf32> to vector<8x8x8xf32>
    %25 = arith.subf %21, %24 : vector<8x8x8xf32>
    %26 = math.exp %25 : vector<8x8x8xf32>
    %cst_8 = arith.constant dense<0.000000e+00> : vector<8x8xf32>
    %27 = vector.multi_reduction <add>, %26, %cst_8 [2] : vector<8x8x8xf32> to vector<8x8xf32>
    %28 = vector.shape_cast %27 : vector<8x8xf32> to vector<8x8x1xf32>
    %29 = tpu.reciprocal %28 {approx = true} : vector<8x8x1xf32> -> vector<8x8x1xf32>
    %30 = vector.broadcast %29 : vector<8x8x1xf32> to vector<8x8x8xf32>
    %31 = arith.mulf %26, %30 : vector<8x8x8xf32>
    %32 = arith.truncf %31 : vector<8x8x8xf32> to vector<8x8x8xbf16>
    "tpu.trace_start"() <{level = 10 : i32, message = "gqk,gkd->gqd"}> : () -> ()
    %cst_9 = arith.constant dense<0.000000e+00> : vector<8x8x8xf32>
    %33 = tpu.matmul %32, %20, %cst_9 {dimension_numbers = #tpu.dot_dimension_numbers<[2], [1], [1], [2], [0, 0, 0, 1, 1, 2], [0], [0]>} : vector<8x8x8xbf16>, vector<8x8x8xbf16>, vector<8x8x8xf32> -> vector<8x8x8xf32>
    "tpu.trace_stop"() : () -> ()
    %34 = arith.truncf %33 : vector<8x8x8xf32> to vector<8x8x8xbf16>
    %35 = vector.shape_cast %34 : vector<8x8x8xbf16> to vector<2x4x8x8xbf16>
    %36 = tpu.transpose %35, [0, 2, 1, 3] : vector<2x4x8x8xbf16> -> vector<2x8x4x8xbf16>
    %37 = vector.shape_cast %36 : vector<2x8x4x8xbf16> to vector<16x32xbf16>
    %c0_10 = arith.constant 0 : index
    %c0_11 = arith.constant 0 : index
    %38 = vector.load %arg4[%c0_10, %c0_11] : memref<32x32xbf16, #tpu.memory_space<vmem>>, vector<32x32xbf16>
    %cst_12 = arith.constant dense<0.000000e+00> : vector<16x32xf32>
    %39 = tpu.matmul %37, %38, %cst_12 {dimension_numbers = #tpu.dot_dimension_numbers<[1], [0], [0], [1], [0, 0, 1, 1], [], []>} : vector<16x32xbf16>, vector<32x32xbf16>, vector<16x32xf32> -> vector<16x32xf32>
    %c0_13 = arith.constant 0 : index
    %c0_14 = arith.constant 0 : index
    %40 = vector.load %arg5[%c0_13, %c0_14] : memref<1x32xf32, #tpu.memory_space<vmem>>, vector<1x32xf32>
    %41 = vector.broadcast %40 : vector<1x32xf32> to vector<16x32xf32>
    %42 = arith.addf %39, %41 : vector<16x32xf32>
    %43 = vector.shape_cast %42 : vector<16x32xf32> to vector<2x8x32xf32>
    %c0_15 = arith.constant 0 : index
    %c0_16 = arith.constant 0 : index
    %c0_17 = arith.constant 0 : index
    %44 = vector.load %arg6[%c0_15, %c0_16, %c0_17] : memref<2x8x32xf32, #tpu.memory_space<vmem>>, vector<2x8x32xf32>
    tpu.vector_store %arg6[%c0_15, %c0_16, %c0_17], %43 {strides = array<i32>} : memref<2x8x32xf32, #tpu.memory_space<vmem>>, vector<2x8x32xf32>,
    return
  }
  func.func @transform_0(%arg0: i32) -> (i32, i32, i32) {
    %c0_i32 = arith.constant 0 : i32
    %c0_i32_0 = arith.constant 0 : i32
    %c0_i32_1 = arith.constant 0 : i32
    return %arg0, %c0_i32, %c0_i32_0 : i32, i32, i32
  }
  func.func @transform_1(%arg0: i32) -> (i32, i32) {
    %c0_i32 = arith.constant 0 : i32
    %c0_i32_0 = arith.constant 0 : i32
    %c0_i32_1 = arith.constant 0 : i32
    return %c0_i32, %c0_i32_0 : i32, i32
  }
  func.func @transform_2(%arg0: i32) -> (i32, i32) {
    %c0_i32 = arith.constant 0 : i32
    %c0_i32_0 = arith.constant 0 : i32
    %c0_i32_1 = arith.constant 0 : i32
    return %c0_i32, %c0_i32_0 : i32, i32
  }
  func.func @transform_3(%arg0: i32) -> (i32, i32) {
    %c0_i32 = arith.constant 0 : i32
    %c0_i32_0 = arith.constant 0 : i32
    %c0_i32_1 = arith.constant 0 : i32
    return %c0_i32, %c0_i32_0 : i32, i32
  }
  func.func @transform_4(%arg0: i32) -> (i32, i32) {
    %c0_i32 = arith.constant 0 : i32
    %c0_i32_0 = arith.constant 0 : i32
    %c0_i32_1 = arith.constant 0 : i32
    return %c0_i32, %c0_i32_0 : i32, i32
  }
  func.func @transform_5(%arg0: i32) -> (i32, i32, i32) {
    %c0_i32 = arith.constant 0 : i32
    %c0_i32_0 = arith.constant 0 : i32
    %c0_i32_1 = arith.constant 0 : i32
    return %arg0, %c0_i32, %c0_i32_0 : i32, i32, i32
  }
}

</mosaic_0001>

<llo_original>
// kernel: tpu_custom_call.1
$region0: #{tpu_custom_call.1}
  #allocation0 [shape = 'u32[]', space=smem, size = 0x4, offset = 0x4, fixed_abs, tag = 'smem constant byte address 0x4 - core index']
  #allocation1 [shape = 'u32[144,128]{1,0:T(1,128)}', space=vmem, size = 0x12000, scoped, tag = 'internal scratch']
  %s0 = inlined_call_operand.hbm [shape: f32[2,8,32], index: 0, kind: input, shape index: {}]
  %s1 = inlined_call_operand.hbm [shape: bf16[32,96], index: 1, kind: input, shape index: {}]
  %s2 = inlined_call_operand.vmem [shape: f32[1,96], index: 2, kind: input, shape index: {}]
  %s3 = inlined_call_operand.hbm [shape: bf16[32,32], index: 3, kind: input, shape index: {}]
  %s4 = inlined_call_operand.vmem [shape: f32[1,32], index: 4, kind: input, shape index: {}]
  %s5 = inlined_call_operand.hbm [shape: f32[2,8,32], index: 5, kind: output, shape index: {}]
  %s6 = sld [smem:[#allocation0]]
  $region42: #{tpu_custom_call.1} parent=0
    _
  %s8 = ssub.s32 1, %s6
  %s9 = scalar_select 0, %s8, %s6
  $region1: #{tpu_custom_call.1} parent=0
    #allocation2 [shape = 'u8[8192]{0}', space=vmem, size = 0x2000, scoped, tag = 'input window, operand 0, single buffered']
    #allocation3 [shape = 's32[1]{0}', space=sflag, size = 0x4, scoped, tag = 'scoped memory for tpu_custom_call.1']
    #allocation4 [shape = 's32[1]{0}', space=sflag, size = 0x4, scoped, tag = 'scoped memory for tpu_custom_call.1']
    #allocation5 [shape = 'u8[8192]{0}', space=vmem, size = 0x2000, scoped, tag = 'input window, operand 1, single buffered']
    #allocation6 [shape = 's32[1]{0}', space=sflag, size = 0x4, scoped, tag = 'scoped memory for tpu_custom_call.1']
    #allocation7 [shape = 'u8[8192]{0}', space=vmem, size = 0x2000, scoped, tag = 'input window, operand 3, single buffered']
    #allocation8 [shape = 'u8[8192]{0}', space=vmem, size = 0x2000, scoped, tag = 'output window, operand 0, single buffered']
    %10 = vsyncpa [#allocation3], 0
    %11 = vsyncpa [#allocation6], 0
    %12 = vsyncpa [#allocation4], 0
    // Predicated region
    $region2: #{tpu_custom_call.1} parent=1 // pred_check
      _
    $region3: #{tpu_custom_call.1} parent=1 // pred_check_branch
      %14 = sbr.rel (0) target = $region5
    $region4: #{tpu_custom_call.1} parent=1 // pred_region
      %s16 = ssub.s32 256, 256
      %17 = vsyncadd [#allocation3], %s16
      %s18 = sshll.u32 [#allocation2], 4
      %s19 = int_to_ptr.vmem [resolvable:$true] %s18
      %24 = dma.hbm_to_vmem [thread:$0]  %s0, 256, %s19, [#allocation3], 128, 128, 8
    $region5: #{tpu_custom_call.1} parent=1 // pred_fallthru
      _
    // Predicated region
    $region6: #{tpu_custom_call.1} parent=1 // pred_check
      _
    $region7: #{tpu_custom_call.1} parent=1 // pred_check_branch
      %26 = sbr.rel (0) target = $region9
    $region8: #{tpu_custom_call.1} parent=1 // pred_region
      %s28 = ssub.s32 256, 256
      %29 = vsyncadd [#allocation6], %s28
      %s30 = sshll.u32 [#allocation5], 4
      %s31 = int_to_ptr.vmem [resolvable:$true] %s30
      %36 = dma.hbm_to_vmem [thread:$0]  %s1, 256, %s31, [#allocation6], 64, 64, 4
    $region9: #{tpu_custom_call.1} parent=1 // pred_fallthru
      _
    // Predicated region
    $region10: #{tpu_custom_call.1} parent=1 // pred_check
      _
    $region11: #{tpu_custom_call.1} parent=1 // pred_check_branch
      %38 = sbr.rel (0) target = $region13
    $region12: #{tpu_custom_call.1} parent=1 // pred_region
      _
    $region13: #{tpu_custom_call.1} parent=1 // pred_fallthru
      _
    // Predicated region
    $region14: #{tpu_custom_call.1} parent=1 // pred_check
      _
    $region15: #{tpu_custom_call.1} parent=1 // pred_check_branch
      %40 = sbr.rel (0) target = $region17
    $region16: #{tpu_custom_call.1} parent=1 // pred_region
      %s42 = ssub.s32 256, 256
      %43 = vsyncadd [#allocation6], %s42
      %s44 = sshll.u32 [#allocation7], 4
      %s45 = int_to_ptr.vmem [resolvable:$true] %s44
      %50 = dma.hbm_to_vmem [thread:$0]  %s3, 256, %s45, [#allocation6], 64, 64, 4
    $region17: #{tpu_custom_call.1} parent=1 // pred_fallthru
      _
    // Predicated region
    $region18: #{tpu_custom_call.1} parent=1 // pred_check
      _
    $region19: #{tpu_custom_call.1} parent=1 // pred_check_branch
      %52 = sbr.rel (0) target = $region21
    $region20: #{tpu_custom_call.1} parent=1 // pred_region
      _
    $region21: #{tpu_custom_call.1} parent=1 // pred_fallthru
      _
    // Predicated region
    $region22: #{tpu_custom_call.1} parent=1 // pred_check
      _
    $region23: #{tpu_custom_call.1} parent=1 // pred_check_branch
      %54 = sbr.rel (0) target = $region25
    $region24: #{tpu_custom_call.1} parent=1 // pred_region
      %55 = dma.done [#allocation3], 256
    $region25: #{tpu_custom_call.1} parent=1 // pred_fallthru
      _
    // Predicated region
    $region26: #{tpu_custom_call.1} parent=1 // pred_check
      _
    $region27: #{tpu_custom_call.1} parent=1 // pred_check_branch
      %57 = sbr.rel (0) target = $region29
    $region28: #{tpu_custom_call.1} parent=1 // pred_region
      %58 = dma.done [#allocation6], 256
    $region29: #{tpu_custom_call.1} parent=1 // pred_fallthru
      _
    // Predicated region
    $region30: #{tpu_custom_call.1} parent=1 // pred_check
      _
    $region31: #{tpu_custom_call.1} parent=1 // pred_check_branch
      %60 = sbr.rel (0) target = $region33
    $region32: #{tpu_custom_call.1} parent=1 // pred_region
      %61 = dma.done [#allocation6], 256
    $region33: #{tpu_custom_call.1} parent=1 // pred_fallthru
      _
    %v63 = vld [vmem:[#allocation2] sm:$0xff]
    %v64 = vld [vmem:[#allocation2 + $0x8] sm:$0xff]
    %v65 = vpack.c.bf16 %v64, %v63
    %v66 = vld [vmem:[#allocation5] sm:$0xf]
    %v67 = vld [vmem:[#allocation5 + $0x4] sm:$0xf]
    %v68 = vld [vmem:[#allocation5 + $0x8] sm:$0xf]
    %v69 = vld [vmem:[#allocation5 + $0xc] sm:$0xf]
    %v70 = vld [vmem:[%s2] sm:$0x1]
    %v72 = vlaneseq
    %v73 = vshrl.u32 %v72, 7
    %v74 = vsub.s32 0, %v73
    %v75 = vrot.slane %v70, %v74
    %v81 = vunpack.c.l.b16 %v66
    %v82 = vunpack.c.l.b16 %v67
    %v83 = vunpack.c.l.b16 %v68
    %v84 = vunpack.c.l.b16 %v69
    %v85 = vpack.c.b16 %v82, %v81
    %v86 = vpack.c.b16 %v84, %v83
    %vm89 = vcmask 261120
    %v91 = vsel %vm89, %v65, 0
    %93 = vmatprep.subr.bf16.mxu0 0
    %94 = vmatpush1.bf16.msra.mxu0 0
    %95 = vmatprep.subr.bf16.mxu0 0
    %96 = vmatpush1.bf16.msra.mxu0 0
    %97 = vmatprep.subr.bf16.mxu0 0
    %98 = vmatpush1.bf16.msra.mxu0 0
    %99 = vmatprep.subr.bf16.mxu0 0
    %100 = vmatpush1.bf16.msra.mxu0 0
    %101 = vmatprep.subr.bf16.mxu0 0
    %102 = vmatpush1.bf16.msra.mxu0 0
    %103 = vmatprep.subr.bf16.mxu0 0
    %104 = vmatpush1.bf16.msra.mxu0 0
    %105 = vmatprep.subr.bf16.mxu0 0
    %106 = vmatpush1.bf16.msra.mxu0 %v86
    %107 = vmatprep.subr.bf16.mxu0 0
    %108 = vmatpush1.bf16.msra.mxu0 %v85
    %109 = vmatprep.subr.bf16.mxu0 0
    %110 = vmatpush2.bf16.msra.mxu0 0
    %111 = vmatprep.subr.bf16.mxu0 0
    %112 = vmatpush2.bf16.msra.mxu0 0
    %113 = vmatprep.subr.bf16.mxu0 0
    %114 = vmatpush2.bf16.msra.mxu0 0
    %115 = vmatprep.subr.bf16.mxu0 0
    %116 = vmatpush2.bf16.msra.mxu0 0
    %117 = vmatprep.subr.bf16.mxu0 0
    %118 = vmatpush2.bf16.msra.mxu0 0
    %119 = vmatprep.subr.bf16.mxu0 0
    %120 = vmatpush2.bf16.msra.mxu0 0
    %121 = vmatprep.subr.bf16.mxu0 0
    %122 = vmatpush2.bf16.msra.mxu0 0
    %123 = vmatprep.subr.bf16.mxu0 0
    %124 = vmatpush2.bf16.msra.mxu0 0
    %125 = vmatprep.mubr.bf16.mxu0 0
    %126 = vmatmul.mubr.bf16.gmra.mxu0 %v91
    %v127 = vpop.f32.mrf.mxu0
    %v128 = vadd.f32 %v75, %v127
    %v129 = vpop.f32.mrf.mxu0
    %v130 = vpop.f32.mrf.mxu0
    %v131 = vadd.f32 %v75, %v130
    %v132 = vpop.f32.mrf.mxu0
    %133 = vdwg.mxu0
    %v134 = vpack.c.bf16 %v131, %v128
    %136 = vrot.lane.b32.xlu0 %v134, 120
    %v137 = vpop.permute.xlu0 %136
    %138 = vrot.lane.b32.xlu0 %v134, 112
    %v139 = vpop.permute.xlu0 %138
    %140 = vrot.lane.b32.xlu0 %v134, 104
    %v141 = vpop.permute.xlu0 %140
    %v144 = vpack.i.b16 %v137, %v134
    %v146 = vshrl.u32 %v134, 16
    %v147 = vshrl.u32 %v137, 16
    %v148 = vpack.i.b16 %v147, %v146
    %v152 = vpack.i.b16 %v141, %v139
    %v154 = vshrl.u32 %v139, 16
    %v155 = vshrl.u32 %v141, 16
    %v156 = vpack.i.b16 %v155, %v154
    %v159 = vpack.i.b16 0, 0
    %v161 = vshrl.u32 0, 16
    %v162 = vpack.i.b16 %v161, %v161
    %v164 = vcombine.high %v144, %v159
    %v166 = vunpack.c.l.s4 1983009808
    %v167 = vunpack.c.0.s8 %v166
    %v168 = vlaneseq
    %v169 = vshrl.u32 %v168, 7
    %v170 = vsub.s32 %v167, %v169
    %v171 = vrot.slane %v144, %v170
    %v173 = vunpack.c.l.s4 1983009808
    %v174 = vunpack.c.0.s8 %v173
    %v175 = vlaneseq
    %v176 = vshrl.u32 %v175, 7
    %v177 = vsub.s32 %v174, %v176
    %v178 = vrot.slane %v164, %v177
    %v179 = vcombine.high %v152, %v159
    %v181 = vunpack.c.l.s4 1983009808
    %v182 = vunpack.c.0.s8 %v181
    %v183 = vlaneseq
    %v184 = vshrl.u32 %v183, 7
    %v185 = vsub.s32 %v182, %v184
    %v186 = vrot.slane %v152, %v185
    %v188 = vunpack.c.l.s4 1983009808
    %v189 = vunpack.c.0.s8 %v188
    %v190 = vlaneseq
    %v191 = vshrl.u32 %v190, 7
    %v192 = vsub.s32 %v189, %v191
    %v193 = vrot.slane %v179, %v192
    %v194 = vcombine.low %v171, %v186
    %v195 = vcombine.high %v171, %v186
    %v197 = vunpack.c.l.s4 1934713408
    %v198 = vunpack.c.0.s8 %v197
    %v199 = vlaneseq
    %v200 = vshrl.u32 %v199, 7
    %v201 = vsub.s32 %v198, %v200
    %v202 = vrot.slane %v194, %v201
    %v204 = vunpack.c.l.s4 1934713408
    %v205 = vunpack.c.0.s8 %v204
    %v206 = vlaneseq
    %v207 = vshrl.u32 %v206, 7
    %v208 = vsub.s32 %v205, %v207
    %v209 = vrot.slane %v195, %v208
    %v210 = vcombine.low %v178, %v193
    %v211 = vcombine.high %v178, %v193
    %v213 = vunpack.c.l.s4 1934713408
    %v214 = vunpack.c.0.s8 %v213
    %v215 = vlaneseq
    %v216 = vshrl.u32 %v215, 7
    %v217 = vsub.s32 %v214, %v216
    %v218 = vrot.slane %v210, %v217
    %v220 = vunpack.c.l.s4 1934713408
    %v221 = vunpack.c.0.s8 %v220
    %v222 = vlaneseq
    %v223 = vshrl.u32 %v222, 7
    %v224 = vsub.s32 %v221, %v223
    %v225 = vrot.slane %v211, %v224
    %v226 = vcombine.high %v202, 0
    %v227 = vcombine.high %v209, 0
    %v228 = vcombine.high %v218, 0
    %v229 = vcombine.high %v225, 0
    %v230 = vcombine.high %v148, %v162
    %v232 = vunpack.c.l.s4 1983009808
    %v233 = vunpack.c.0.s8 %v232
    %v234 = vlaneseq
    %v235 = vshrl.u32 %v234, 7
    %v236 = vsub.s32 %v233, %v235
    %v237 = vrot.slane %v148, %v236
    %v239 = vunpack.c.l.s4 1983009808
    %v240 = vunpack.c.0.s8 %v239
    %v241 = vlaneseq
    %v242 = vshrl.u32 %v241, 7
    %v243 = vsub.s32 %v240, %v242
    %v244 = vrot.slane %v230, %v243
    %v245 = vcombine.high %v156, %v162
    %v247 = vunpack.c.l.s4 1983009808
    %v248 = vunpack.c.0.s8 %v247
    %v249 = vlaneseq
    %v250 = vshrl.u32 %v249, 7
    %v251 = vsub.s32 %v248, %v250
    %v252 = vrot.slane %v156, %v251
    %v254 = vunpack.c.l.s4 1983009808
    %v255 = vunpack.c.0.s8 %v254
    %v256 = vlaneseq
    %v257 = vshrl.u32 %v256, 7
    %v258 = vsub.s32 %v255, %v257
    %v259 = vrot.slane %v245, %v258
    %v260 = vcombine.low %v237, %v252
    %v261 = vcombine.high %v237, %v252
    %v263 = vunpack.c.l.s4 1934713408
    %v264 = vunpack.c.0.s8 %v263
    %v265 = vlaneseq
    %v266 = vshrl.u32 %v265, 7
    %v267 = vsub.s32 %v264, %v266
    %v268 = vrot.slane %v260, %v267
    %v270 = vunpack.c.l.s4 1934713408
    %v271 = vunpack.c.0.s8 %v270
    %v272 = vlaneseq
    %v273 = vshrl.u32 %v272, 7
    %v274 = vsub.s32 %v271, %v273
    %v275 = vrot.slane %v261, %v274
    %v276 = vcombine.low %v244, %v259
    %v277 = vcombine.high %v244, %v259
    %v279 = vunpack.c.l.s4 1934713408
    %v280 = vunpack.c.0.s8 %v279
    %v281 = vlaneseq
    %v282 = vshrl.u32 %v281, 7
    %v283 = vsub.s32 %v280, %v282
    %v284 = vrot.slane %v276, %v283
    %v286 = vunpack.c.l.s4 1934713408
    %v287 = vunpack.c.0.s8 %v286
    %v288 = vlaneseq
    %v289 = vshrl.u32 %v288, 7
    %v290 = vsub.s32 %v287, %v289
    %v291 = vrot.slane %v277, %v290
    %v292 = vcombine.high %v268, 0
    %v293 = vcombine.high %v275, 0
    %v294 = vcombine.high %v284, 0
    %v295 = vcombine.high %v291, 0
    %v296 = vcombine.low %v202, %v209
    %v298 = vunpack.c.l.s4 1983009808
    %v299 = vunpack.c.0.s8 %v298
    %v300 = vlaneseq
    %v301 = vshrl.u32 %v300, 7
    %v302 = vsub.s32 %v299, %v301
    %v303 = vrot.slane %v296, %v302
    %v304 = vcombine.low %v226, %v227
    %v306 = vunpack.c.l.s4 1983009808
    %v307 = vunpack.c.0.s8 %v306
    %v308 = vlaneseq
    %v309 = vshrl.u32 %v308, 7
    %v310 = vsub.s32 %v307, %v309
    %v311 = vrot.slane %v304, %v310
    %v312 = vcombine.low %v303, %v311
    %v314 = vunpack.c.l.s4 1934713408
    %v315 = vunpack.c.0.s8 %v314
    %v316 = vlaneseq
    %v317 = vshrl.u32 %v316, 7
    %v318 = vsub.s32 %v315, %v317
    %v319 = vrot.slane %v312, %v318
    %v320 = vcombine.high %v319, 0
    %v321 = vcombine.low %v268, %v275
    %v323 = vunpack.c.l.s4 1983009808
    %v324 = vunpack.c.0.s8 %v323
    %v325 = vlaneseq
    %v326 = vshrl.u32 %v325, 7
    %v327 = vsub.s32 %v324, %v326
    %v328 = vrot.slane %v321, %v327
    %v329 = vcombine.low %v292, %v293
    %v331 = vunpack.c.l.s4 1983009808
    %v332 = vunpack.c.0.s8 %v331
    %v333 = vlaneseq
    %v334 = vshrl.u32 %v333, 7
    %v335 = vsub.s32 %v332, %v334
    %v336 = vrot.slane %v329, %v335
    %v337 = vcombine.low %v328, %v336
    %v339 = vunpack.c.l.s4 1934713408
    %v340 = vunpack.c.0.s8 %v339
    %v341 = vlaneseq
    %v342 = vshrl.u32 %v341, 7
    %v343 = vsub.s32 %v340, %v342
    %v344 = vrot.slane %v337, %v343
    %v345 = vcombine.high %v344, 0
    %v346 = vcombine.low %v218, %v225
    %v348 = vunpack.c.l.s4 1983009808
    %v349 = vunpack.c.0.s8 %v348
    %v350 = vlaneseq
    %v351 = vshrl.u32 %v350, 7
    %v352 = vsub.s32 %v349, %v351
    %v353 = vrot.slane %v346, %v352
    %v354 = vcombine.low %v228, %v229
    %v356 = vunpack.c.l.s4 1983009808
    %v357 = vunpack.c.0.s8 %v356
    %v358 = vlaneseq
    %v359 = vshrl.u32 %v358, 7
    %v360 = vsub.s32 %v357, %v359
    %v361 = vrot.slane %v354, %v360
    %v362 = vcombine.low %v353, %v361
    %v364 = vunpack.c.l.s4 1934713408
    %v365 = vunpack.c.0.s8 %v364
    %v366 = vlaneseq
    %v367 = vshrl.u32 %v366, 7
    %v368 = vsub.s32 %v365, %v367
    %v369 = vrot.slane %v362, %v368
    %v370 = vcombine.high %v369, 0
    %v371 = vcombine.low %v284, %v291
    %v373 = vunpack.c.l.s4 1983009808
    %v374 = vunpack.c.0.s8 %v373
    %v375 = vlaneseq
    %v376 = vshrl.u32 %v375, 7
    %v377 = vsub.s32 %v374, %v376
    %v378 = vrot.slane %v371, %v377
    %v379 = vcombine.low %v294, %v295
    %v381 = vunpack.c.l.s4 1983009808
    %v382 = vunpack.c.0.s8 %v381
    %v383 = vlaneseq
    %v384 = vshrl.u32 %v383, 7
    %v385 = vsub.s32 %v382, %v384
    %v386 = vrot.slane %v379, %v385
    %v387 = vcombine.low %v378, %v386
    %v389 = vunpack.c.l.s4 1934713408
    %v390 = vunpack.c.0.s8 %v389
    %v391 = vlaneseq
    %v392 = vshrl.u32 %v391, 7
    %v393 = vsub.s32 %v390, %v392
    %v394 = vrot.slane %v387, %v393
    %v395 = vcombine.high %v394, 0
    %v398 = vpack.i.b16 %v344, %v319
    %v399 = vshrl.u32 %v319, 16
    %v400 = vshrl.u32 %v344, 16
    %v401 = vpack.i.b16 %v400, %v399
    %v404 = vpack.i.b16 %v345, %v320
    %v405 = vshrl.u32 %v320, 16
    %v406 = vshrl.u32 %v345, 16
    %v407 = vpack.i.b16 %v406, %v405
    %v410 = vpack.i.b16 %v394, %v369
    %v411 = vshrl.u32 %v369, 16
    %v412 = vshrl.u32 %v394, 16
    %v413 = vpack.i.b16 %v412, %v411
    %v416 = vpack.i.b16 %v395, %v370
    %v417 = vshrl.u32 %v370, 16
    %v418 = vshrl.u32 %v395, 16
    %v419 = vpack.i.b16 %v418, %v417
    %420 = vrot.lane.b32.xlu0 %v134, 96
    %v421 = vpop.permute.xlu0 %420
    %422 = vrot.lane.b32.xlu0 %v137, 96
    %v423 = vpop.permute.xlu0 %422
    %424 = vrot.lane.b32.xlu0 %v139, 96
    %v425 = vpop.permute.xlu0 %424
    %426 = vrot.lane.b32.xlu0 %v141, 96
    %v427 = vpop.permute.xlu0 %426
    %v430 = vpack.i.b16 %v423, %v421
    %v432 = vshrl.u32 %v421, 16
    %v433 = vshrl.u32 %v423, 16
    %v434 = vpack.i.b16 %v433, %v432
    %v438 = vpack.i.b16 %v427, %v425
    %v440 = vshrl.u32 %v425, 16
    %v441 = vshrl.u32 %v427, 16
    %v442 = vpack.i.b16 %v441, %v440
    %v444 = vcombine.high %v430, %v159
    %v446 = vunpack.c.l.s4 1983009808
    %v447 = vunpack.c.0.s8 %v446
    %v448 = vlaneseq
    %v449 = vshrl.u32 %v448, 7
    %v450 = vsub.s32 %v447, %v449
    %v451 = vrot.slane %v430, %v450
    %v453 = vunpack.c.l.s4 1983009808
    %v454 = vunpack.c.0.s8 %v453
    %v455 = vlaneseq
    %v456 = vshrl.u32 %v455, 7
    %v457 = vsub.s32 %v454, %v456
    %v458 = vrot.slane %v444, %v457
    %v459 = vcombine.high %v438, %v159
    %v461 = vunpack.c.l.s4 1983009808
    %v462 = vunpack.c.0.s8 %v461
    %v463 = vlaneseq
    %v464 = vshrl.u32 %v463, 7
    %v465 = vsub.s32 %v462, %v464
    %v466 = vrot.slane %v438, %v465
    %v468 = vunpack.c.l.s4 1983009808
    %v469 = vunpack.c.0.s8 %v468
    %v470 = vlaneseq
    %v471 = vshrl.u32 %v470, 7
    %v472 = vsub.s32 %v469, %v471
    %v473 = vrot.slane %v459, %v472
    %v474 = vcombine.low %v451, %v466
    %v475 = vcombine.high %v451, %v466
    %v477 = vunpack.c.l.s4 1934713408
    %v478 = vunpack.c.0.s8 %v477
    %v479 = vlaneseq
    %v480 = vshrl.u32 %v479, 7
    %v481 = vsub.s32 %v478, %v480
    %v482 = vrot.slane %v474, %v481
    %v484 = vunpack.c.l.s4 1934713408
    %v485 = vunpack.c.0.s8 %v484
    %v486 = vlaneseq
    %v487 = vshrl.u32 %v486, 7
    %v488 = vsub.s32 %v485, %v487
    %v489 = vrot.slane %v475, %v488
    %v490 = vcombine.low %v458, %v473
    %v491 = vcombine.high %v458, %v473
    %v493 = vunpack.c.l.s4 1934713408
    %v494 = vunpack.c.0.s8 %v493
    %v495 = vlaneseq
    %v496 = vshrl.u32 %v495, 7
    %v497 = vsub.s32 %v494, %v496
    %v498 = vrot.slane %v490, %v497
    %v500 = vunpack.c.l.s4 1934713408
    %v501 = vunpack.c.0.s8 %v500
    %v502 = vlaneseq
    %v503 = vshrl.u32 %v502, 7
    %v504 = vsub.s32 %v501, %v503
    %v505 = vrot.slane %v491, %v504
    %v506 = vcombine.high %v482, 0
    %v507 = vcombine.high %v489, 0
    %v508 = vcombine.high %v498, 0
    %v509 = vcombine.high %v505, 0
    %v510 = vcombine.high %v434, %v162
    %v512 = vunpack.c.l.s4 1983009808
    %v513 = vunpack.c.0.s8 %v512
    %v514 = vlaneseq
    %v515 = vshrl.u32 %v514, 7
    %v516 = vsub.s32 %v513, %v515
    %v517 = vrot.slane %v434, %v516
    %v519 = vunpack.c.l.s4 1983009808
    %v520 = vunpack.c.0.s8 %v519
    %v521 = vlaneseq
    %v522 = vshrl.u32 %v521, 7
    %v523 = vsub.s32 %v520, %v522
    %v524 = vrot.slane %v510, %v523
    %v525 = vcombine.high %v442, %v162
    %v527 = vunpack.c.l.s4 1983009808
    %v528 = vunpack.c.0.s8 %v527
    %v529 = vlaneseq
    %v530 = vshrl.u32 %v529, 7
    %v531 = vsub.s32 %v528, %v530
    %v532 = vrot.slane %v442, %v531
    %v534 = vunpack.c.l.s4 1983009808
    %v535 = vunpack.c.0.s8 %v534
    %v536 = vlaneseq
    %v537 = vshrl.u32 %v536, 7
    %v538 = vsub.s32 %v535, %v537
    %v539 = vrot.slane %v525, %v538
    %v540 = vcombine.low %v517, %v532
    %v541 = vcombine.high %v517, %v532
    %v543 = vunpack.c.l.s4 1934713408
    %v544 = vunpack.c.0.s8 %v543
    %v545 = vlaneseq
    %v546 = vshrl.u32 %v545, 7
    %v547 = vsub.s32 %v544, %v546
    %v548 = vrot.slane %v540, %v547
    %v550 = vunpack.c.l.s4 1934713408
    %v551 = vunpack.c.0.s8 %v550
    %v552 = vlaneseq
    %v553 = vshrl.u32 %v552, 7
    %v554 = vsub.s32 %v551, %v553
    %v555 = vrot.slane %v541, %v554
    %v556 = vcombine.low %v524, %v539
    %v557 = vcombine.high %v524, %v539
    %v559 = vunpack.c.l.s4 1934713408
    %v560 = vunpack.c.0.s8 %v559
    %v561 = vlaneseq
    %v562 = vshrl.u32 %v561, 7
    %v563 = vsub.s32 %v560, %v562
    %v564 = vrot.slane %v556, %v563
    %v566 = vunpack.c.l.s4 1934713408
    %v567 = vunpack.c.0.s8 %v566
    %v568 = vlaneseq
    %v569 = vshrl.u32 %v568, 7
    %v570 = vsub.s32 %v567, %v569
    %v571 = vrot.slane %v557, %v570
    %v572 = vcombine.high %v548, 0
    %v573 = vcombine.high %v555, 0
    %v574 = vcombine.high %v564, 0
    %v575 = vcombine.high %v571, 0
    %v576 = vcombine.low %v482, %v489
    %v578 = vunpack.c.l.s4 1983009808
    %v579 = vunpack.c.0.s8 %v578
    %v580 = vlaneseq
    %v581 = vshrl.u32 %v580, 7
    %v582 = vsub.s32 %v579, %v581
    %v583 = vrot.slane %v576, %v582
    %v584 = vcombine.low %v506, %v507
    %v586 = vunpack.c.l.s4 1983009808
    %v587 = vunpack.c.0.s8 %v586
    %v588 = vlaneseq
    %v589 = vshrl.u32 %v588, 7
    %v590 = vsub.s32 %v587, %v589
    %v591 = vrot.slane %v584, %v590
    %v592 = vcombine.low %v583, %v591
    %v594 = vunpack.c.l.s4 1934713408
    %v595 = vunpack.c.0.s8 %v594
    %v596 = vlaneseq
    %v597 = vshrl.u32 %v596, 7
    %v598 = vsub.s32 %v595, %v597
    %v599 = vrot.slane %v592, %v598
    %v600 = vcombine.high %v599, 0
    %v601 = vcombine.low %v548, %v555
    %v603 = vunpack.c.l.s4 1983009808
    %v604 = vunpack.c.0.s8 %v603
    %v605 = vlaneseq
    %v606 = vshrl.u32 %v605, 7
    %v607 = vsub.s32 %v604, %v606
    %v608 = vrot.slane %v601, %v607
    %v609 = vcombine.low %v572, %v573
    %v611 = vunpack.c.l.s4 1983009808
    %v612 = vunpack.c.0.s8 %v611
    %v613 = vlaneseq
    %v614 = vshrl.u32 %v613, 7
    %v615 = vsub.s32 %v612, %v614
    %v616 = vrot.slane %v609, %v615
    %v617 = vcombine.low %v608, %v616
    %v619 = vunpack.c.l.s4 1934713408
    %v620 = vunpack.c.0.s8 %v619
    %v621 = vlaneseq
    %v622 = vshrl.u32 %v621, 7
    %v623 = vsub.s32 %v620, %v622
    %v624 = vrot.slane %v617, %v623
    %v625 = vcombine.high %v624, 0
    %v626 = vcombine.low %v498, %v505
    %v628 = vunpack.c.l.s4 1983009808
    %v629 = vunpack.c.0.s8 %v628
    %v630 = vlaneseq
    %v631 = vshrl.u32 %v630, 7
    %v632 = vsub.s32 %v629, %v631
    %v633 = vrot.slane %v626, %v632
    %v634 = vcombine.low %v508, %v509
    %v636 = vunpack.c.l.s4 1983009808
    %v637 = vunpack.c.0.s8 %v636
    %v638 = vlaneseq
    %v639 = vshrl.u32 %v638, 7
    %v640 = vsub.s32 %v637, %v639
    %v641 = vrot.slane %v634, %v640
    %v642 = vcombine.low %v633, %v641
    %v644 = vunpack.c.l.s4 1934713408
    %v645 = vunpack.c.0.s8 %v644
    %v646 = vlaneseq
    %v647 = vshrl.u32 %v646, 7
    %v648 = vsub.s32 %v645, %v647
    %v649 = vrot.slane %v642, %v648
    %v650 = vcombine.high %v649, 0
    %v651 = vcombine.low %v564, %v571
    %v653 = vunpack.c.l.s4 1983009808
    %v654 = vunpack.c.0.s8 %v653
    %v655 = vlaneseq
    %v656 = vshrl.u32 %v655, 7
    %v657 = vsub.s32 %v654, %v656
    %v658 = vrot.slane %v651, %v657
    %v659 = vcombine.low %v574, %v575
    %v661 = vunpack.c.l.s4 1983009808
    %v662 = vunpack.c.0.s8 %v661
    %v663 = vlaneseq
    %v664 = vshrl.u32 %v663, 7
    %v665 = vsub.s32 %v662, %v664
    %v666 = vrot.slane %v659, %v665
    %v667 = vcombine.low %v658, %v666
    %v669 = vunpack.c.l.s4 1934713408
    %v670 = vunpack.c.0.s8 %v669
    %v671 = vlaneseq
    %v672 = vshrl.u32 %v671, 7
    %v673 = vsub.s32 %v670, %v672
    %v674 = vrot.slane %v667, %v673
    %v675 = vcombine.high %v674, 0
    %v678 = vpack.i.b16 %v624, %v599
    %v679 = vshrl.u32 %v599, 16
    %v680 = vshrl.u32 %v624, 16
    %v681 = vpack.i.b16 %v680, %v679
    %v684 = vpack.i.b16 %v625, %v600
    %v685 = vshrl.u32 %v600, 16
    %v686 = vshrl.u32 %v625, 16
    %v687 = vpack.i.b16 %v686, %v685
    %v690 = vpack.i.b16 %v674, %v649
    %v691 = vshrl.u32 %v649, 16
    %v692 = vshrl.u32 %v674, 16
    %v693 = vpack.i.b16 %v692, %v691
    %v696 = vpack.i.b16 %v675, %v650
    %v697 = vshrl.u32 %v650, 16
    %v698 = vshrl.u32 %v675, 16
    %v699 = vpack.i.b16 %v698, %v697
    %700 = vrot.lane.b32.xlu0 %v134, 64
    %v701 = vpop.permute.xlu0 %700
    %702 = vrot.lane.b32.xlu0 %v137, 64
    %v703 = vpop.permute.xlu0 %702
    %704 = vrot.lane.b32.xlu0 %v139, 64
    %v705 = vpop.permute.xlu0 %704
    %706 = vrot.lane.b32.xlu0 %v141, 64
    %v707 = vpop.permute.xlu0 %706
    %v710 = vpack.i.b16 %v703, %v701
    %v712 = vshrl.u32 %v701, 16
    %v713 = vshrl.u32 %v703, 16
    %v714 = vpack.i.b16 %v713, %v712
    %v718 = vpack.i.b16 %v707, %v705
    %v720 = vshrl.u32 %v705, 16
    %v721 = vshrl.u32 %v707, 16
    %v722 = vpack.i.b16 %v721, %v720
    %v724 = vcombine.high %v710, %v159
    %v726 = vunpack.c.l.s4 1983009808
    %v727 = vunpack.c.0.s8 %v726
    %v728 = vlaneseq
    %v729 = vshrl.u32 %v728, 7
    %v730 = vsub.s32 %v727, %v729
    %v731 = vrot.slane %v710, %v730
    %v733 = vunpack.c.l.s4 1983009808
    %v734 = vunpack.c.0.s8 %v733
    %v735 = vlaneseq
    %v736 = vshrl.u32 %v735, 7
    %v737 = vsub.s32 %v734, %v736
    %v738 = vrot.slane %v724, %v737
    %v739 = vcombine.high %v718, %v159
    %v741 = vunpack.c.l.s4 1983009808
    %v742 = vunpack.c.0.s8 %v741
    %v743 = vlaneseq
    %v744 = vshrl.u32 %v743, 7
    %v745 = vsub.s32 %v742, %v744
    %v746 = vrot.slane %v718, %v745
    %v748 = vunpack.c.l.s4 1983009808
    %v749 = vunpack.c.0.s8 %v748
    %v750 = vlaneseq
    %v751 = vshrl.u32 %v750, 7
    %v752 = vsub.s32 %v749, %v751
    %v753 = vrot.slane %v739, %v752
    %v754 = vcombine.low %v731, %v746
    %v755 = vcombine.high %v731, %v746
    %v757 = vunpack.c.l.s4 1934713408
    %v758 = vunpack.c.0.s8 %v757
    %v759 = vlaneseq
    %v760 = vshrl.u32 %v759, 7
    %v761 = vsub.s32 %v758, %v760
    %v762 = vrot.slane %v754, %v761
    %v764 = vunpack.c.l.s4 1934713408
    %v765 = vunpack.c.0.s8 %v764
    %v766 = vlaneseq
    %v767 = vshrl.u32 %v766, 7
    %v768 = vsub.s32 %v765, %v767
    %v769 = vrot.slane %v755, %v768
    %v770 = vcombine.low %v738, %v753
    %v771 = vcombine.high %v738, %v753
    %v773 = vunpack.c.l.s4 1934713408
    %v774 = vunpack.c.0.s8 %v773
    %v775 = vlaneseq
    %v776 = vshrl.u32 %v775, 7
    %v777 = vsub.s32 %v774, %v776
    %v778 = vrot.slane %v770, %v777
    %v780 = vunpack.c.l.s4 1934713408
    %v781 = vunpack.c.0.s8 %v780
    %v782 = vlaneseq
    %v783 = vshrl.u32 %v782, 7
    %v784 = vsub.s32 %v781, %v783
    %v785 = vrot.slane %v771, %v784
    %v786 = vcombine.high %v762, 0
    %v787 = vcombine.high %v769, 0
    %v788 = vcombine.high %v778, 0
    %v789 = vcombine.high %v785, 0
    %v790 = vcombine.high %v714, %v162
    %v792 = vunpack.c.l.s4 1983009808
    %v793 = vunpack.c.0.s8 %v792
    %v794 = vlaneseq
    %v795 = vshrl.u32 %v794, 7
    %v796 = vsub.s32 %v793, %v795
    %v797 = vrot.slane %v714, %v796
    %v799 = vunpack.c.l.s4 1983009808
    %v800 = vunpack.c.0.s8 %v799
    %v801 = vlaneseq
    %v802 = vshrl.u32 %v801, 7
    %v803 = vsub.s32 %v800, %v802
    %v804 = vrot.slane %v790, %v803
    %v805 = vcombine.high %v722, %v162
    %v807 = vunpack.c.l.s4 1983009808
    %v808 = vunpack.c.0.s8 %v807
    %v809 = vlaneseq
    %v810 = vshrl.u32 %v809, 7
    %v811 = vsub.s32 %v808, %v810
    %v812 = vrot.slane %v722, %v811
    %v814 = vunpack.c.l.s4 1983009808
    %v815 = vunpack.c.0.s8 %v814
    %v816 = vlaneseq
    %v817 = vshrl.u32 %v816, 7
    %v818 = vsub.s32 %v815, %v817
    %v819 = vrot.slane %v805, %v818
    %v820 = vcombine.low %v797, %v812
    %v821 = vcombine.high %v797, %v812
    %v823 = vunpack.c.l.s4 1934713408
    %v824 = vunpack.c.0.s8 %v823
    %v825 = vlaneseq
    %v826 = vshrl.u32 %v825, 7
    %v827 = vsub.s32 %v824, %v826
    %v828 = vrot.slane %v820, %v827
    %v830 = vunpack.c.l.s4 1934713408
    %v831 = vunpack.c.0.s8 %v830
    %v832 = vlaneseq
    %v833 = vshrl.u32 %v832, 7
    %v834 = vsub.s32 %v831, %v833
    %v835 = vrot.slane %v821, %v834
    %v836 = vcombine.low %v804, %v819
    %v837 = vcombine.high %v804, %v819
    %v839 = vunpack.c.l.s4 1934713408
    %v840 = vunpack.c.0.s8 %v839
    %v841 = vlaneseq
    %v842 = vshrl.u32 %v841, 7
    %v843 = vsub.s32 %v840, %v842
    %v844 = vrot.slane %v836, %v843
    %v846 = vunpack.c.l.s4 1934713408
    %v847 = vunpack.c.0.s8 %v846
    %v848 = vlaneseq
    %v849 = vshrl.u32 %v848, 7
    %v850 = vsub.s32 %v847, %v849
    %v851 = vrot.slane %v837, %v850
    %v852 = vcombine.high %v828, 0
    %v853 = vcombine.high %v835, 0
    %v854 = vcombine.high %v844, 0
    %v855 = vcombine.high %v851, 0
    %v856 = vcombine.low %v762, %v769
    %v858 = vunpack.c.l.s4 1983009808
    %v859 = vunpack.c.0.s8 %v858
    %v860 = vlaneseq
    %v861 = vshrl.u32 %v860, 7
    %v862 = vsub.s32 %v859, %v861
    %v863 = vrot.slane %v856, %v862
    %v864 = vcombine.low %v786, %v787
    %v866 = vunpack.c.l.s4 1983009808
    %v867 = vunpack.c.0.s8 %v866
    %v868 = vlaneseq
    %v869 = vshrl.u32 %v868, 7
    %v870 = vsub.s32 %v867, %v869
    %v871 = vrot.slane %v864, %v870
    %v872 = vcombine.low %v863, %v871
    %v874 = vunpack.c.l.s4 1934713408
    %v875 = vunpack.c.0.s8 %v874
    %v876 = vlaneseq
    %v877 = vshrl.u32 %v876, 7
    %v878 = vsub.s32 %v875, %v877
    %v879 = vrot.slane %v872, %v878
    %v880 = vcombine.high %v879, 0
    %v881 = vcombine.low %v828, %v835
    %v883 = vunpack.c.l.s4 1983009808
    %v884 = vunpack.c.0.s8 %v883
    %v885 = vlaneseq
    %v886 = vshrl.u32 %v885, 7
    %v887 = vsub.s32 %v884, %v886
    %v888 = vrot.slane %v881, %v887
    %v889 = vcombine.low %v852, %v853
    %v891 = vunpack.c.l.s4 1983009808
    %v892 = vunpack.c.0.s8 %v891
    %v893 = vlaneseq
    %v894 = vshrl.u32 %v893, 7
    %v895 = vsub.s32 %v892, %v894
    %v896 = vrot.slane %v889, %v895
    %v897 = vcombine.low %v888, %v896
    %v899 = vunpack.c.l.s4 1934713408
    %v900 = vunpack.c.0.s8 %v899
    %v901 = vlaneseq
    %v902 = vshrl.u32 %v901, 7
    %v903 = vsub.s32 %v900, %v902
    %v904 = vrot.slane %v897, %v903
    %v905 = vcombine.high %v904, 0
    %v906 = vcombine.low %v778, %v785
    %v908 = vunpack.c.l.s4 1983009808
    %v909 = vunpack.c.0.s8 %v908
    %v910 = vlaneseq
    %v911 = vshrl.u32 %v910, 7
    %v912 = vsub.s32 %v909, %v911
    %v913 = vrot.slane %v906, %v912
    %v914 = vcombine.low %v788, %v789
    %v916 = vunpack.c.l.s4 1983009808
    %v917 = vunpack.c.0.s8 %v916
    %v918 = vlaneseq
    %v919 = vshrl.u32 %v918, 7
    %v920 = vsub.s32 %v917, %v919
    %v921 = vrot.slane %v914, %v920
    %v922 = vcombine.low %v913, %v921
    %v924 = vunpack.c.l.s4 1934713408
    %v925 = vunpack.c.0.s8 %v924
    %v926 = vlaneseq
    %v927 = vshrl.u32 %v926, 7
    %v928 = vsub.s32 %v925, %v927
    %v929 = vrot.slane %v922, %v928
    %v930 = vcombine.high %v929, 0
    %v931 = vcombine.low %v844, %v851
    %v933 = vunpack.c.l.s4 1983009808
    %v934 = vunpack.c.0.s8 %v933
    %v935 = vlaneseq
    %v936 = vshrl.u32 %v935, 7
    %v937 = vsub.s32 %v934, %v936
    %v938 = vrot.slane %v931, %v937
    %v939 = vcombine.low %v854, %v855
    %v941 = vunpack.c.l.s4 1983009808
    %v942 = vunpack.c.0.s8 %v941
    %v943 = vlaneseq
    %v944 = vshrl.u32 %v943, 7
    %v945 = vsub.s32 %v942, %v944
    %v946 = vrot.slane %v939, %v945
    %v947 = vcombine.low %v938, %v946
    %v949 = vunpack.c.l.s4 1934713408
    %v950 = vunpack.c.0.s8 %v949
    %v951 = vlaneseq
    %v952 = vshrl.u32 %v951, 7
    %v953 = vsub.s32 %v950, %v952
    %v954 = vrot.slane %v947, %v953
    %v955 = vcombine.high %v954, 0
    %v958 = vpack.i.b16 %v904, %v879
    %v959 = vshrl.u32 %v879, 16
    %v960 = vshrl.u32 %v904, 16
    %v961 = vpack.i.b16 %v960, %v959
    %v964 = vpack.i.b16 %v905, %v880
    %v965 = vshrl.u32 %v880, 16
    %v966 = vshrl.u32 %v905, 16
    %v967 = vpack.i.b16 %v966, %v965
    %v970 = vpack.i.b16 %v954, %v929
    %v971 = vshrl.u32 %v929, 16
    %v972 = vshrl.u32 %v954, 16
    %v973 = vpack.i.b16 %v972, %v971
    %v976 = vpack.i.b16 %v955, %v930
    %v977 = vshrl.u32 %v930, 16
    %v978 = vshrl.u32 %v955, 16
    %v979 = vpack.i.b16 %v978, %v977
    %vm980 = vcmask 64512
    %v982 = vsel %vm980, %v398, 0
    %v985 = vsel %vm980, %v678, 0
    %987 = vmatprep.subr.bf16.mxu0 0
    %988 = vmatpush1.bf16.xpose.msra.mxu0 0
    %989 = vmatprep.subr.bf16.mxu0 0
    %990 = vmatpush1.bf16.xpose.msra.mxu0 0
    %991 = vmatprep.subr.bf16.mxu0 0
    %992 = vmatpush1.bf16.xpose.msra.mxu0 0
    %993 = vmatprep.subr.bf16.mxu0 0
    %994 = vmatpush1.bf16.xpose.msra.mxu0 0
    %995 = vmatprep.subr.bf16.mxu0 0
    %996 = vmatpush1.bf16.xpose.msra.mxu0 0
    %997 = vmatprep.subr.bf16.mxu0 0
    %998 = vmatpush1.bf16.xpose.msra.mxu0 0
    %999 = vmatprep.subr.bf16.mxu0 0
    %1000 = vmatpush1.bf16.xpose.msra.mxu0 0
    %1001 = vmatprep.subr.bf16.mxu0 0
    %1002 = vmatpush1.bf16.xpose.msra.mxu0 %v985
    %1003 = vmatprep.subr.bf16.mxu0 0
    %1004 = vmatpush2.bf16.xpose.msra.mxu0 0
    %1005 = vmatprep.subr.bf16.mxu0 0
    %1006 = vmatpush2.bf16.xpose.msra.mxu0 0
    %1007 = vmatprep.subr.bf16.mxu0 0
    %1008 = vmatpush2.bf16.xpose.msra.mxu0 0
    %1009 = vmatprep.subr.bf16.mxu0 0
    %1010 = vmatpush2.bf16.xpose.msra.mxu0 0
    %1011 = vmatprep.subr.bf16.mxu0 0
    %1012 = vmatpush2.bf16.xpose.msra.mxu0 0
    %1013 = vmatprep.subr.bf16.mxu0 0
    %1014 = vmatpush2.bf16.xpose.msra.mxu0 0
    %1015 = vmatprep.subr.bf16.mxu0 0
    %1016 = vmatpush2.bf16.xpose.msra.mxu0 0
    %1017 = vmatprep.subr.bf16.mxu0 0
    %1018 = vmatpush2.bf16.xpose.msra.mxu0 0
    %1019 = vmatprep.mubr.bf16.mxu0 0
    %1020 = vmatmul.mubr.bf16.gmra.mxu0 %v982
    %v1021 = vpop.f32.mrf.mxu0
    %v1022 = vadd.f32 0.0, %v1021
    %v1023 = vpop.f32.mrf.mxu0
    %v1024 = vpop.f32.mrf.mxu0
    %v1025 = vpop.f32.mrf.mxu0
    %1026 = vdwg.mxu0
    %v1028 = vsel %vm980, %v401, 0
    %v1031 = vsel %vm980, %v681, 0
    %1033 = vmatprep.subr.bf16.mxu0 0
    %1034 = vmatpush1.bf16.xpose.msra.mxu0 0
    %1035 = vmatprep.subr.bf16.mxu0 0
    %1036 = vmatpush1.bf16.xpose.msra.mxu0 0
    %1037 = vmatprep.subr.bf16.mxu0 0
    %1038 = vmatpush1.bf16.xpose.msra.mxu0 0
    %1039 = vmatprep.subr.bf16.mxu0 0
    %1040 = vmatpush1.bf16.xpose.msra.mxu0 0
    %1041 = vmatprep.subr.bf16.mxu0 0
    %1042 = vmatpush1.bf16.xpose.msra.mxu0 0
    %1043 = vmatprep.subr.bf16.mxu0 0
    %1044 = vmatpush1.bf16.xpose.msra.mxu0 0
    %1045 = vmatprep.subr.bf16.mxu0 0
    %1046 = vmatpush1.bf16.xpose.msra.mxu0 0
    %1047 = vmatprep.subr.bf16.mxu0 0
    %1048 = vmatpush1.bf16.xpose.msra.mxu0 %v1031
    %1049 = vmatprep.subr.bf16.mxu0 0
    %1050 = vmatpush2.bf16.xpose.msra.mxu0 0
    %1051 = vmatprep.subr.bf16.mxu0 0
    %1052 = vmatpush2.bf16.xpose.msra.mxu0 0
    %1053 = vmatprep.subr.bf16.mxu0 0
    %1054 = vmatpush2.bf16.xpose.msra.mxu0 0
    %1055 = vmatprep.subr.bf16.mxu0 0
    %1056 = vmatpush2.bf16.xpose.msra.mxu0 0
    %1057 = vmatprep.subr.bf16.mxu0 0
    %1058 = vmatpush2.bf16.xpose.msra.mxu0 0
    %1059 = vmatprep.subr.bf16.mxu0 0
    %1060 = vmatpush2.bf16.xpose.msra.mxu0 0
    %1061 = vmatprep.subr.bf16.mxu0 0
    %1062 = vmatpush2.bf16.xpose.msra.mxu0 0
    %1063 = vmatprep.subr.bf16.mxu0 0
    %1064 = vmatpush2.bf16.xpose.msra.mxu0 0
    %1065 = vmatprep.mubr.bf16.mxu0 0
    %1066 = vmatmul.mubr.bf16.gmra.mxu0 %v1028
    %v1067 = vpop.f32.mrf.mxu0
    %v1068 = vadd.f32 0.0, %v1067
    %v1069 = vpop.f32.mrf.mxu0
    %v1070 = vpop.f32.mrf.mxu0
    %v1071 = vpop.f32.mrf.mxu0
    %1072 = vdwg.mxu0
    %v1074 = vsel %vm980, %v404, 0
    %v1077 = vsel %vm980, %v684, 0
    %1079 = vmatprep.subr.bf16.mxu0 0
    %1080 = vmatpush1.bf16.xpose.msra.mxu0 0
    %1081 = vmatprep.subr.bf16.mxu0 0
    %1082 = vmatpush1.bf16.xpose.msra.mxu0 0
    %1083 = vmatprep.subr.bf16.mxu0 0
    %1084 = vmatpush1.bf16.xpose.msra.mxu0 0
    %1085 = vmatprep.subr.bf16.mxu0 0
    %1086 = vmatpush1.bf16.xpose.msra.mxu0 0
    %1087 = vmatprep.subr.bf16.mxu0 0
    %1088 = vmatpush1.bf16.xpose.msra.mxu0 0
    %1089 = vmatprep.subr.bf16.mxu0 0
    %1090 = vmatpush1.bf16.xpose.msra.mxu0 0
    %1091 = vmatprep.subr.bf16.mxu0 0
    %1092 = vmatpush1.bf16.xpose.msra.mxu0 0
    %1093 = vmatprep.subr.bf16.mxu0 0
    %1094 = vmatpush1.bf16.xpose.msra.mxu0 %v1077
    %1095 = vmatprep.subr.bf16.mxu0 0
    %1096 = vmatpush2.bf16.xpose.msra.mxu0 0
    %1097 = vmatprep.subr.bf16.mxu0 0
    %1098 = vmatpush2.bf16.xpose.msra.mxu0 0
    %1099 = vmatprep.subr.bf16.mxu0 0
    %1100 = vmatpush2.bf16.xpose.msra.mxu0 0
    %1101 = vmatprep.subr.bf16.mxu0 0
    %1102 = vmatpush2.bf16.xpose.msra.mxu0 0
    %1103 = vmatprep.subr.bf16.mxu0 0
    %1104 = vmatpush2.bf16.xpose.msra.mxu0 0
    %1105 = vmatprep.subr.bf16.mxu0 0
    %1106 = vmatpush2.bf16.xpose.msra.mxu0 0
    %1107 = vmatprep.subr.bf16.mxu0 0
    %1108 = vmatpush2.bf16.xpose.msra.mxu0 0
    %1109 = vmatprep.subr.bf16.mxu0 0
    %1110 = vmatpush2.bf16.xpose.msra.mxu0 0
    %1111 = vmatprep.mubr.bf16.mxu0 0
    %1112 = vmatmul.mubr.bf16.gmra.mxu0 %v1074
    %v1113 = vpop.f32.mrf.mxu0
    %v1114 = vadd.f32 0.0, %v1113
    %v1115 = vpop.f32.mrf.mxu0
    %v1116 = vpop.f32.mrf.mxu0
    %v1117 = vpop.f32.mrf.mxu0
    %1118 = vdwg.mxu0
    %v1120 = vsel %vm980, %v407, 0
    %v1123 = vsel %vm980, %v687, 0
    %1125 = vmatprep.subr.bf16.mxu0 0
    %1126 = vmatpush1.bf16.xpose.msra.mxu0 0
    %1127 = vmatprep.subr.bf16.mxu0 0
    %1128 = vmatpush1.bf16.xpose.msra.mxu0 0
    %1129 = vmatprep.subr.bf16.mxu0 0
    %1130 = vmatpush1.bf16.xpose.msra.mxu0 0
    %1131 = vmatprep.subr.bf16.mxu0 0
    %1132 = vmatpush1.bf16.xpose.msra.mxu0 0
    %1133 = vmatprep.subr.bf16.mxu0 0
    %1134 = vmatpush1.bf16.xpose.msra.mxu0 0
    %1135 = vmatprep.subr.bf16.mxu0 0
    %1136 = vmatpush1.bf16.xpose.msra.mxu0 0
    %1137 = vmatprep.subr.bf16.mxu0 0
    %1138 = vmatpush1.bf16.xpose.msra.mxu0 0
    %1139 = vmatprep.subr.bf16.mxu0 0
    %1140 = vmatpush1.bf16.xpose.msra.mxu0 %v1123
    %1141 = vmatprep.subr.bf16.mxu0 0
    %1142 = vmatpush2.bf16.xpose.msra.mxu0 0
    %1143 = vmatprep.subr.bf16.mxu0 0
    %1144 = vmatpush2.bf16.xpose.msra.mxu0 0
    %1145 = vmatprep.subr.bf16.mxu0 0
    %1146 = vmatpush2.bf16.xpose.msra.mxu0 0
    %1147 = vmatprep.subr.bf16.mxu0 0
    %1148 = vmatpush2.bf16.xpose.msra.mxu0 0
    %1149 = vmatprep.subr.bf16.mxu0 0
    %1150 = vmatpush2.bf16.xpose.msra.mxu0 0
    %1151 = vmatprep.subr.bf16.mxu0 0
    %1152 = vmatpush2.bf16.xpose.msra.mxu0 0
    %1153 = vmatprep.subr.bf16.mxu0 0
    %1154 = vmatpush2.bf16.xpose.msra.mxu0 0
    %1155 = vmatprep.subr.bf16.mxu0 0
    %1156 = vmatpush2.bf16.xpose.msra.mxu0 0
    %1157 = vmatprep.mubr.bf16.mxu0 0
    %1158 = vmatmul.mubr.bf16.gmra.mxu0 %v1120
    %v1159 = vpop.f32.mrf.mxu0
    %v1160 = vadd.f32 0.0, %v1159
    %v1161 = vpop.f32.mrf.mxu0
    %v1162 = vpop.f32.mrf.mxu0
    %v1163 = vpop.f32.mrf.mxu0
    %1164 = vdwg.mxu0
    %v1166 = vsel %vm980, %v410, 0
    %v1169 = vsel %vm980, %v690, 0
    %1171 = vmatprep.subr.bf16.mxu0 0
    %1172 = vmatpush1.bf16.xpose.msra.mxu0 0
    %1173 = vmatprep.subr.bf16.mxu0 0
    %1174 = vmatpush1.bf16.xpose.msra.mxu0 0
    %1175 = vmatprep.subr.bf16.mxu0 0
    %1176 = vmatpush1.bf16.xpose.msra.mxu0 0
    %1177 = vmatprep.subr.bf16.mxu0 0
    %1178 = vmatpush1.bf16.xpose.msra.mxu0 0
    %1179 = vmatprep.subr.bf16.mxu0 0
    %1180 = vmatpush1.bf16.xpose.msra.mxu0 0
    %1181 = vmatprep.subr.bf16.mxu0 0
    %1182 = vmatpush1.bf16.xpose.msra.mxu0 0
    %1183 = vmatprep.subr.bf16.mxu0 0
    %1184 = vmatpush1.bf16.xpose.msra.mxu0 0
    %1185 = vmatprep.subr.bf16.mxu0 0
    %1186 = vmatpush1.bf16.xpose.msra.mxu0 %v1169
    %1187 = vmatprep.subr.bf16.mxu0 0
    %1188 = vmatpush2.bf16.xpose.msra.mxu0 0
    %1189 = vmatprep.subr.bf16.mxu0 0
    %1190 = vmatpush2.bf16.xpose.msra.mxu0 0
    %1191 = vmatprep.subr.bf16.mxu0 0
    %1192 = vmatpush2.bf16.xpose.msra.mxu0 0
    %1193 = vmatprep.subr.bf16.mxu0 0
    %1194 = vmatpush2.bf16.xpose.msra.mxu0 0
    %1195 = vmatprep.subr.bf16.mxu0 0
    %1196 = vmatpush2.bf16.xpose.msra.mxu0 0
    %1197 = vmatprep.subr.bf16.mxu0 0
    %1198 = vmatpush2.bf16.xpose.msra.mxu0 0
    %1199 = vmatprep.subr.bf16.mxu0 0
    %1200 = vmatpush2.bf16.xpose.msra.mxu0 0
    %1201 = vmatprep.subr.bf16.mxu0 0
    %1202 = vmatpush2.bf16.xpose.msra.mxu0 0
    %1203 = vmatprep.mubr.bf16.mxu0 0
    %1204 = vmatmul.mubr.bf16.gmra.mxu0 %v1166
    %v1205 = vpop.f32.mrf.mxu0
    %v1206 = vadd.f32 0.0, %v1205
    %v1207 = vpop.f32.mrf.mxu0
    %v1208 = vpop.f32.mrf.mxu0
    %v1209 = vpop.f32.mrf.mxu0
    %1210 = vdwg.mxu0
    %v1212 = vsel %vm980, %v413, 0
    %v1215 = vsel %vm980, %v693, 0
    %1217 = vmatprep.subr.bf16.mxu0 0
    %1218 = vmatpush1.bf16.xpose.msra.mxu0 0
    %1219 = vmatprep.subr.bf16.mxu0 0
    %1220 = vmatpush1.bf16.xpose.msra.mxu0 0
    %1221 = vmatprep.subr.bf16.mxu0 0
    %1222 = vmatpush1.bf16.xpose.msra.mxu0 0
    %1223 = vmatprep.subr.bf16.mxu0 0
    %1224 = vmatpush1.bf16.xpose.msra.mxu0 0
    %1225 = vmatprep.subr.bf16.mxu0 0
    %1226 = vmatpush1.bf16.xpose.msra.mxu0 0
    %1227 = vmatprep.subr.bf16.mxu0 0
    %1228 = vmatpush1.bf16.xpose.msra.mxu0 0
    %1229 = vmatprep.subr.bf16.mxu0 0
    %1230 = vmatpush1.bf16.xpose.msra.mxu0 0
    %1231 = vmatprep.subr.bf16.mxu0 0
    %1232 = vmatpush1.bf16.xpose.msra.mxu0 %v1215
    %1233 = vmatprep.subr.bf16.mxu0 0
    %1234 = vmatpush2.bf16.xpose.msra.mxu0 0
    %1235 = vmatprep.subr.bf16.mxu0 0
    %1236 = vmatpush2.bf16.xpose.msra.mxu0 0
    %1237 = vmatprep.subr.bf16.mxu0 0
    %1238 = vmatpush2.bf16.xpose.msra.mxu0 0
    %1239 = vmatprep.subr.bf16.mxu0 0
    %1240 = vmatpush2.bf16.xpose.msra.mxu0 0
    %1241 = vmatprep.subr.bf16.mxu0 0
    %1242 = vmatpush2.bf16.xpose.msra.mxu0 0
    %1243 = vmatprep.subr.bf16.mxu0 0
    %1244 = vmatpush2.bf16.xpose.msra.mxu0 0
    %1245 = vmatprep.subr.bf16.mxu0 0
    %1246 = vmatpush2.bf16.xpose.msra.mxu0 0
    %1247 = vmatprep.subr.bf16.mxu0 0
    %1248 = vmatpush2.bf16.xpose.msra.mxu0 0
    %1249 = vmatprep.mubr.bf16.mxu0 0
    %1250 = vmatmul.mubr.bf16.gmra.mxu0 %v1212
    %v1251 = vpop.f32.mrf.mxu0
    %v1252 = vadd.f32 0.0, %v1251
    %v1253 = vpop.f32.mrf.mxu0
    %v1254 = vpop.f32.mrf.mxu0
    %v1255 = vpop.f32.mrf.mxu0
    %1256 = vdwg.mxu0
    %v1258 = vsel %vm980, %v416, 0
    %v1261 = vsel %vm980, %v696, 0
    %1263 = vmatprep.subr.bf16.mxu0 0
    %1264 = vmatpush1.bf16.xpose.msra.mxu0 0
    %1265 = vmatprep.subr.bf16.mxu0 0
    %1266 = vmatpush1.bf16.xpose.msra.mxu0 0
    %1267 = vmatprep.subr.bf16.mxu0 0
    %1268 = vmatpush1.bf16.xpose.msra.mxu0 0
    %1269 = vmatprep.subr.bf16.mxu0 0
    %1270 = vmatpush1.bf16.xpose.msra.mxu0 0
    %1271 = vmatprep.subr.bf16.mxu0 0
    %1272 = vmatpush1.bf16.xpose.msra.mxu0 0
    %1273 = vmatprep.subr.bf16.mxu0 0
    %1274 = vmatpush1.bf16.xpose.msra.mxu0 0
    %1275 = vmatprep.subr.bf16.mxu0 0
    %1276 = vmatpush1.bf16.xpose.msra.mxu0 0
    %1277 = vmatprep.subr.bf16.mxu0 0
    %1278 = vmatpush1.bf16.xpose.msra.mxu0 %v1261
    %1279 = vmatprep.subr.bf16.mxu0 0
    %1280 = vmatpush2.bf16.xpose.msra.mxu0 0
    %1281 = vmatprep.subr.bf16.mxu0 0
    %1282 = vmatpush2.bf16.xpose.msra.mxu0 0
    %1283 = vmatprep.subr.bf16.mxu0 0
    %1284 = vmatpush2.bf16.xpose.msra.mxu0 0
    %1285 = vmatprep.subr.bf16.mxu0 0
    %1286 = vmatpush2.bf16.xpose.msra.mxu0 0
    %1287 = vmatprep.subr.bf16.mxu0 0
    %1288 = vmatpush2.bf16.xpose.msra.mxu0 0
    %1289 = vmatprep.subr.bf16.mxu0 0
    %1290 = vmatpush2.bf16.xpose.msra.mxu0 0
    %1291 = vmatprep.subr.bf16.mxu0 0
    %1292 = vmatpush2.bf16.xpose.msra.mxu0 0
    %1293 = vmatprep.subr.bf16.mxu0 0
    %1294 = vmatpush2.bf16.xpose.msra.mxu0 0
    %1295 = vmatprep.mubr.bf16.mxu0 0
    %1296 = vmatmul.mubr.bf16.gmra.mxu0 %v1258
    %v1297 = vpop.f32.mrf.mxu0
    %v1298 = vadd.f32 0.0, %v1297
    %v1299 = vpop.f32.mrf.mxu0
    %v1300 = vpop.f32.mrf.mxu0
    %v1301 = vpop.f32.mrf.mxu0
    %1302 = vdwg.mxu0
    %v1304 = vsel %vm980, %v419, 0
    %v1307 = vsel %vm980, %v699, 0
    %1309 = vmatprep.subr.bf16.mxu0 0
    %1310 = vmatpush1.bf16.xpose.msra.mxu0 0
    %1311 = vmatprep.subr.bf16.mxu0 0
    %1312 = vmatpush1.bf16.xpose.msra.mxu0 0
    %1313 = vmatprep.subr.bf16.mxu0 0
    %1314 = vmatpush1.bf16.xpose.msra.mxu0 0
    %1315 = vmatprep.subr.bf16.mxu0 0
    %1316 = vmatpush1.bf16.xpose.msra.mxu0 0
    %1317 = vmatprep.subr.bf16.mxu0 0
    %1318 = vmatpush1.bf16.xpose.msra.mxu0 0
    %1319 = vmatprep.subr.bf16.mxu0 0
    %1320 = vmatpush1.bf16.xpose.msra.mxu0 0
    %1321 = vmatprep.subr.bf16.mxu0 0
    %1322 = vmatpush1.bf16.xpose.msra.mxu0 0
    %1323 = vmatprep.subr.bf16.mxu0 0
    %1324 = vmatpush1.bf16.xpose.msra.mxu0 %v1307
    %1325 = vmatprep.subr.bf16.mxu0 0
    %1326 = vmatpush2.bf16.xpose.msra.mxu0 0
    %1327 = vmatprep.subr.bf16.mxu0 0
    %1328 = vmatpush2.bf16.xpose.msra.mxu0 0
    %1329 = vmatprep.subr.bf16.mxu0 0
    %1330 = vmatpush2.bf16.xpose.msra.mxu0 0
    %1331 = vmatprep.subr.bf16.mxu0 0
    %1332 = vmatpush2.bf16.xpose.msra.mxu0 0
    %1333 = vmatprep.subr.bf16.mxu0 0
    %1334 = vmatpush2.bf16.xpose.msra.mxu0 0
    %1335 = vmatprep.subr.bf16.mxu0 0
    %1336 = vmatpush2.bf16.xpose.msra.mxu0 0
    %1337 = vmatprep.subr.bf16.mxu0 0
    %1338 = vmatpush2.bf16.xpose.msra.mxu0 0
    %1339 = vmatprep.subr.bf16.mxu0 0
    %1340 = vmatpush2.bf16.xpose.msra.mxu0 0
    %1341 = vmatprep.mubr.bf16.mxu0 0
    %1342 = vmatmul.mubr.bf16.gmra.mxu0 %v1304
    %v1343 = vpop.f32.mrf.mxu0
    %v1344 = vadd.f32 0.0, %v1343
    %v1345 = vpop.f32.mrf.mxu0
    %v1346 = vpop.f32.mrf.mxu0
    %v1347 = vpop.f32.mrf.mxu0
    %1348 = vdwg.mxu0
    %v1349 = vsel %vm980, %v1022, -inf
    %1350 = vmax.xlane.f32.xlu0 %v1349
    %v1351 = vpop.xlane.xlu0 %1350
    %v1352 = vsel %vm980, %v1068, -inf
    %1353 = vmax.xlane.f32.xlu0 %v1352
    %v1354 = vpop.xlane.xlu0 %1353
    %v1355 = vsel %vm980, %v1114, -inf
    %1356 = vmax.xlane.f32.xlu0 %v1355
    %v1357 = vpop.xlane.xlu0 %1356
    %v1358 = vsel %vm980, %v1160, -inf
    %1359 = vmax.xlane.f32.xlu0 %v1358
    %v1360 = vpop.xlane.xlu0 %1359
    %v1361 = vsel %vm980, %v1206, -inf
    %1362 = vmax.xlane.f32.xlu0 %v1361
    %v1363 = vpop.xlane.xlu0 %1362
    %v1364 = vsel %vm980, %v1252, -inf
    %1365 = vmax.xlane.f32.xlu0 %v1364
    %v1366 = vpop.xlane.xlu0 %1365
    %v1367 = vsel %vm980, %v1298, -inf
    %1368 = vmax.xlane.f32.xlu0 %v1367
    %v1369 = vpop.xlane.xlu0 %1368
    %v1370 = vsel %vm980, %v1344, -inf
    %1371 = vmax.xlane.f32.xlu0 %v1370
    %v1372 = vpop.xlane.xlu0 %1371
    %v1373 = vsub.f32 %v1022, %v1351
    %v1374 = vsub.f32 %v1068, %v1354
    %v1375 = vsub.f32 %v1114, %v1357
    %v1376 = vsub.f32 %v1160, %v1360
    %v1377 = vsub.f32 %v1206, %v1363
    %v1378 = vsub.f32 %v1252, %v1366
    %v1379 = vsub.f32 %v1298, %v1369
    %v1380 = vsub.f32 %v1344, %v1372
    %v1381 = vmul.f32 %v1373, 1.442695
    %v1382 = vpow.pop %v1381
    %v1383 = vmul.f32 %v1374, 1.442695
    %v1384 = vpow.pop %v1383
    %v1385 = vmul.f32 %v1375, 1.442695
    %v1386 = vpow.pop %v1385
    %v1387 = vmul.f32 %v1376, 1.442695
    %v1388 = vpow.pop %v1387
    %v1389 = vmul.f32 %v1377, 1.442695
    %v1390 = vpow.pop %v1389
    %v1391 = vmul.f32 %v1378, 1.442695
    %v1392 = vpow.pop %v1391
    %v1393 = vmul.f32 %v1379, 1.442695
    %v1394 = vpow.pop %v1393
    %v1395 = vmul.f32 %v1380, 1.442695
    %v1396 = vpow.pop %v1395
    %v1397 = vsel %vm980, %v1382, 0.0
    %1398 = vadd.xlane.f32.xlu0 %v1397
    %v1399 = vpop.xlane.xlu0 %1398
    %v1400 = vsel %vm980, %v1384, 0.0
    %1401 = vadd.xlane.f32.xlu0 %v1400
    %v1402 = vpop.xlane.xlu0 %1401
    %v1403 = vsel %vm980, %v1386, 0.0
    %1404 = vadd.xlane.f32.xlu0 %v1403
    %v1405 = vpop.xlane.xlu0 %1404
    %v1406 = vsel %vm980, %v1388, 0.0
    %1407 = vadd.xlane.f32.xlu0 %v1406
    %v1408 = vpop.xlane.xlu0 %1407
    %v1409 = vsel %vm980, %v1390, 0.0
    %1410 = vadd.xlane.f32.xlu0 %v1409
    %v1411 = vpop.xlane.xlu0 %1410
    %v1412 = vsel %vm980, %v1392, 0.0
    %1413 = vadd.xlane.f32.xlu0 %v1412
    %v1414 = vpop.xlane.xlu0 %1413
    %v1415 = vsel %vm980, %v1394, 0.0
    %1416 = vadd.xlane.f32.xlu0 %v1415
    %v1417 = vpop.xlane.xlu0 %1416
    %v1418 = vsel %vm980, %v1396, 0.0
    %1419 = vadd.xlane.f32.xlu0 %v1418
    %v1420 = vpop.xlane.xlu0 %1419
    %v1421 = vrcp.pop %v1399
    %v1422 = vrcp.pop %v1402
    %v1423 = vrcp.pop %v1405
    %v1424 = vrcp.pop %v1408
    %v1425 = vrcp.pop %v1411
    %v1426 = vrcp.pop %v1414
    %v1427 = vrcp.pop %v1417
    %v1428 = vrcp.pop %v1420
    %v1429 = vmul.f32 %v1382, %v1421
    %v1430 = vmul.f32 %v1384, %v1422
    %v1431 = vmul.f32 %v1386, %v1423
    %v1432 = vmul.f32 %v1388, %v1424
    %v1433 = vmul.f32 %v1390, %v1425
    %v1434 = vmul.f32 %v1392, %v1426
    %v1435 = vmul.f32 %v1394, %v1427
    %v1436 = vmul.f32 %v1396, %v1428
    %v1437 = vpack.c.bf16 %v1429, %v1429
    %v1438 = vpack.c.bf16 %v1430, %v1430
    %v1439 = vpack.c.bf16 %v1431, %v1431
    %v1440 = vpack.c.bf16 %v1432, %v1432
    %v1441 = vpack.c.bf16 %v1433, %v1433
    %v1442 = vpack.c.bf16 %v1434, %v1434
    %v1443 = vpack.c.bf16 %v1435, %v1435
    %v1444 = vpack.c.bf16 %v1436, %v1436
    %v1446 = vsel %vm980, %v1437, 0
    %vm1448 = vcmask 1043456
    %v1450 = vsel %vm1448, %v958, 0
    %1452 = vmatprep.subr.bf16.mxu0 0
    %1453 = vmatpush1.bf16.msra.mxu0 0
    %1454 = vmatprep.subr.bf16.mxu0 0
    %1455 = vmatpush1.bf16.msra.mxu0 0
    %1456 = vmatprep.subr.bf16.mxu0 0
    %1457 = vmatpush1.bf16.msra.mxu0 0
    %1458 = vmatprep.subr.bf16.mxu0 0
    %1459 = vmatpush1.bf16.msra.mxu0 0
    %1460 = vmatprep.subr.bf16.mxu0 0
    %1461 = vmatpush1.bf16.msra.mxu0 0
    %1462 = vmatprep.subr.bf16.mxu0 0
    %1463 = vmatpush1.bf16.msra.mxu0 0
    %1464 = vmatprep.subr.bf16.mxu0 0
    %1465 = vmatpush1.bf16.msra.mxu0 0
    %1466 = vmatprep.subr.bf16.mxu0 0
    %1467 = vmatpush1.bf16.msra.mxu0 %v1450
    %1468 = vmatprep.subr.bf16.mxu0 0
    %1469 = vmatpush2.bf16.msra.mxu0 0
    %1470 = vmatprep.subr.bf16.mxu0 0
    %1471 = vmatpush2.bf16.msra.mxu0 0
    %1472 = vmatprep.subr.bf16.mxu0 0
    %1473 = vmatpush2.bf16.msra.mxu0 0
    %1474 = vmatprep.subr.bf16.mxu0 0
    %1475 = vmatpush2.bf16.msra.mxu0 0
    %1476 = vmatprep.subr.bf16.mxu0 0
    %1477 = vmatpush2.bf16.msra.mxu0 0
    %1478 = vmatprep.subr.bf16.mxu0 0
    %1479 = vmatpush2.bf16.msra.mxu0 0
    %1480 = vmatprep.subr.bf16.mxu0 0
    %1481 = vmatpush2.bf16.msra.mxu0 0
    %1482 = vmatprep.subr.bf16.mxu0 0
    %1483 = vmatpush2.bf16.msra.mxu0 0
    %1484 = vmatprep.mubr.bf16.mxu0 0
    %1485 = vmatmul.mubr.bf16.gmra.mxu0 %v1446
    %v1486 = vpop.f32.mrf.mxu0
    %v1487 = vadd.f32 0.0, %v1486
    %v1488 = vpop.f32.mrf.mxu0
    %v1489 = vpop.f32.mrf.mxu0
    %v1490 = vpop.f32.mrf.mxu0
    %1491 = vdwg.mxu0
    %v1493 = vsel %vm980, %v1438, 0
    %v1496 = vsel %vm1448, %v961, 0
    %1498 = vmatprep.subr.bf16.mxu0 0
    %1499 = vmatpush1.bf16.msra.mxu0 0
    %1500 = vmatprep.subr.bf16.mxu0 0
    %1501 = vmatpush1.bf16.msra.mxu0 0
    %1502 = vmatprep.subr.bf16.mxu0 0
    %1503 = vmatpush1.bf16.msra.mxu0 0
    %1504 = vmatprep.subr.bf16.mxu0 0
    %1505 = vmatpush1.bf16.msra.mxu0 0
    %1506 = vmatprep.subr.bf16.mxu0 0
    %1507 = vmatpush1.bf16.msra.mxu0 0
    %1508 = vmatprep.subr.bf16.mxu0 0
    %1509 = vmatpush1.bf16.msra.mxu0 0
    %1510 = vmatprep.subr.bf16.mxu0 0
    %1511 = vmatpush1.bf16.msra.mxu0 0
    %1512 = vmatprep.subr.bf16.mxu0 0
    %1513 = vmatpush1.bf16.msra.mxu0 %v1496
    %1514 = vmatprep.subr.bf16.mxu0 0
    %1515 = vmatpush2.bf16.msra.mxu0 0
    %1516 = vmatprep.subr.bf16.mxu0 0
    %1517 = vmatpush2.bf16.msra.mxu0 0
    %1518 = vmatprep.subr.bf16.mxu0 0
    %1519 = vmatpush2.bf16.msra.mxu0 0
    %1520 = vmatprep.subr.bf16.mxu0 0
    %1521 = vmatpush2.bf16.msra.mxu0 0
    %1522 = vmatprep.subr.bf16.mxu0 0
    %1523 = vmatpush2.bf16.msra.mxu0 0
    %1524 = vmatprep.subr.bf16.mxu0 0
    %1525 = vmatpush2.bf16.msra.mxu0 0
    %1526 = vmatprep.subr.bf16.mxu0 0
    %1527 = vmatpush2.bf16.msra.mxu0 0
    %1528 = vmatprep.subr.bf16.mxu0 0
    %1529 = vmatpush2.bf16.msra.mxu0 0
    %1530 = vmatprep.mubr.bf16.mxu0 0
    %1531 = vmatmul.mubr.bf16.gmra.mxu0 %v1493
    %v1532 = vpop.f32.mrf.mxu0
    %v1533 = vadd.f32 0.0, %v1532
    %v1534 = vpop.f32.mrf.mxu0
    %v1535 = vpop.f32.mrf.mxu0
    %v1536 = vpop.f32.mrf.mxu0
    %1537 = vdwg.mxu0
    %v1539 = vsel %vm980, %v1439, 0
    %v1542 = vsel %vm1448, %v964, 0
    %1544 = vmatprep.subr.bf16.mxu0 0
    %1545 = vmatpush1.bf16.msra.mxu0 0
    %1546 = vmatprep.subr.bf16.mxu0 0
    %1547 = vmatpush1.bf16.msra.mxu0 0
    %1548 = vmatprep.subr.bf16.mxu0 0
    %1549 = vmatpush1.bf16.msra.mxu0 0
    %1550 = vmatprep.subr.bf16.mxu0 0
    %1551 = vmatpush1.bf16.msra.mxu0 0
    %1552 = vmatprep.subr.bf16.mxu0 0
    %1553 = vmatpush1.bf16.msra.mxu0 0
    %1554 = vmatprep.subr.bf16.mxu0 0
    %1555 = vmatpush1.bf16.msra.mxu0 0
    %1556 = vmatprep.subr.bf16.mxu0 0
    %1557 = vmatpush1.bf16.msra.mxu0 0
    %1558 = vmatprep.subr.bf16.mxu0 0
    %1559 = vmatpush1.bf16.msra.mxu0 %v1542
    %1560 = vmatprep.subr.bf16.mxu0 0
    %1561 = vmatpush2.bf16.msra.mxu0 0
    %1562 = vmatprep.subr.bf16.mxu0 0
    %1563 = vmatpush2.bf16.msra.mxu0 0
    %1564 = vmatprep.subr.bf16.mxu0 0
    %1565 = vmatpush2.bf16.msra.mxu0 0
    %1566 = vmatprep.subr.bf16.mxu0 0
    %1567 = vmatpush2.bf16.msra.mxu0 0
    %1568 = vmatprep.subr.bf16.mxu0 0
    %1569 = vmatpush2.bf16.msra.mxu0 0
    %1570 = vmatprep.subr.bf16.mxu0 0
    %1571 = vmatpush2.bf16.msra.mxu0 0
    %1572 = vmatprep.subr.bf16.mxu0 0
    %1573 = vmatpush2.bf16.msra.mxu0 0
    %1574 = vmatprep.subr.bf16.mxu0 0
    %1575 = vmatpush2.bf16.msra.mxu0 0
    %1576 = vmatprep.mubr.bf16.mxu0 0
    %1577 = vmatmul.mubr.bf16.gmra.mxu0 %v1539
    %v1578 = vpop.f32.mrf.mxu0
    %v1579 = vadd.f32 0.0, %v1578
    %v1580 = vpop.f32.mrf.mxu0
    %v1581 = vpop.f32.mrf.mxu0
    %v1582 = vpop.f32.mrf.mxu0
    %1583 = vdwg.mxu0
    %v1585 = vsel %vm980, %v1440, 0
    %v1588 = vsel %vm1448, %v967, 0
    %1590 = vmatprep.subr.bf16.mxu0 0
    %1591 = vmatpush1.bf16.msra.mxu0 0
    %1592 = vmatprep.subr.bf16.mxu0 0
    %1593 = vmatpush1.bf16.msra.mxu0 0
    %1594 = vmatprep.subr.bf16.mxu0 0
    %1595 = vmatpush1.bf16.msra.mxu0 0
    %1596 = vmatprep.subr.bf16.mxu0 0
    %1597 = vmatpush1.bf16.msra.mxu0 0
    %1598 = vmatprep.subr.bf16.mxu0 0
    %1599 = vmatpush1.bf16.msra.mxu0 0
    %1600 = vmatprep.subr.bf16.mxu0 0
    %1601 = vmatpush1.bf16.msra.mxu0 0
    %1602 = vmatprep.subr.bf16.mxu0 0
    %1603 = vmatpush1.bf16.msra.mxu0 0
    %1604 = vmatprep.subr.bf16.mxu0 0
    %1605 = vmatpush1.bf16.msra.mxu0 %v1588
    %1606 = vmatprep.subr.bf16.mxu0 0
    %1607 = vmatpush2.bf16.msra.mxu0 0
    %1608 = vmatprep.subr.bf16.mxu0 0
    %1609 = vmatpush2.bf16.msra.mxu0 0
    %1610 = vmatprep.subr.bf16.mxu0 0
    %1611 = vmatpush2.bf16.msra.mxu0 0
    %1612 = vmatprep.subr.bf16.mxu0 0
    %1613 = vmatpush2.bf16.msra.mxu0 0
    %1614 = vmatprep.subr.bf16.mxu0 0
    %1615 = vmatpush2.bf16.msra.mxu0 0
    %1616 = vmatprep.subr.bf16.mxu0 0
    %1617 = vmatpush2.bf16.msra.mxu0 0
    %1618 = vmatprep.subr.bf16.mxu0 0
    %1619 = vmatpush2.bf16.msra.mxu0 0
    %1620 = vmatprep.subr.bf16.mxu0 0
    %1621 = vmatpush2.bf16.msra.mxu0 0
    %1622 = vmatprep.mubr.bf16.mxu0 0
    %1623 = vmatmul.mubr.bf16.gmra.mxu0 %v1585
    %v1624 = vpop.f32.mrf.mxu0
    %v1625 = vadd.f32 0.0, %v1624
    %v1626 = vpop.f32.mrf.mxu0
    %v1627 = vpop.f32.mrf.mxu0
    %v1628 = vpop.f32.mrf.mxu0
    %1629 = vdwg.mxu0
    %v1631 = vsel %vm980, %v1441, 0
    %v1634 = vsel %vm1448, %v970, 0
    %1636 = vmatprep.subr.bf16.mxu0 0
    %1637 = vmatpush1.bf16.msra.mxu0 0
    %1638 = vmatprep.subr.bf16.mxu0 0
    %1639 = vmatpush1.bf16.msra.mxu0 0
    %1640 = vmatprep.subr.bf16.mxu0 0
    %1641 = vmatpush1.bf16.msra.mxu0 0
    %1642 = vmatprep.subr.bf16.mxu0 0
    %1643 = vmatpush1.bf16.msra.mxu0 0
    %1644 = vmatprep.subr.bf16.mxu0 0
    %1645 = vmatpush1.bf16.msra.mxu0 0
    %1646 = vmatprep.subr.bf16.mxu0 0
    %1647 = vmatpush1.bf16.msra.mxu0 0
    %1648 = vmatprep.subr.bf16.mxu0 0
    %1649 = vmatpush1.bf16.msra.mxu0 0
    %1650 = vmatprep.subr.bf16.mxu0 0
    %1651 = vmatpush1.bf16.msra.mxu0 %v1634
    %1652 = vmatprep.subr.bf16.mxu0 0
    %1653 = vmatpush2.bf16.msra.mxu0 0
    %1654 = vmatprep.subr.bf16.mxu0 0
    %1655 = vmatpush2.bf16.msra.mxu0 0
    %1656 = vmatprep.subr.bf16.mxu0 0
    %1657 = vmatpush2.bf16.msra.mxu0 0
    %1658 = vmatprep.subr.bf16.mxu0 0
    %1659 = vmatpush2.bf16.msra.mxu0 0
    %1660 = vmatprep.subr.bf16.mxu0 0
    %1661 = vmatpush2.bf16.msra.mxu0 0
    %1662 = vmatprep.subr.bf16.mxu0 0
    %1663 = vmatpush2.bf16.msra.mxu0 0
    %1664 = vmatprep.subr.bf16.mxu0 0
    %1665 = vmatpush2.bf16.msra.mxu0 0
    %1666 = vmatprep.subr.bf16.mxu0 0
    %1667 = vmatpush2.bf16.msra.mxu0 0
    %1668 = vmatprep.mubr.bf16.mxu0 0
    %1669 = vmatmul.mubr.bf16.gmra.mxu0 %v1631
    %v1670 = vpop.f32.mrf.mxu0
    %v1671 = vadd.f32 0.0, %v1670
    %v1672 = vpop.f32.mrf.mxu0
    %v1673 = vpop.f32.mrf.mxu0
    %v1674 = vpop.f32.mrf.mxu0
    %1675 = vdwg.mxu0
    %v1677 = vsel %vm980, %v1442, 0
    %v1680 = vsel %vm1448, %v973, 0
    %1682 = vmatprep.subr.bf16.mxu0 0
    %1683 = vmatpush1.bf16.msra.mxu0 0
    %1684 = vmatprep.subr.bf16.mxu0 0
    %1685 = vmatpush1.bf16.msra.mxu0 0
    %1686 = vmatprep.subr.bf16.mxu0 0
    %1687 = vmatpush1.bf16.msra.mxu0 0
    %1688 = vmatprep.subr.bf16.mxu0 0
    %1689 = vmatpush1.bf16.msra.mxu0 0
    %1690 = vmatprep.subr.bf16.mxu0 0
    %1691 = vmatpush1.bf16.msra.mxu0 0
    %1692 = vmatprep.subr.bf16.mxu0 0
    %1693 = vmatpush1.bf16.msra.mxu0 0
    %1694 = vmatprep.subr.bf16.mxu0 0
    %1695 = vmatpush1.bf16.msra.mxu0 0
    %1696 = vmatprep.subr.bf16.mxu0 0
    %1697 = vmatpush1.bf16.msra.mxu0 %v1680
    %1698 = vmatprep.subr.bf16.mxu0 0
    %1699 = vmatpush2.bf16.msra.mxu0 0
    %1700 = vmatprep.subr.bf16.mxu0 0
    %1701 = vmatpush2.bf16.msra.mxu0 0
    %1702 = vmatprep.subr.bf16.mxu0 0
    %1703 = vmatpush2.bf16.msra.mxu0 0
    %1704 = vmatprep.subr.bf16.mxu0 0
    %1705 = vmatpush2.bf16.msra.mxu0 0
    %1706 = vmatprep.subr.bf16.mxu0 0
    %1707 = vmatpush2.bf16.msra.mxu0 0
    %1708 = vmatprep.subr.bf16.mxu0 0
    %1709 = vmatpush2.bf16.msra.mxu0 0
    %1710 = vmatprep.subr.bf16.mxu0 0
    %1711 = vmatpush2.bf16.msra.mxu0 0
    %1712 = vmatprep.subr.bf16.mxu0 0
    %1713 = vmatpush2.bf16.msra.mxu0 0
    %1714 = vmatprep.mubr.bf16.mxu0 0
    %1715 = vmatmul.mubr.bf16.gmra.mxu0 %v1677
    %v1716 = vpop.f32.mrf.mxu0
    %v1717 = vadd.f32 0.0, %v1716
    %v1718 = vpop.f32.mrf.mxu0
    %v1719 = vpop.f32.mrf.mxu0
    %v1720 = vpop.f32.mrf.mxu0
    %1721 = vdwg.mxu0
    %v1723 = vsel %vm980, %v1443, 0
    %v1726 = vsel %vm1448, %v976, 0
    %1728 = vmatprep.subr.bf16.mxu0 0
    %1729 = vmatpush1.bf16.msra.mxu0 0
    %1730 = vmatprep.subr.bf16.mxu0 0
    %1731 = vmatpush1.bf16.msra.mxu0 0
    %1732 = vmatprep.subr.bf16.mxu0 0
    %1733 = vmatpush1.bf16.msra.mxu0 0
    %1734 = vmatprep.subr.bf16.mxu0 0
    %1735 = vmatpush1.bf16.msra.mxu0 0
    %1736 = vmatprep.subr.bf16.mxu0 0
    %1737 = vmatpush1.bf16.msra.mxu0 0
    %1738 = vmatprep.subr.bf16.mxu0 0
    %1739 = vmatpush1.bf16.msra.mxu0 0
    %1740 = vmatprep.subr.bf16.mxu0 0
    %1741 = vmatpush1.bf16.msra.mxu0 0
    %1742 = vmatprep.subr.bf16.mxu0 0
    %1743 = vmatpush1.bf16.msra.mxu0 %v1726
    %1744 = vmatprep.subr.bf16.mxu0 0
    %1745 = vmatpush2.bf16.msra.mxu0 0
    %1746 = vmatprep.subr.bf16.mxu0 0
    %1747 = vmatpush2.bf16.msra.mxu0 0
    %1748 = vmatprep.subr.bf16.mxu0 0
    %1749 = vmatpush2.bf16.msra.mxu0 0
    %1750 = vmatprep.subr.bf16.mxu0 0
    %1751 = vmatpush2.bf16.msra.mxu0 0
    %1752 = vmatprep.subr.bf16.mxu0 0
    %1753 = vmatpush2.bf16.msra.mxu0 0
    %1754 = vmatprep.subr.bf16.mxu0 0
    %1755 = vmatpush2.bf16.msra.mxu0 0
    %1756 = vmatprep.subr.bf16.mxu0 0
    %1757 = vmatpush2.bf16.msra.mxu0 0
    %1758 = vmatprep.subr.bf16.mxu0 0
    %1759 = vmatpush2.bf16.msra.mxu0 0
    %1760 = vmatprep.mubr.bf16.mxu0 0
    %1761 = vmatmul.mubr.bf16.gmra.mxu0 %v1723
    %v1762 = vpop.f32.mrf.mxu0
    %v1763 = vadd.f32 0.0, %v1762
    %v1764 = vpop.f32.mrf.mxu0
    %v1765 = vpop.f32.mrf.mxu0
    %v1766 = vpop.f32.mrf.mxu0
    %1767 = vdwg.mxu0
    %v1769 = vsel %vm980, %v1444, 0
    %v1772 = vsel %vm1448, %v979, 0
    %1774 = vmatprep.subr.bf16.mxu0 0
    %1775 = vmatpush1.bf16.msra.mxu0 0
    %1776 = vmatprep.subr.bf16.mxu0 0
    %1777 = vmatpush1.bf16.msra.mxu0 0
    %1778 = vmatprep.subr.bf16.mxu0 0
    %1779 = vmatpush1.bf16.msra.mxu0 0
    %1780 = vmatprep.subr.bf16.mxu0 0
    %1781 = vmatpush1.bf16.msra.mxu0 0
    %1782 = vmatprep.subr.bf16.mxu0 0
    %1783 = vmatpush1.bf16.msra.mxu0 0
    %1784 = vmatprep.subr.bf16.mxu0 0
    %1785 = vmatpush1.bf16.msra.mxu0 0
    %1786 = vmatprep.subr.bf16.mxu0 0
    %1787 = vmatpush1.bf16.msra.mxu0 0
    %1788 = vmatprep.subr.bf16.mxu0 0
    %1789 = vmatpush1.bf16.msra.mxu0 %v1772
    %1790 = vmatprep.subr.bf16.mxu0 0
    %1791 = vmatpush2.bf16.msra.mxu0 0
    %1792 = vmatprep.subr.bf16.mxu0 0
    %1793 = vmatpush2.bf16.msra.mxu0 0
    %1794 = vmatprep.subr.bf16.mxu0 0
    %1795 = vmatpush2.bf16.msra.mxu0 0
    %1796 = vmatprep.subr.bf16.mxu0 0
    %1797 = vmatpush2.bf16.msra.mxu0 0
    %1798 = vmatprep.subr.bf16.mxu0 0
    %1799 = vmatpush2.bf16.msra.mxu0 0
    %1800 = vmatprep.subr.bf16.mxu0 0
    %1801 = vmatpush2.bf16.msra.mxu0 0
    %1802 = vmatprep.subr.bf16.mxu0 0
    %1803 = vmatpush2.bf16.msra.mxu0 0
    %1804 = vmatprep.subr.bf16.mxu0 0
    %1805 = vmatpush2.bf16.msra.mxu0 0
    %1806 = vmatprep.mubr.bf16.mxu0 0
    %1807 = vmatmul.mubr.bf16.gmra.mxu0 %v1769
    %v1808 = vpop.f32.mrf.mxu0
    %v1809 = vadd.f32 0.0, %v1808
    %v1810 = vpop.f32.mrf.mxu0
    %v1811 = vpop.f32.mrf.mxu0
    %v1812 = vpop.f32.mrf.mxu0
    %1813 = vdwg.mxu0
    %v1814 = vpack.c.bf16 %v1487, %v1487
    %v1816 = vunpack.c.l.s4 1983009808
    %v1817 = vunpack.c.0.s8 %v1816
    %v1818 = vlaneseq
    %v1819 = vshrl.u32 %v1818, 7
    %v1820 = vsub.s32 %v1817, %v1819
    %v1821 = vrot.slane %v1814, %v1820
    %v1822 = vpack.c.bf16 %v1579, %v1579
    %v1824 = vunpack.c.l.s4 1983009808
    %v1825 = vunpack.c.0.s8 %v1824
    %v1826 = vlaneseq
    %v1827 = vshrl.u32 %v1826, 7
    %v1828 = vsub.s32 %v1825, %v1827
    %v1829 = vrot.slane %v1822, %v1828
    %v1830 = vcombine.low %v1821, %v1829
    %v1831 = vcombine.high %v1821, %v1829
    %v1833 = vunpack.c.l.s4 1934713408
    %v1834 = vunpack.c.0.s8 %v1833
    %v1835 = vlaneseq
    %v1836 = vshrl.u32 %v1835, 7
    %v1837 = vsub.s32 %v1834, %v1836
    %v1838 = vrot.slane %v1830, %v1837
    %v1840 = vunpack.c.l.s4 1934713408
    %v1841 = vunpack.c.0.s8 %v1840
    %v1842 = vlaneseq
    %v1843 = vshrl.u32 %v1842, 7
    %v1844 = vsub.s32 %v1841, %v1843
    %v1845 = vrot.slane %v1831, %v1844
    %v1846 = vcombine.high %v1838, 0
    %v1847 = vcombine.high %v1845, 0
    %v1848 = vpack.c.bf16 %v1533, %v1533
    %v1850 = vunpack.c.l.s4 1983009808
    %v1851 = vunpack.c.0.s8 %v1850
    %v1852 = vlaneseq
    %v1853 = vshrl.u32 %v1852, 7
    %v1854 = vsub.s32 %v1851, %v1853
    %v1855 = vrot.slane %v1848, %v1854
    %v1856 = vpack.c.bf16 %v1625, %v1625
    %v1858 = vunpack.c.l.s4 1983009808
    %v1859 = vunpack.c.0.s8 %v1858
    %v1860 = vlaneseq
    %v1861 = vshrl.u32 %v1860, 7
    %v1862 = vsub.s32 %v1859, %v1861
    %v1863 = vrot.slane %v1856, %v1862
    %v1864 = vcombine.low %v1855, %v1863
    %v1865 = vcombine.high %v1855, %v1863
    %v1867 = vunpack.c.l.s4 1934713408
    %v1868 = vunpack.c.0.s8 %v1867
    %v1869 = vlaneseq
    %v1870 = vshrl.u32 %v1869, 7
    %v1871 = vsub.s32 %v1868, %v1870
    %v1872 = vrot.slane %v1864, %v1871
    %v1874 = vunpack.c.l.s4 1934713408
    %v1875 = vunpack.c.0.s8 %v1874
    %v1876 = vlaneseq
    %v1877 = vshrl.u32 %v1876, 7
    %v1878 = vsub.s32 %v1875, %v1877
    %v1879 = vrot.slane %v1865, %v1878
    %v1880 = vcombine.high %v1872, 0
    %v1881 = vcombine.high %v1879, 0
    %v1882 = vpack.c.bf16 %v1671, %v1671
    %v1884 = vunpack.c.l.s4 1983009808
    %v1885 = vunpack.c.0.s8 %v1884
    %v1886 = vlaneseq
    %v1887 = vshrl.u32 %v1886, 7
    %v1888 = vsub.s32 %v1885, %v1887
    %v1889 = vrot.slane %v1882, %v1888
    %v1890 = vpack.c.bf16 %v1763, %v1763
    %v1892 = vunpack.c.l.s4 1983009808
    %v1893 = vunpack.c.0.s8 %v1892
    %v1894 = vlaneseq
    %v1895 = vshrl.u32 %v1894, 7
    %v1896 = vsub.s32 %v1893, %v1895
    %v1897 = vrot.slane %v1890, %v1896
    %v1898 = vcombine.low %v1889, %v1897
    %v1899 = vcombine.high %v1889, %v1897
    %v1901 = vunpack.c.l.s4 1934713408
    %v1902 = vunpack.c.0.s8 %v1901
    %v1903 = vlaneseq
    %v1904 = vshrl.u32 %v1903, 7
    %v1905 = vsub.s32 %v1902, %v1904
    %v1906 = vrot.slane %v1898, %v1905
    %v1908 = vunpack.c.l.s4 1934713408
    %v1909 = vunpack.c.0.s8 %v1908
    %v1910 = vlaneseq
    %v1911 = vshrl.u32 %v1910, 7
    %v1912 = vsub.s32 %v1909, %v1911
    %v1913 = vrot.slane %v1899, %v1912
    %v1914 = vcombine.high %v1906, 0
    %v1915 = vcombine.high %v1913, 0
    %v1916 = vpack.c.bf16 %v1717, %v1717
    %v1918 = vunpack.c.l.s4 1983009808
    %v1919 = vunpack.c.0.s8 %v1918
    %v1920 = vlaneseq
    %v1921 = vshrl.u32 %v1920, 7
    %v1922 = vsub.s32 %v1919, %v1921
    %v1923 = vrot.slane %v1916, %v1922
    %v1924 = vpack.c.bf16 %v1809, %v1809
    %v1926 = vunpack.c.l.s4 1983009808
    %v1927 = vunpack.c.0.s8 %v1926
    %v1928 = vlaneseq
    %v1929 = vshrl.u32 %v1928, 7
    %v1930 = vsub.s32 %v1927, %v1929
    %v1931 = vrot.slane %v1924, %v1930
    %v1932 = vcombine.low %v1923, %v1931
    %v1933 = vcombine.high %v1923, %v1931
    %v1935 = vunpack.c.l.s4 1934713408
    %v1936 = vunpack.c.0.s8 %v1935
    %v1937 = vlaneseq
    %v1938 = vshrl.u32 %v1937, 7
    %v1939 = vsub.s32 %v1936, %v1938
    %v1940 = vrot.slane %v1932, %v1939
    %v1942 = vunpack.c.l.s4 1934713408
    %v1943 = vunpack.c.0.s8 %v1942
    %v1944 = vlaneseq
    %v1945 = vshrl.u32 %v1944, 7
    %v1946 = vsub.s32 %v1943, %v1945
    %v1947 = vrot.slane %v1933, %v1946
    %v1948 = vcombine.high %v1940, 0
    %v1949 = vcombine.high %v1947, 0
    %v1952 = vpack.i.b16 %v1872, %v1838
    %v1954 = vshrl.u32 %v1838, 16
    %v1955 = vshrl.u32 %v1872, 16
    %v1956 = vpack.i.b16 %v1955, %v1954
    %v1960 = vpack.i.b16 %v1880, %v1846
    %v1962 = vshrl.u32 %v1846, 16
    %v1963 = vshrl.u32 %v1880, 16
    %v1964 = vpack.i.b16 %v1963, %v1962
    %v1968 = vpack.i.b16 %v1879, %v1845
    %v1970 = vshrl.u32 %v1845, 16
    %v1971 = vshrl.u32 %v1879, 16
    %v1972 = vpack.i.b16 %v1971, %v1970
    %v1976 = vpack.i.b16 %v1881, %v1847
    %v1978 = vshrl.u32 %v1847, 16
    %v1979 = vshrl.u32 %v1881, 16
    %v1980 = vpack.i.b16 %v1979, %v1978
    %v1984 = vpack.i.b16 %v1940, %v1906
    %v1986 = vshrl.u32 %v1906, 16
    %v1987 = vshrl.u32 %v1940, 16
    %v1988 = vpack.i.b16 %v1987, %v1986
    %v1992 = vpack.i.b16 %v1948, %v1914
    %v1994 = vshrl.u32 %v1914, 16
    %v1995 = vshrl.u32 %v1948, 16
    %v1996 = vpack.i.b16 %v1995, %v1994
    %v2000 = vpack.i.b16 %v1947, %v1913
    %v2002 = vshrl.u32 %v1913, 16
    %v2003 = vshrl.u32 %v1947, 16
    %v2004 = vpack.i.b16 %v2003, %v2002
    %v2008 = vpack.i.b16 %v1949, %v1915
    %v2010 = vshrl.u32 %v1915, 16
    %v2011 = vshrl.u32 %v1949, 16
    %v2012 = vpack.i.b16 %v2011, %v2010
    %v2014 = vcombine.low %v1952, %v1968
    %v2016 = vunpack.c.l.s4 1983009808
    %v2017 = vunpack.c.0.s8 %v2016
    %v2018 = vlaneseq
    %v2019 = vshrl.u32 %v2018, 7
    %v2020 = vsub.s32 %v2017, %v2019
    %v2021 = vrot.slane %v2014, %v2020
    %v2022 = vcombine.low %v1960, %v1976
    %v2024 = vunpack.c.l.s4 1983009808
    %v2025 = vunpack.c.0.s8 %v2024
    %v2026 = vlaneseq
    %v2027 = vshrl.u32 %v2026, 7
    %v2028 = vsub.s32 %v2025, %v2027
    %v2029 = vrot.slane %v2022, %v2028
    %v2030 = vcombine.low %v1984, %v2000
    %v2032 = vunpack.c.l.s4 1983009808
    %v2033 = vunpack.c.0.s8 %v2032
    %v2034 = vlaneseq
    %v2035 = vshrl.u32 %v2034, 7
    %v2036 = vsub.s32 %v2033, %v2035
    %v2037 = vrot.slane %v2030, %v2036
    %v2038 = vcombine.low %v1992, %v2008
    %v2040 = vunpack.c.l.s4 1983009808
    %v2041 = vunpack.c.0.s8 %v2040
    %v2042 = vlaneseq
    %v2043 = vshrl.u32 %v2042, 7
    %v2044 = vsub.s32 %v2041, %v2043
    %v2045 = vrot.slane %v2038, %v2044
    %v2046 = vcombine.low %v2021, %v2029
    %v2048 = vunpack.c.l.s4 1934713408
    %v2049 = vunpack.c.0.s8 %v2048
    %v2050 = vlaneseq
    %v2051 = vshrl.u32 %v2050, 7
    %v2052 = vsub.s32 %v2049, %v2051
    %v2053 = vrot.slane %v2046, %v2052
    %v2054 = vcombine.low %v2037, %v2045
    %v2056 = vunpack.c.l.s4 1934713408
    %v2057 = vunpack.c.0.s8 %v2056
    %v2058 = vlaneseq
    %v2059 = vshrl.u32 %v2058, 7
    %v2060 = vsub.s32 %v2057, %v2059
    %v2061 = vrot.slane %v2054, %v2060
    %v2062 = vcombine.low %v2053, %v2061
    %v2063 = vcombine.high %v2053, %v2061
    %v2064 = vcombine.low %v1956, %v1972
    %v2066 = vunpack.c.l.s4 1983009808
    %v2067 = vunpack.c.0.s8 %v2066
    %v2068 = vlaneseq
    %v2069 = vshrl.u32 %v2068, 7
    %v2070 = vsub.s32 %v2067, %v2069
    %v2071 = vrot.slane %v2064, %v2070
    %v2072 = vcombine.low %v1964, %v1980
    %v2074 = vunpack.c.l.s4 1983009808
    %v2075 = vunpack.c.0.s8 %v2074
    %v2076 = vlaneseq
    %v2077 = vshrl.u32 %v2076, 7
    %v2078 = vsub.s32 %v2075, %v2077
    %v2079 = vrot.slane %v2072, %v2078
    %v2080 = vcombine.low %v1988, %v2004
    %v2082 = vunpack.c.l.s4 1983009808
    %v2083 = vunpack.c.0.s8 %v2082
    %v2084 = vlaneseq
    %v2085 = vshrl.u32 %v2084, 7
    %v2086 = vsub.s32 %v2083, %v2085
    %v2087 = vrot.slane %v2080, %v2086
    %v2088 = vcombine.low %v1996, %v2012
    %v2090 = vunpack.c.l.s4 1983009808
    %v2091 = vunpack.c.0.s8 %v2090
    %v2092 = vlaneseq
    %v2093 = vshrl.u32 %v2092, 7
    %v2094 = vsub.s32 %v2091, %v2093
    %v2095 = vrot.slane %v2088, %v2094
    %v2096 = vcombine.low %v2071, %v2079
    %v2098 = vunpack.c.l.s4 1934713408
    %v2099 = vunpack.c.0.s8 %v2098
    %v2100 = vlaneseq
    %v2101 = vshrl.u32 %v2100, 7
    %v2102 = vsub.s32 %v2099, %v2101
    %v2103 = vrot.slane %v2096, %v2102
    %v2104 = vcombine.low %v2087, %v2095
    %v2106 = vunpack.c.l.s4 1934713408
    %v2107 = vunpack.c.0.s8 %v2106
    %v2108 = vlaneseq
    %v2109 = vshrl.u32 %v2108, 7
    %v2110 = vsub.s32 %v2107, %v2109
    %v2111 = vrot.slane %v2104, %v2110
    %v2112 = vcombine.low %v2103, %v2111
    %v2113 = vcombine.high %v2103, %v2111
    %v2116 = vpack.i.b16 %v2112, %v2062
    %v2117 = vshrl.u32 %v2062, 16
    %v2118 = vshrl.u32 %v2112, 16
    %v2119 = vpack.i.b16 %v2118, %v2117
    %v2122 = vpack.i.b16 %v2113, %v2063
    %v2123 = vshrl.u32 %v2063, 16
    %v2124 = vshrl.u32 %v2113, 16
    %v2125 = vpack.i.b16 %v2124, %v2123
    %2126 = vrot.lane.b32.xlu0 %v2119, 8
    %v2127 = vpop.permute.xlu0 %2126
    %2128 = vrot.lane.b32.xlu0 %v2122, 16
    %v2129 = vpop.permute.xlu0 %2128
    %2130 = vrot.lane.b32.xlu0 %v2125, 24
    %v2131 = vpop.permute.xlu0 %2130
    %v2134 = vsel %vm980, %v2116, %v2127
    %vm2135 = vcmask 130048
    %v2137 = vsel %vm2135, %v2134, %v2129
    %vm2138 = vcmask 195584
    %v2140 = vsel %vm2138, %v2137, %v2131
    %v2141 = vld [vmem:[#allocation7] sm:$0xf]
    %v2142 = vld [vmem:[#allocation7 + $0x4] sm:$0xf]
    %v2143 = vld [vmem:[#allocation7 + $0x8] sm:$0xf]
    %v2144 = vld [vmem:[#allocation7 + $0xc] sm:$0xf]
    %v2145 = vld [vmem:[%s4] sm:$0x1]
    %v2147 = vlaneseq
    %v2148 = vshrl.u32 %v2147, 7
    %v2149 = vsub.s32 0, %v2148
    %v2150 = vrot.slane %v2145, %v2149
    %v2156 = vunpack.c.l.b16 %v2141
    %v2157 = vunpack.c.l.b16 %v2142
    %v2158 = vunpack.c.l.b16 %v2143
    %v2159 = vunpack.c.l.b16 %v2144
    %v2160 = vpack.c.b16 %v2157, %v2156
    %v2161 = vpack.c.b16 %v2159, %v2158
    %v2164 = vsel %vm89, %v2140, 0
    %2166 = vmatprep.subr.bf16.mxu0 0
    %2167 = vmatpush1.bf16.msra.mxu0 0
    %2168 = vmatprep.subr.bf16.mxu0 0
    %2169 = vmatpush1.bf16.msra.mxu0 0
    %2170 = vmatprep.subr.bf16.mxu0 0
    %2171 = vmatpush1.bf16.msra.mxu0 0
    %2172 = vmatprep.subr.bf16.mxu0 0
    %2173 = vmatpush1.bf16.msra.mxu0 0
    %2174 = vmatprep.subr.bf16.mxu0 0
    %2175 = vmatpush1.bf16.msra.mxu0 0
    %2176 = vmatprep.subr.bf16.mxu0 0
    %2177 = vmatpush1.bf16.msra.mxu0 0
    %2178 = vmatprep.subr.bf16.mxu0 0
    %2179 = vmatpush1.bf16.msra.mxu0 %v2161
    %2180 = vmatprep.subr.bf16.mxu0 0
    %2181 = vmatpush1.bf16.msra.mxu0 %v2160
    %2182 = vmatprep.subr.bf16.mxu0 0
    %2183 = vmatpush2.bf16.msra.mxu0 0
    %2184 = vmatprep.subr.bf16.mxu0 0
    %2185 = vmatpush2.bf16.msra.mxu0 0
    %2186 = vmatprep.subr.bf16.mxu0 0
    %2187 = vmatpush2.bf16.msra.mxu0 0
    %2188 = vmatprep.subr.bf16.mxu0 0
    %2189 = vmatpush2.bf16.msra.mxu0 0
    %2190 = vmatprep.subr.bf16.mxu0 0
    %2191 = vmatpush2.bf16.msra.mxu0 0
    %2192 = vmatprep.subr.bf16.mxu0 0
    %2193 = vmatpush2.bf16.msra.mxu0 0
    %2194 = vmatprep.subr.bf16.mxu0 0
    %2195 = vmatpush2.bf16.msra.mxu0 0
    %2196 = vmatprep.subr.bf16.mxu0 0
    %2197 = vmatpush2.bf16.msra.mxu0 0
    %2198 = vmatprep.mubr.bf16.mxu0 0
    %2199 = vmatmul.mubr.bf16.gmra.mxu0 %v2164
    %v2200 = vpop.f32.mrf.mxu0
    %v2201 = vadd.f32 %v2150, %v2200
    %v2202 = vpop.f32.mrf.mxu0
    %v2203 = vpop.f32.mrf.mxu0
    %v2204 = vadd.f32 %v2150, %v2203
    %v2205 = vpop.f32.mrf.mxu0
    %2206 = vdwg.mxu0
    %2207 = vst.msk [vmem:[#allocation8] sm:$0xff] %vm89, %v2201
    %2208 = vst.msk [vmem:[#allocation8 + $0x8] sm:$0xff] %vm89, %v2204
    // Predicated region
    $region34: #{tpu_custom_call.1} parent=1 // pred_check
      _
    $region35: #{tpu_custom_call.1} parent=1 // pred_check_branch
      %2210 = sbr.rel (0) target = $region37
    $region36: #{tpu_custom_call.1} parent=1 // pred_region
      %s2212 = ssub.s32 256, 256
      %2213 = vsyncadd [#allocation4], %s2212
      %s2214 = sshll.u32 [#allocation8], 4
      %s2215 = int_to_ptr.vmem [resolvable:$true] %s2214
      %2220 = dma.vmem_to_hbm [thread:$0]  %s2215, 256, %s5, [#allocation4], 128, 128, 8
    $region37: #{tpu_custom_call.1} parent=1 // pred_fallthru
      _
    // Predicated region
    $region38: #{tpu_custom_call.1} parent=1 // pred_check
      _
    $region39: #{tpu_custom_call.1} parent=1 // pred_check_branch
      %2222 = sbr.rel (0) target = $region41
    $region40: #{tpu_custom_call.1} parent=1 // pred_region
      %2223 = dma.done [#allocation4], 256
    $region41: #{tpu_custom_call.1} parent=1 // pred_fallthru
      _
    %2224 = vsyncpa [#allocation3], 1
    %2225 = vsyncpa [#allocation6], 1
    %2226 = vsyncpa [#allocation4], 1

// kernel: tpu_custom_call.1
$region0: #{tpu_custom_call.1}
  #allocation0 [shape = 'u32[]', space=smem, size = 0x4, offset = 0x4, fixed_abs, tag = 'smem constant byte address 0x4 - core index']
  #allocation1 [shape = 'u32[144,128]{1,0:T(1,128)}', space=vmem, size = 0x12000, scoped, tag = 'internal scratch']
  %s0 = inlined_call_operand.hbm [shape: f32[2,8,32], index: 0, kind: input, shape index: {}]
  %s1 = inlined_call_operand.hbm [shape: bf16[32,96], index: 1, kind: input, shape index: {}]
  %s2 = inlined_call_operand.vmem [shape: f32[1,96], index: 2, kind: input, shape index: {}]
  %s3 = inlined_call_operand.hbm [shape: bf16[32,32], index: 3, kind: input, shape index: {}]
  %s4 = inlined_call_operand.vmem [shape: f32[1,32], index: 4, kind: input, shape index: {}]
  %s5 = inlined_call_operand.hbm [shape: f32[2,8,32], index: 5, kind: output, shape index: {}]
  %s6 = sld [smem:[#allocation0]]
  $region42: #{tpu_custom_call.1} parent=0
    _
  %s8 = ssub.s32 1, %s6
  %s9 = scalar_select 0, %s8, %s6
  $region1: #{tpu_custom_call.1} parent=0
    #allocation2 [shape = 'u8[8192]{0}', space=vmem, size = 0x2000, scoped, tag = 'input window, operand 0, single buffered']
    #allocation3 [shape = 's32[1]{0}', space=sflag, size = 0x4, scoped, tag = 'scoped memory for tpu_custom_call.1']
    #allocation4 [shape = 's32[1]{0}', space=sflag, size = 0x4, scoped, tag = 'scoped memory for tpu_custom_call.1']
    #allocation5 [shape = 'u8[8192]{0}', space=vmem, size = 0x2000, scoped, tag = 'input window, operand 1, single buffered']
    #allocation6 [shape = 's32[1]{0}', space=sflag, size = 0x4, scoped, tag = 'scoped memory for tpu_custom_call.1']
    #allocation7 [shape = 'u8[8192]{0}', space=vmem, size = 0x2000, scoped, tag = 'input window, operand 3, single buffered']
    #allocation8 [shape = 'u8[8192]{0}', space=vmem, size = 0x2000, scoped, tag = 'output window, operand 0, single buffered']
    %10 = vsyncpa [#allocation3], 0
    %11 = vsyncpa [#allocation6], 0
    %12 = vsyncpa [#allocation4], 0
    // Predicated region
    $region2: #{tpu_custom_call.1} parent=1 // pred_check
      _
    $region3: #{tpu_custom_call.1} parent=1 // pred_check_branch
      %14 = sbr.rel (0) target = $region5
    $region4: #{tpu_custom_call.1} parent=1 // pred_region
      %s16 = ssub.s32 256, 256
      %17 = vsyncadd [#allocation3], %s16
      %s18 = sshll.u32 [#allocation2], 4
      %s19 = int_to_ptr.vmem [resolvable:$true] %s18
      %24 = dma.hbm_to_vmem [thread:$0]  %s0, 256, %s19, [#allocation3], 128, 128, 8
    $region5: #{tpu_custom_call.1} parent=1 // pred_fallthru
      _
    // Predicated region
    $region6: #{tpu_custom_call.1} parent=1 // pred_check
      _
    $region7: #{tpu_custom_call.1} parent=1 // pred_check_branch
      %26 = sbr.rel (0) target = $region9
    $region8: #{tpu_custom_call.1} parent=1 // pred_region
      %s28 = ssub.s32 256, 256
      %29 = vsyncadd [#allocation6], %s28
      %s30 = sshll.u32 [#allocation5], 4
      %s31 = int_to_ptr.vmem [resolvable:$true] %s30
      %36 = dma.hbm_to_vmem [thread:$0]  %s1, 256, %s31, [#allocation6], 64, 64, 4
    $region9: #{tpu_custom_call.1} parent=1 // pred_fallthru
      _
    // Predicated region
    $region10: #{tpu_custom_call.1} parent=1 // pred_check
      _
    $region11: #{tpu_custom_call.1} parent=1 // pred_check_branch
      %38 = sbr.rel (0) target = $region13
    $region12: #{tpu_custom_call.1} parent=1 // pred_region
      _
    $region13: #{tpu_custom_call.1} parent=1 // pred_fallthru
      _
    // Predicated region
    $region14: #{tpu_custom_call.1} parent=1 // pred_check
      _
    $region15: #{tpu_custom_call.1} parent=1 // pred_check_branch
      %40 = sbr.rel (0) target = $region17
    $region16: #{tpu_custom_call.1} parent=1 // pred_region
      %s42 = ssub.s32 256, 256
      %43 = vsyncadd [#allocation6], %s42
      %s44 = sshll.u32 [#allocation7], 4
      %s45 = int_to_ptr.vmem [resolvable:$true] %s44
      %50 = dma.hbm_to_vmem [thread:$0]  %s3, 256, %s45, [#allocation6], 64, 64, 4
    $region17: #{tpu_custom_call.1} parent=1 // pred_fallthru
      _
    // Predicated region
    $region18: #{tpu_custom_call.1} parent=1 // pred_check
      _
    $region19: #{tpu_custom_call.1} parent=1 // pred_check_branch
      %52 = sbr.rel (0) target = $region21
    $region20: #{tpu_custom_call.1} parent=1 // pred_region
      _
    $region21: #{tpu_custom_call.1} parent=1 // pred_fallthru
      _
    // Predicated region
    $region22: #{tpu_custom_call.1} parent=1 // pred_check
      _
    $region23: #{tpu_custom_call.1} parent=1 // pred_check_branch
      %54 = sbr.rel (0) target = $region25
    $region24: #{tpu_custom_call.1} parent=1 // pred_region
      %55 = dma.done [#allocation3], 256
    $region25: #{tpu_custom_call.1} parent=1 // pred_fallthru
      _
    // Predicated region
    $region26: #{tpu_custom_call.1} parent=1 // pred_check
      _
    $region27: #{tpu_custom_call.1} parent=1 // pred_check_branch
      %57 = sbr.rel (0) target = $region29
    $region28: #{tpu_custom_call.1} parent=1 // pred_region
      %58 = dma.done [#allocation6], 256
    $region29: #{tpu_custom_call.1} parent=1 // pred_fallthru
      _
    // Predicated region
    $region30: #{tpu_custom_call.1} parent=1 // pred_check
      _
    $region31: #{tpu_custom_call.1} parent=1 // pred_check_branch
      %60 = sbr.rel (0) target = $region33
    $region32: #{tpu_custom_call.1} parent=1 // pred_region
      %61 = dma.done [#allocation6], 256
    $region33: #{tpu_custom_call.1} parent=1 // pred_fallthru
      _
    %v63 = vld [vmem:[#allocation2] sm:$0xff]
    %v64 = vld [vmem:[#allocation2 + $0x8] sm:$0xff]
    %v65 = vpack.c.bf16 %v64, %v63
    %v66 = vld [vmem:[#allocation5] sm:$0xf]
    %v67 = vld [vmem:[#allocation5 + $0x4] sm:$0xf]
    %v68 = vld [vmem:[#allocation5 + $0x8] sm:$0xf]
    %v69 = vld [vmem:[#allocation5 + $0xc] sm:$0xf]
    %v70 = vld [vmem:[%s2] sm:$0x1]
    %v72 = vlaneseq
    %v73 = vshrl.u32 %v72, 7
    %v74 = vsub.s32 0, %v73
    %v75 = vrot.slane %v70, %v74
    %v81 = vunpack.c.l.b16 %v66
    %v82 = vunpack.c.l.b16 %v67
    %v83 = vunpack.c.l.b16 %v68
    %v84 = vunpack.c.l.b16 %v69
    %v85 = vpack.c.b16 %v82, %v81
    %v86 = vpack.c.b16 %v84, %v83
    %vm89 = vcmask 261120
    %v91 = vsel %vm89, %v65, 0
    %93 = vmatprep.subr.bf16.mxu0 0
    %94 = vmatpush1.bf16.msra.mxu0 0
    %95 = vmatprep.subr.bf16.mxu0 0
    %96 = vmatpush1.bf16.msra.mxu0 0
    %97 = vmatprep.subr.bf16.mxu0 0
    %98 = vmatpush1.bf16.msra.mxu0 0
    %99 = vmatprep.subr.bf16.mxu0 0
    %100 = vmatpush1.bf16.msra.mxu0 0
    %101 = vmatprep.subr.bf16.mxu0 0
    %102 = vmatpush1.bf16.msra.mxu0 0
    %103 = vmatprep.subr.bf16.mxu0 0
    %104 = vmatpush1.bf16.msra.mxu0 0
    %105 = vmatprep.subr.bf16.mxu0 0
    %106 = vmatpush1.bf16.msra.mxu0 %v86
    %107 = vmatprep.subr.bf16.mxu0 0
    %108 = vmatpush1.bf16.msra.mxu0 %v85
    %109 = vmatprep.subr.bf16.mxu0 0
    %110 = vmatpush2.bf16.msra.mxu0 0
    %111 = vmatprep.subr.bf16.mxu0 0
    %112 = vmatpush2.bf16.msra.mxu0 0
    %113 = vmatprep.subr.bf16.mxu0 0
    %114 = vmatpush2.bf16.msra.mxu0 0
    %115 = vmatprep.subr.bf16.mxu0 0
    %116 = vmatpush2.bf16.msra.mxu0 0
    %117 = vmatprep.subr.bf16.mxu0 0
    %118 = vmatpush2.bf16.msra.mxu0 0
    %119 = vmatprep.subr.bf16.mxu0 0
    %120 = vmatpush2.bf16.msra.mxu0 0
    %121 = vmatprep.subr.bf16.mxu0 0
    %122 = vmatpush2.bf16.msra.mxu0 0
    %123 = vmatprep.subr.bf16.mxu0 0
    %124 = vmatpush2.bf16.msra.mxu0 0
    %125 = vmatprep.mubr.bf16.mxu0 0
    %126 = vmatmul.mubr.bf16.gmra.mxu0 %v91
    %v127 = vpop.f32.mrf.mxu0
    %v128 = vadd.f32 %v75, %v127
    %v129 = vpop.f32.mrf.mxu0
    %v130 = vpop.f32.mrf.mxu0
    %v131 = vadd.f32 %v75, %v130
    %v132 = vpop.f32.mrf.mxu0
    %133 = vdwg.mxu0
    %v134 = vpack.c.bf16 %v131, %v128
    %136 = vrot.lane.b32.xlu0 %v134, 120
    %v137 = vpop.permute.xlu0 %136
    %138 = vrot.lane.b32.xlu0 %v134, 112
    %v139 = vpop.permute.xlu0 %138
    %140 = vrot.lane.b32.xlu0 %v134, 104
    %v141 = vpop.permute.xlu0 %140
    %v144 = vpack.i.b16 %v137, %v134
    %v146 = vshrl.u32 %v134, 16
    %v147 = vshrl.u32 %v137, 16
    %v148 = vpack.i.b16 %v147, %v146
    %v152 = vpack.i.b16 %v141, %v139
    %v154 = vshrl.u32 %v139, 16
    %v155 = vshrl.u32 %v141, 16
    %v156 = vpack.i.b16 %v155, %v154
    %v159 = vpack.i.b16 0, 0
    %v161 = vshrl.u32 0, 16
    %v162 = vpack.i.b16 %v161, %v161
    %v164 = vcombine.high %v144, %v159
    %v166 = vunpack.c.l.s4 1983009808
    %v167 = vunpack.c.0.s8 %v166
    %v168 = vlaneseq
    %v169 = vshrl.u32 %v168, 7
    %v170 = vsub.s32 %v167, %v169
    %v171 = vrot.slane %v144, %v170
    %v173 = vunpack.c.l.s4 1983009808
    %v174 = vunpack.c.0.s8 %v173
    %v175 = vlaneseq
    %v176 = vshrl.u32 %v175, 7
    %v177 = vsub.s32 %v174, %v176
    %v178 = vrot.slane %v164, %v177
    %v179 = vcombine.high %v152, %v159
    %v181 = vunpack.c.l.s4 1983009808
    %v182 = vunpack.c.0.s8 %v181
    %v183 = vlaneseq
    %v184 = vshrl.u32 %v183, 7
    %v185 = vsub.s32 %v182, %v184
    %v186 = vrot.slane %v152, %v185
    %v188 = vunpack.c.l.s4 1983009808
    %v189 = vunpack.c.0.s8 %v188
    %v190 = vlaneseq
    %v191 = vshrl.u32 %v190, 7
    %v192 = vsub.s32 %v189, %v191
    %v193 = vrot.slane %v179, %v192
    %v194 = vcombine.low %v171, %v186
    %v195 = vcombine.high %v171, %v186
    %v197 = vunpack.c.l.s4 1934713408
    %v198 = vunpack.c.0.s8 %v197
    %v199 = vlaneseq
    %v200 = vshrl.u32 %v199, 7
    %v201 = vsub.s32 %v198, %v200
    %v202 = vrot.slane %v194, %v201
    %v204 = vunpack.c.l.s4 1934713408
    %v205 = vunpack.c.0.s8 %v204
    %v206 = vlaneseq
    %v207 = vshrl.u32 %v206, 7
    %v208 = vsub.s32 %v205, %v207
    %v209 = vrot.slane %v195, %v208
    %v210 = vcombine.low %v178, %v193
    %v211 = vcombine.high %v178, %v193
    %v213 = vunpack.c.l.s4 1934713408
    %v214 = vunpack.c.0.s8 %v213
    %v215 = vlaneseq
    %v216 = vshrl.u32 %v215, 7
    %v217 = vsub.s32 %v214, %v216
    %v218 = vrot.slane %v210, %v217
    %v220 = vunpack.c.l.s4 1934713408
    %v221 = vunpack.c.0.s8 %v220
    %v222 = vlaneseq
    %v223 = vshrl.u32 %v222, 7
    %v224 = vsub.s32 %v221, %v223
    %v225 = vrot.slane %v211, %v224
    %v226 = vcombine.high %v202, 0
    %v227 = vcombine.high %v209, 0
    %v228 = vcombine.high %v218, 0
    %v229 = vcombine.high %v225, 0
    %v230 = vcombine.high %v148, %v162
    %v232 = vunpack.c.l.s4 1983009808
    %v233 = vunpack.c.0.s8 %v232
    %v234 = vlaneseq
    %v235 = vshrl.u32 %v234, 7
    %v236 = vsub.s32 %v233, %v235
    %v237 = vrot.slane %v148, %v236
    %v239 = vunpack.c.l.s4 1983009808
    %v240 = vunpack.c.0.s8 %v239
    %v241 = vlaneseq
    %v242 = vshrl.u32 %v241, 7
    %v243 = vsub.s32 %v240, %v242
    %v244 = vrot.slane %v230, %v243
    %v245 = vcombine.high %v156, %v162
    %v247 = vunpack.c.l.s4 1983009808
    %v248 = vunpack.c.0.s8 %v247
    %v249 = vlaneseq
    %v250 = vshrl.u32 %v249, 7
    %v251 = vsub.s32 %v248, %v250
    %v252 = vrot.slane %v156, %v251
    %v254 = vunpack.c.l.s4 1983009808
    %v255 = vunpack.c.0.s8 %v254
    %v256 = vlaneseq
    %v257 = vshrl.u32 %v256, 7
    %v258 = vsub.s32 %v255, %v257
    %v259 = vrot.slane %v245, %v258
    %v260 = vcombine.low %v237, %v252
    %v261 = vcombine.high %v237, %v252
    %v263 = vunpack.c.l.s4 1934713408
    %v264 = vunpack.c.0.s8 %v263
    %v265 = vlaneseq
    %v266 = vshrl.u32 %v265, 7
    %v267 = vsub.s32 %v264, %v266
    %v268 = vrot.slane %v260, %v267
    %v270 = vunpack.c.l.s4 1934713408
    %v271 = vunpack.c.0.s8 %v270
    %v272 = vlaneseq
    %v273 = vshrl.u32 %v272, 7
    %v274 = vsub.s32 %v271, %v273
    %v275 = vrot.slane %v261, %v274
    %v276 = vcombine.low %v244, %v259
    %v277 = vcombine.high %v244, %v259
    %v279 = vunpack.c.l.s4 1934713408
    %v280 = vunpack.c.0.s8 %v279
    %v281 = vlaneseq
    %v282 = vshrl.u32 %v281, 7
    %v283 = vsub.s32 %v280, %v282
    %v284 = vrot.slane %v276, %v283
    %v286 = vunpack.c.l.s4 1934713408
    %v287 = vunpack.c.0.s8 %v286
    %v288 = vlaneseq
    %v289 = vshrl.u32 %v288, 7
    %v290 = vsub.s32 %v287, %v289
    %v291 = vrot.slane %v277, %v290
    %v292 = vcombine.high %v268, 0
    %v293 = vcombine.high %v275, 0
    %v294 = vcombine.high %v284, 0
    %v295 = vcombine.high %v291, 0
    %v296 = vcombine.low %v202, %v209
    %v298 = vunpack.c.l.s4 1983009808
    %v299 = vunpack.c.0.s8 %v298
    %v300 = vlaneseq
    %v301 = vshrl.u32 %v300, 7
    %v302 = vsub.s32 %v299, %v301
    %v303 = vrot.slane %v296, %v302
    %v304 = vcombine.low %v226, %v227
    %v306 = vunpack.c.l.s4 1983009808
    %v307 = vunpack.c.0.s8 %v306
    %v308 = vlaneseq
    %v309 = vshrl.u32 %v308, 7
    %v310 = vsub.s32 %v307, %v309
    %v311 = vrot.slane %v304, %v310
    %v312 = vcombine.low %v303, %v311
    %v314 = vunpack.c.l.s4 1934713408
    %v315 = vunpack.c.0.s8 %v314
    %v316 = vlaneseq
    %v317 = vshrl.u32 %v316, 7
    %v318 = vsub.s32 %v315, %v317
    %v319 = vrot.slane %v312, %v318
    %v320 = vcombine.high %v319, 0
    %v321 = vcombine.low %v268, %v275
    %v323 = vunpack.c.l.s4 1983009808
    %v324 = vunpack.c.0.s8 %v323
    %v325 = vlaneseq
    %v326 = vshrl.u32 %v325, 7
    %v327 = vsub.s32 %v324, %v326
    %v328 = vrot.slane %v321, %v327
    %v329 = vcombine.low %v292, %v293
    %v331 = vunpack.c.l.s4 1983009808
    %v332 = vunpack.c.0.s8 %v331
    %v333 = vlaneseq
    %v334 = vshrl.u32 %v333, 7
    %v335 = vsub.s32 %v332, %v334
    %v336 = vrot.slane %v329, %v335
    %v337 = vcombine.low %v328, %v336
    %v339 = vunpack.c.l.s4 1934713408
    %v340 = vunpack.c.0.s8 %v339
    %v341 = vlaneseq
    %v342 = vshrl.u32 %v341, 7
    %v343 = vsub.s32 %v340, %v342
    %v344 = vrot.slane %v337, %v343
    %v345 = vcombine.high %v344, 0
    %v346 = vcombine.low %v218, %v225
    %v348 = vunpack.c.l.s4 1983009808
    %v349 = vunpack.c.0.s8 %v348
    %v350 = vlaneseq
    %v351 = vshrl.u32 %v350, 7
    %v352 = vsub.s32 %v349, %v351
    %v353 = vrot.slane %v346, %v352
    %v354 = vcombine.low %v228, %v229
    %v356 = vunpack.c.l.s4 1983009808
    %v357 = vunpack.c.0.s8 %v356
    %v358 = vlaneseq
    %v359 = vshrl.u32 %v358, 7
    %v360 = vsub.s32 %v357, %v359
    %v361 = vrot.slane %v354, %v360
    %v362 = vcombine.low %v353, %v361
    %v364 = vunpack.c.l.s4 1934713408
    %v365 = vunpack.c.0.s8 %v364
    %v366 = vlaneseq
    %v367 = vshrl.u32 %v366, 7
    %v368 = vsub.s32 %v365, %v367
    %v369 = vrot.slane %v362, %v368
    %v370 = vcombine.high %v369, 0
    %v371 = vcombine.low %v284, %v291
    %v373 = vunpack.c.l.s4 1983009808
    %v374 = vunpack.c.0.s8 %v373
    %v375 = vlaneseq
    %v376 = vshrl.u32 %v375, 7
    %v377 = vsub.s32 %v374, %v376
    %v378 = vrot.slane %v371, %v377
    %v379 = vcombine.low %v294, %v295
    %v381 = vunpack.c.l.s4 1983009808
    %v382 = vunpack.c.0.s8 %v381
    %v383 = vlaneseq
    %v384 = vshrl.u32 %v383, 7
    %v385 = vsub.s32 %v382, %v384
    %v386 = vrot.slane %v379, %v385
    %v387 = vcombine.low %v378, %v386
    %v389 = vunpack.c.l.s4 1934713408
    %v390 = vunpack.c.0.s8 %v389
    %v391 = vlaneseq
    %v392 = vshrl.u32 %v391, 7
    %v393 = vsub.s32 %v390, %v392
    %v394 = vrot.slane %v387, %v393
    %v395 = vcombine.high %v394, 0
    %v398 = vpack.i.b16 %v344, %v319
    %v399 = vshrl.u32 %v319, 16
    %v400 = vshrl.u32 %v344, 16
    %v401 = vpack.i.b16 %v400, %v399
    %v404 = vpack.i.b16 %v345, %v320
    %v405 = vshrl.u32 %v320, 16
    %v406 = vshrl.u32 %v345, 16
    %v407 = vpack.i.b16 %v406, %v405
    %v410 = vpack.i.b16 %v394, %v369
    %v411 = vshrl.u32 %v369, 16
    %v412 = vshrl.u32 %v394, 16
    %v413 = vpack.i.b16 %v412, %v411
    %v416 = vpack.i.b16 %v395, %v370
    %v417 = vshrl.u32 %v370, 16
    %v418 = vshrl.u32 %v395, 16
    %v419 = vpack.i.b16 %v418, %v417
    %420 = vrot.lane.b32.xlu0 %v134, 96
    %v421 = vpop.permute.xlu0 %420
    %422 = vrot.lane.b32.xlu0 %v137, 96
    %v423 = vpop.permute.xlu0 %422
    %424 = vrot.lane.b32.xlu0 %v139, 96
    %v425 = vpop.permute.xlu0 %424
    %426 = vrot.lane.b32.xlu0 %v141, 96
    %v427 = vpop.permute.xlu0 %426
    %v430 = vpack.i.b16 %v423, %v421
    %v432 = vshrl.u32 %v421, 16
    %v433 = vshrl.u32 %v423, 16
    %v434 = vpack.i.b16 %v433, %v432
    %v438 = vpack.i.b16 %v427, %v425
    %v440 = vshrl.u32 %v425, 16
    %v441 = vshrl.u32 %v427, 16
    %v442 = vpack.i.b16 %v441, %v440
    %v444 = vcombine.high %v430, %v159
    %v446 = vunpack.c.l.s4 1983009808
    %v447 = vunpack.c.0.s8 %v446
    %v448 = vlaneseq
    %v449 = vshrl.u32 %v448, 7
    %v450 = vsub.s32 %v447, %v449
    %v451 = vrot.slane %v430, %v450
    %v453 = vunpack.c.l.s4 1983009808
    %v454 = vunpack.c.0.s8 %v453
    %v455 = vlaneseq
    %v456 = vshrl.u32 %v455, 7
    %v457 = vsub.s32 %v454, %v456
    %v458 = vrot.slane %v444, %v457
    %v459 = vcombine.high %v438, %v159
    %v461 = vunpack.c.l.s4 1983009808
    %v462 = vunpack.c.0.s8 %v461
    %v463 = vlaneseq
    %v464 = vshrl.u32 %v463, 7
    %v465 = vsub.s32 %v462, %v464
    %v466 = vrot.slane %v438, %v465
    %v468 = vunpack.c.l.s4 1983009808
    %v469 = vunpack.c.0.s8 %v468
    %v470 = vlaneseq
    %v471 = vshrl.u32 %v470, 7
    %v472 = vsub.s32 %v469, %v471
    %v473 = vrot.slane %v459, %v472
    %v474 = vcombine.low %v451, %v466
    %v475 = vcombine.high %v451, %v466
    %v477 = vunpack.c.l.s4 1934713408
    %v478 = vunpack.c.0.s8 %v477
    %v479 = vlaneseq
    %v480 = vshrl.u32 %v479, 7
    %v481 = vsub.s32 %v478, %v480
    %v482 = vrot.slane %v474, %v481
    %v484 = vunpack.c.l.s4 1934713408
    %v485 = vunpack.c.0.s8 %v484
    %v486 = vlaneseq
    %v487 = vshrl.u32 %v486, 7
    %v488 = vsub.s32 %v485, %v487
    %v489 = vrot.slane %v475, %v488
    %v490 = vcombine.low %v458, %v473
    %v491 = vcombine.high %v458, %v473
    %v493 = vunpack.c.l.s4 1934713408
    %v494 = vunpack.c.0.s8 %v493
    %v495 = vlaneseq
    %v496 = vshrl.u32 %v495, 7
    %v497 = vsub.s32 %v494, %v496
    %v498 = vrot.slane %v490, %v497
    %v500 = vunpack.c.l.s4 1934713408
    %v501 = vunpack.c.0.s8 %v500
    %v502 = vlaneseq
    %v503 = vshrl.u32 %v502, 7
    %v504 = vsub.s32 %v501, %v503
    %v505 = vrot.slane %v491, %v504
    %v506 = vcombine.high %v482, 0
    %v507 = vcombine.high %v489, 0
    %v508 = vcombine.high %v498, 0
    %v509 = vcombine.high %v505, 0
    %v510 = vcombine.high %v434, %v162
    %v512 = vunpack.c.l.s4 1983009808
    %v513 = vunpack.c.0.s8 %v512
    %v514 = vlaneseq
    %v515 = vshrl.u32 %v514, 7
    %v516 = vsub.s32 %v513, %v515
    %v517 = vrot.slane %v434, %v516
    %v519 = vunpack.c.l.s4 1983009808
    %v520 = vunpack.c.0.s8 %v519
    %v521 = vlaneseq
    %v522 = vshrl.u32 %v521, 7
    %v523 = vsub.s32 %v520, %v522
    %v524 = vrot.slane %v510, %v523
    %v525 = vcombine.high %v442, %v162
    %v527 = vunpack.c.l.s4 1983009808
    %v528 = vunpack.c.0.s8 %v527
    %v529 = vlaneseq
    %v530 = vshrl.u32 %v529, 7
    %v531 = vsub.s32 %v528, %v530
    %v532 = vrot.slane %v442, %v531
    %v534 = vunpack.c.l.s4 1983009808
    %v535 = vunpack.c.0.s8 %v534
    %v536 = vlaneseq
    %v537 = vshrl.u32 %v536, 7
    %v538 = vsub.s32 %v535, %v537
    %v539 = vrot.slane %v525, %v538
    %v540 = vcombine.low %v517, %v532
    %v541 = vcombine.high %v517, %v532
    %v543 = vunpack.c.l.s4 1934713408
    %v544 = vunpack.c.0.s8 %v543
    %v545 = vlaneseq
    %v546 = vshrl.u32 %v545, 7
    %v547 = vsub.s32 %v544, %v546
    %v548 = vrot.slane %v540, %v547
    %v550 = vunpack.c.l.s4 1934713408
    %v551 = vunpack.c.0.s8 %v550
    %v552 = vlaneseq
    %v553 = vshrl.u32 %v552, 7
    %v554 = vsub.s32 %v551, %v553
    %v555 = vrot.slane %v541, %v554
    %v556 = vcombine.low %v524, %v539
    %v557 = vcombine.high %v524, %v539
    %v559 = vunpack.c.l.s4 1934713408
    %v560 = vunpack.c.0.s8 %v559
    %v561 = vlaneseq
    %v562 = vshrl.u32 %v561, 7
    %v563 = vsub.s32 %v560, %v562
    %v564 = vrot.slane %v556, %v563
    %v566 = vunpack.c.l.s4 1934713408
    %v567 = vunpack.c.0.s8 %v566
    %v568 = vlaneseq
    %v569 = vshrl.u32 %v568, 7
    %v570 = vsub.s32 %v567, %v569
    %v571 = vrot.slane %v557, %v570
    %v572 = vcombine.high %v548, 0
    %v573 = vcombine.high %v555, 0
    %v574 = vcombine.high %v564, 0
    %v575 = vcombine.high %v571, 0
    %v576 = vcombine.low %v482, %v489
    %v578 = vunpack.c.l.s4 1983009808
    %v579 = vunpack.c.0.s8 %v578
    %v580 = vlaneseq
    %v581 = vshrl.u32 %v580, 7
    %v582 = vsub.s32 %v579, %v581
    %v583 = vrot.slane %v576, %v582
    %v584 = vcombine.low %v506, %v507
    %v586 = vunpack.c.l.s4 1983009808
    %v587 = vunpack.c.0.s8 %v586
    %v588 = vlaneseq
    %v589 = vshrl.u32 %v588, 7
    %v590 = vsub.s32 %v587, %v589
    %v591 = vrot.slane %v584, %v590
    %v592 = vcombine.low %v583, %v591
    %v594 = vunpack.c.l.s4 1934713408
    %v595 = vunpack.c.0.s8 %v594
    %v596 = vlaneseq
    %v597 = vshrl.u32 %v596, 7
    %v598 = vsub.s32 %v595, %v597
    %v599 = vrot.slane %v592, %v598
    %v600 = vcombine.high %v599, 0
    %v601 = vcombine.low %v548, %v555
    %v603 = vunpack.c.l.s4 1983009808
    %v604 = vunpack.c.0.s8 %v603
    %v605 = vlaneseq
    %v606 = vshrl.u32 %v605, 7
    %v607 = vsub.s32 %v604, %v606
    %v608 = vrot.slane %v601, %v607
    %v609 = vcombine.low %v572, %v573
    %v611 = vunpack.c.l.s4 1983009808
    %v612 = vunpack.c.0.s8 %v611
    %v613 = vlaneseq
    %v614 = vshrl.u32 %v613, 7
    %v615 = vsub.s32 %v612, %v614
    %v616 = vrot.slane %v609, %v615
    %v617 = vcombine.low %v608, %v616
    %v619 = vunpack.c.l.s4 1934713408
    %v620 = vunpack.c.0.s8 %v619
    %v621 = vlaneseq
    %v622 = vshrl.u32 %v621, 7
    %v623 = vsub.s32 %v620, %v622
    %v624 = vrot.slane %v617, %v623
    %v625 = vcombine.high %v624, 0
    %v626 = vcombine.low %v498, %v505
    %v628 = vunpack.c.l.s4 1983009808
    %v629 = vunpack.c.0.s8 %v628
    %v630 = vlaneseq
    %v631 = vshrl.u32 %v630, 7
    %v632 = vsub.s32 %v629, %v631
    %v633 = vrot.slane %v626, %v632
    %v634 = vcombine.low %v508, %v509
    %v636 = vunpack.c.l.s4 1983009808
    %v637 = vunpack.c.0.s8 %v636
    %v638 = vlaneseq
    %v639 = vshrl.u32 %v638, 7
    %v640 = vsub.s32 %v637, %v639
    %v641 = vrot.slane %v634, %v640
    %v642 = vcombine.low %v633, %v641
    %v644 = vunpack.c.l.s4 1934713408
    %v645 = vunpack.c.0.s8 %v644
    %v646 = vlaneseq
    %v647 = vshrl.u32 %v646, 7
    %v648 = vsub.s32 %v645, %v647
    %v649 = vrot.slane %v642, %v648
    %v650 = vcombine.high %v649, 0
    %v651 = vcombine.low %v564, %v571
    %v653 = vunpack.c.l.s4 1983009808
    %v654 = vunpack.c.0.s8 %v653
    %v655 = vlaneseq
    %v656 = vshrl.u32 %v655, 7
    %v657 = vsub.s32 %v654, %v656
    %v658 = vrot.slane %v651, %v657
    %v659 = vcombine.low %v574, %v575
    %v661 = vunpack.c.l.s4 1983009808
    %v662 = vunpack.c.0.s8 %v661
    %v663 = vlaneseq
    %v664 = vshrl.u32 %v663, 7
    %v665 = vsub.s32 %v662, %v664
    %v666 = vrot.slane %v659, %v665
    %v667 = vcombine.low %v658, %v666
    %v669 = vunpack.c.l.s4 1934713408
    %v670 = vunpack.c.0.s8 %v669
    %v671 = vlaneseq
    %v672 = vshrl.u32 %v671, 7
    %v673 = vsub.s32 %v670, %v672
    %v674 = vrot.slane %v667, %v673
    %v675 = vcombine.high %v674, 0
    %v678 = vpack.i.b16 %v624, %v599
    %v679 = vshrl.u32 %v599, 16
    %v680 = vshrl.u32 %v624, 16
    %v681 = vpack.i.b16 %v680, %v679
    %v684 = vpack.i.b16 %v625, %v600
    %v685 = vshrl.u32 %v600, 16
    %v686 = vshrl.u32 %v625, 16
    %v687 = vpack.i.b16 %v686, %v685
    %v690 = vpack.i.b16 %v674, %v649
    %v691 = vshrl.u32 %v649, 16
    %v692 = vshrl.u32 %v674, 16
    %v693 = vpack.i.b16 %v692, %v691
    %v696 = vpack.i.b16 %v675, %v650
    %v697 = vshrl.u32 %v650, 16
    %v698 = vshrl.u32 %v675, 16
    %v699 = vpack.i.b16 %v698, %v697
    %700 = vrot.lane.b32.xlu0 %v134, 64
    %v701 = vpop.permute.xlu0 %700
    %702 = vrot.lane.b32.xlu0 %v137, 64
    %v703 = vpop.permute.xlu0 %702
    %704 = vrot.lane.b32.xlu0 %v139, 64
    %v705 = vpop.permute.xlu0 %704
    %706 = vrot.lane.b32.xlu0 %v141, 64
    %v707 = vpop.permute.xlu0 %706
    %v710 = vpack.i.b16 %v703, %v701
    %v712 = vshrl.u32 %v701, 16
    %v713 = vshrl.u32 %v703, 16
    %v714 = vpack.i.b16 %v713, %v712
    %v718 = vpack.i.b16 %v707, %v705
    %v720 = vshrl.u32 %v705, 16
    %v721 = vshrl.u32 %v707, 16
    %v722 = vpack.i.b16 %v721, %v720
    %v724 = vcombine.high %v710, %v159
    %v726 = vunpack.c.l.s4 1983009808
    %v727 = vunpack.c.0.s8 %v726
    %v728 = vlaneseq
    %v729 = vshrl.u32 %v728, 7
    %v730 = vsub.s32 %v727, %v729
    %v731 = vrot.slane %v710, %v730
    %v733 = vunpack.c.l.s4 1983009808
    %v734 = vunpack.c.0.s8 %v733
    %v735 = vlaneseq
    %v736 = vshrl.u32 %v735, 7
    %v737 = vsub.s32 %v734, %v736
    %v738 = vrot.slane %v724, %v737
    %v739 = vcombine.high %v718, %v159
    %v741 = vunpack.c.l.s4 1983009808
    %v742 = vunpack.c.0.s8 %v741
    %v743 = vlaneseq
    %v744 = vshrl.u32 %v743, 7
    %v745 = vsub.s32 %v742, %v744
    %v746 = vrot.slane %v718, %v745
    %v748 = vunpack.c.l.s4 1983009808
    %v749 = vunpack.c.0.s8 %v748
    %v750 = vlaneseq
    %v751 = vshrl.u32 %v750, 7
    %v752 = vsub.s32 %v749, %v751
    %v753 = vrot.slane %v739, %v752
    %v754 = vcombine.low %v731, %v746
    %v755 = vcombine.high %v731, %v746
    %v757 = vunpack.c.l.s4 1934713408
    %v758 = vunpack.c.0.s8 %v757
    %v759 = vlaneseq
    %v760 = vshrl.u32 %v759, 7
    %v761 = vsub.s32 %v758, %v760
    %v762 = vrot.slane %v754, %v761
    %v764 = vunpack.c.l.s4 1934713408
    %v765 = vunpack.c.0.s8 %v764
    %v766 = vlaneseq
    %v767 = vshrl.u32 %v766, 7
    %v768 = vsub.s32 %v765, %v767
    %v769 = vrot.slane %v755, %v768
    %v770 = vcombine.low %v738, %v753
    %v771 = vcombine.high %v738, %v753
    %v773 = vunpack.c.l.s4 1934713408
    %v774 = vunpack.c.0.s8 %v773
    %v775 = vlaneseq
    %v776 = vshrl.u32 %v775, 7
    %v777 = vsub.s32 %v774, %v776
    %v778 = vrot.slane %v770, %v777
    %v780 = vunpack.c.l.s4 1934713408
    %v781 = vunpack.c.0.s8 %v780
    %v782 = vlaneseq
    %v783 = vshrl.u32 %v782, 7
    %v784 = vsub.s32 %v781, %v783
    %v785 = vrot.slane %v771, %v784
    %v786 = vcombine.high %v762, 0
    %v787 = vcombine.high %v769, 0
    %v788 = vcombine.high %v778, 0
    %v789 = vcombine.high %v785, 0
    %v790 = vcombine.high %v714, %v162
    %v792 = vunpack.c.l.s4 1983009808
    %v793 = vunpack.c.0.s8 %v792
    %v794 = vlaneseq
    %v795 = vshrl.u32 %v794, 7
    %v796 = vsub.s32 %v793, %v795
    %v797 = vrot.slane %v714, %v796
    %v799 = vunpack.c.l.s4 1983009808
    %v800 = vunpack.c.0.s8 %v799
    %v801 = vlaneseq
    %v802 = vshrl.u32 %v801, 7
    %v803 = vsub.s32 %v800, %v802
    %v804 = vrot.slane %v790, %v803
    %v805 = vcombine.high %v722, %v162
    %v807 = vunpack.c.l.s4 1983009808
    %v808 = vunpack.c.0.s8 %v807
    %v809 = vlaneseq
    %v810 = vshrl.u32 %v809, 7
    %v811 = vsub.s32 %v808, %v810
    %v812 = vrot.slane %v722, %v811
    %v814 = vunpack.c.l.s4 1983009808
    %v815 = vunpack.c.0.s8 %v814
    %v816 = vlaneseq
    %v817 = vshrl.u32 %v816, 7
    %v818 = vsub.s32 %v815, %v817
    %v819 = vrot.slane %v805, %v818
    %v820 = vcombine.low %v797, %v812
    %v821 = vcombine.high %v797, %v812
    %v823 = vunpack.c.l.s4 1934713408
    %v824 = vunpack.c.0.s8 %v823
    %v825 = vlaneseq
    %v826 = vshrl.u32 %v825, 7
    %v827 = vsub.s32 %v824, %v826
    %v828 = vrot.slane %v820, %v827
    %v830 = vunpack.c.l.s4 1934713408
    %v831 = vunpack.c.0.s8 %v830
    %v832 = vlaneseq
    %v833 = vshrl.u32 %v832, 7
    %v834 = vsub.s32 %v831, %v833
    %v835 = vrot.slane %v821, %v834
    %v836 = vcombine.low %v804, %v819
    %v837 = vcombine.high %v804, %v819
    %v839 = vunpack.c.l.s4 1934713408
    %v840 = vunpack.c.0.s8 %v839
    %v841 = vlaneseq
    %v842 = vshrl.u32 %v841, 7
    %v843 = vsub.s32 %v840, %v842
    %v844 = vrot.slane %v836, %v843
    %v846 = vunpack.c.l.s4 1934713408
    %v847 = vunpack.c.0.s8 %v846
    %v848 = vlaneseq
    %v849 = vshrl.u32 %v848, 7
    %v850 = vsub.s32 %v847, %v849
    %v851 = vrot.slane %v837, %v850
    %v852 = vcombine.high %v828, 0
    %v853 = vcombine.high %v835, 0
    %v854 = vcombine.high %v844, 0
    %v855 = vcombine.high %v851, 0
    %v856 = vcombine.low %v762, %v769
    %v858 = vunpack.c.l.s4 1983009808
    %v859 = vunpack.c.0.s8 %v858
    %v860 = vlaneseq
    %v861 = vshrl.u32 %v860, 7
    %v862 = vsub.s32 %v859, %v861
    %v863 = vrot.slane %v856, %v862
    %v864 = vcombine.low %v786, %v787
    %v866 = vunpack.c.l.s4 1983009808
    %v867 = vunpack.c.0.s8 %v866
    %v868 = vlaneseq
    %v869 = vshrl.u32 %v868, 7
    %v870 = vsub.s32 %v867, %v869
    %v871 = vrot.slane %v864, %v870
    %v872 = vcombine.low %v863, %v871
    %v874 = vunpack.c.l.s4 1934713408
    %v875 = vunpack.c.0.s8 %v874
    %v876 = vlaneseq
    %v877 = vshrl.u32 %v876, 7
    %v878 = vsub.s32 %v875, %v877
    %v879 = vrot.slane %v872, %v878
    %v880 = vcombine.high %v879, 0
    %v881 = vcombine.low %v828, %v835
    %v883 = vunpack.c.l.s4 1983009808
    %v884 = vunpack.c.0.s8 %v883
    %v885 = vlaneseq
    %v886 = vshrl.u32 %v885, 7
    %v887 = vsub.s32 %v884, %v886
    %v888 = vrot.slane %v881, %v887
    %v889 = vcombine.low %v852, %v853
    %v891 = vunpack.c.l.s4 1983009808
    %v892 = vunpack.c.0.s8 %v891
    %v893 = vlaneseq
    %v894 = vshrl.u32 %v893, 7
    %v895 = vsub.s32 %v892, %v894
    %v896 = vrot.slane %v889, %v895
    %v897 = vcombine.low %v888, %v896
    %v899 = vunpack.c.l.s4 1934713408
    %v900 = vunpack.c.0.s8 %v899
    %v901 = vlaneseq
    %v902 = vshrl.u32 %v901, 7
    %v903 = vsub.s32 %v900, %v902
    %v904 = vrot.slane %v897, %v903
    %v905 = vcombine.high %v904, 0
    %v906 = vcombine.low %v778, %v785
    %v908 = vunpack.c.l.s4 1983009808
    %v909 = vunpack.c.0.s8 %v908
    %v910 = vlaneseq
    %v911 = vshrl.u32 %v910, 7
    %v912 = vsub.s32 %v909, %v911
    %v913 = vrot.slane %v906, %v912
    %v914 = vcombine.low %v788, %v789
    %v916 = vunpack.c.l.s4 1983009808
    %v917 = vunpack.c.0.s8 %v916
    %v918 = vlaneseq
    %v919 = vshrl.u32 %v918, 7
    %v920 = vsub.s32 %v917, %v919
    %v921 = vrot.slane %v914, %v920
    %v922 = vcombine.low %v913, %v921
    %v924 = vunpack.c.l.s4 1934713408
    %v925 = vunpack.c.0.s8 %v924
    %v926 = vlaneseq
    %v927 = vshrl.u32 %v926, 7
    %v928 = vsub.s32 %v925, %v927
    %v929 = vrot.slane %v922, %v928
    %v930 = vcombine.high %v929, 0
    %v931 = vcombine.low %v844, %v851
    %v933 = vunpack.c.l.s4 1983009808
    %v934 = vunpack.c.0.s8 %v933
    %v935 = vlaneseq
    %v936 = vshrl.u32 %v935, 7
    %v937 = vsub.s32 %v934, %v936
    %v938 = vrot.slane %v931, %v937
    %v939 = vcombine.low %v854, %v855
    %v941 = vunpack.c.l.s4 1983009808
    %v942 = vunpack.c.0.s8 %v941
    %v943 = vlaneseq
    %v944 = vshrl.u32 %v943, 7
    %v945 = vsub.s32 %v942, %v944
    %v946 = vrot.slane %v939, %v945
    %v947 = vcombine.low %v938, %v946
    %v949 = vunpack.c.l.s4 1934713408
    %v950 = vunpack.c.0.s8 %v949
    %v951 = vlaneseq
    %v952 = vshrl.u32 %v951, 7
    %v953 = vsub.s32 %v950, %v952
    %v954 = vrot.slane %v947, %v953
    %v955 = vcombine.high %v954, 0
    %v958 = vpack.i.b16 %v904, %v879
    %v959 = vshrl.u32 %v879, 16
    %v960 = vshrl.u32 %v904, 16
    %v961 = vpack.i.b16 %v960, %v959
    %v964 = vpack.i.b16 %v905, %v880
    %v965 = vshrl.u32 %v880, 16
    %v966 = vshrl.u32 %v905, 16
    %v967 = vpack.i.b16 %v966, %v965
    %v970 = vpack.i.b16 %v954, %v929
    %v971 = vshrl.u32 %v929, 16
    %v972 = vshrl.u32 %v954, 16
    %v973 = vpack.i.b16 %v972, %v971
    %v976 = vpack.i.b16 %v955, %v930
    %v977 = vshrl.u32 %v930, 16
    %v978 = vshrl.u32 %v955, 16
    %v979 = vpack.i.b16 %v978, %v977
    %vm980 = vcmask 64512
    %v982 = vsel %vm980, %v398, 0
    %v985 = vsel %vm980, %v678, 0
    %987 = vmatprep.subr.bf16.mxu0 0
    %988 = vmatpush1.bf16.xpose.msra.mxu0 0
    %989 = vmatprep.subr.bf16.mxu0 0
    %990 = vmatpush1.bf16.xpose.msra.mxu0 0
    %991 = vmatprep.subr.bf16.mxu0 0
    %992 = vmatpush1.bf16.xpose.msra.mxu0 0
    %993 = vmatprep.subr.bf16.mxu0 0
    %994 = vmatpush1.bf16.xpose.msra.mxu0 0
    %995 = vmatprep.subr.bf16.mxu0 0
    %996 = vmatpush1.bf16.xpose.msra.mxu0 0
    %997 = vmatprep.subr.bf16.mxu0 0
    %998 = vmatpush1.bf16.xpose.msra.mxu0 0
    %999 = vmatprep.subr.bf16.mxu0 0
    %1000 = vmatpush1.bf16.xpose.msra.mxu0 0
    %1001 = vmatprep.subr.bf16.mxu0 0
    %1002 = vmatpush1.bf16.xpose.msra.mxu0 %v985
    %1003 = vmatprep.subr.bf16.mxu0 0
    %1004 = vmatpush2.bf16.xpose.msra.mxu0 0
    %1005 = vmatprep.subr.bf16.mxu0 0
    %1006 = vmatpush2.bf16.xpose.msra.mxu0 0
    %1007 = vmatprep.subr.bf16.mxu0 0
    %1008 = vmatpush2.bf16.xpose.msra.mxu0 0
    %1009 = vmatprep.subr.bf16.mxu0 0
    %1010 = vmatpush2.bf16.xpose.msra.mxu0 0
    %1011 = vmatprep.subr.bf16.mxu0 0
    %1012 = vmatpush2.bf16.xpose.msra.mxu0 0
    %1013 = vmatprep.subr.bf16.mxu0 0
    %1014 = vmatpush2.bf16.xpose.msra.mxu0 0
    %1015 = vmatprep.subr.bf16.mxu0 0
    %1016 = vmatpush2.bf16.xpose.msra.mxu0 0
    %1017 = vmatprep.subr.bf16.mxu0 0
    %1018 = vmatpush2.bf16.xpose.msra.mxu0 0
    %1019 = vmatprep.mubr.bf16.mxu0 0
    %1020 = vmatmul.mubr.bf16.gmra.mxu0 %v982
    %v1021 = vpop.f32.mrf.mxu0
    %v1022 = vadd.f32 0.0, %v1021
    %v1023 = vpop.f32.mrf.mxu0
    %v1024 = vpop.f32.mrf.mxu0
    %v1025 = vpop.f32.mrf.mxu0
    %1026 = vdwg.mxu0
    %v1028 = vsel %vm980, %v401, 0
    %v1031 = vsel %vm980, %v681, 0
    %1033 = vmatprep.subr.bf16.mxu0 0
    %1034 = vmatpush1.bf16.xpose.msra.mxu0 0
    %1035 = vmatprep.subr.bf16.mxu0 0
    %1036 = vmatpush1.bf16.xpose.msra.mxu0 0
    %1037 = vmatprep.subr.bf16.mxu0 0
    %1038 = vmatpush1.bf16.xpose.msra.mxu0 0
    %1039 = vmatprep.subr.bf16.mxu0 0
    %1040 = vmatpush1.bf16.xpose.msra.mxu0 0
    %1041 = vmatprep.subr.bf16.mxu0 0
    %1042 = vmatpush1.bf16.xpose.msra.mxu0 0
    %1043 = vmatprep.subr.bf16.mxu0 0
    %1044 = vmatpush1.bf16.xpose.msra.mxu0 0
    %1045 = vmatprep.subr.bf16.mxu0 0
    %1046 = vmatpush1.bf16.xpose.msra.mxu0 0
    %1047 = vmatprep.subr.bf16.mxu0 0
    %1048 = vmatpush1.bf16.xpose.msra.mxu0 %v1031
    %1049 = vmatprep.subr.bf16.mxu0 0
    %1050 = vmatpush2.bf16.xpose.msra.mxu0 0
    %1051 = vmatprep.subr.bf16.mxu0 0
    %1052 = vmatpush2.bf16.xpose.msra.mxu0 0
    %1053 = vmatprep.subr.bf16.mxu0 0
    %1054 = vmatpush2.bf16.xpose.msra.mxu0 0
    %1055 = vmatprep.subr.bf16.mxu0 0
    %1056 = vmatpush2.bf16.xpose.msra.mxu0 0
    %1057 = vmatprep.subr.bf16.mxu0 0
    %1058 = vmatpush2.bf16.xpose.msra.mxu0 0
    %1059 = vmatprep.subr.bf16.mxu0 0
    %1060 = vmatpush2.bf16.xpose.msra.mxu0 0
    %1061 = vmatprep.subr.bf16.mxu0 0
    %1062 = vmatpush2.bf16.xpose.msra.mxu0 0
    %1063 = vmatprep.subr.bf16.mxu0 0
    %1064 = vmatpush2.bf16.xpose.msra.mxu0 0
    %1065 = vmatprep.mubr.bf16.mxu0 0
    %1066 = vmatmul.mubr.bf16.gmra.mxu0 %v1028
    %v1067 = vpop.f32.mrf.mxu0
    %v1068 = vadd.f32 0.0, %v1067
    %v1069 = vpop.f32.mrf.mxu0
    %v1070 = vpop.f32.mrf.mxu0
    %v1071 = vpop.f32.mrf.mxu0
    %1072 = vdwg.mxu0
    %v1074 = vsel %vm980, %v404, 0
    %v1077 = vsel %vm980, %v684, 0
    %1079 = vmatprep.subr.bf16.mxu0 0
    %1080 = vmatpush1.bf16.xpose.msra.mxu0 0
    %1081 = vmatprep.subr.bf16.mxu0 0
    %1082 = vmatpush1.bf16.xpose.msra.mxu0 0
    %1083 = vmatprep.subr.bf16.mxu0 0
    %1084 = vmatpush1.bf16.xpose.msra.mxu0 0
    %1085 = vmatprep.subr.bf16.mxu0 0
    %1086 = vmatpush1.bf16.xpose.msra.mxu0 0
    %1087 = vmatprep.subr.bf16.mxu0 0
    %1088 = vmatpush1.bf16.xpose.msra.mxu0 0
    %1089 = vmatprep.subr.bf16.mxu0 0
    %1090 = vmatpush1.bf16.xpose.msra.mxu0 0
    %1091 = vmatprep.subr.bf16.mxu0 0
    %1092 = vmatpush1.bf16.xpose.msra.mxu0 0
    %1093 = vmatprep.subr.bf16.mxu0 0
    %1094 = vmatpush1.bf16.xpose.msra.mxu0 %v1077
    %1095 = vmatprep.subr.bf16.mxu0 0
    %1096 = vmatpush2.bf16.xpose.msra.mxu0 0
    %1097 = vmatprep.subr.bf16.mxu0 0
    %1098 = vmatpush2.bf16.xpose.msra.mxu0 0
    %1099 = vmatprep.subr.bf16.mxu0 0
    %1100 = vmatpush2.bf16.xpose.msra.mxu0 0
    %1101 = vmatprep.subr.bf16.mxu0 0
    %1102 = vmatpush2.bf16.xpose.msra.mxu0 0
    %1103 = vmatprep.subr.bf16.mxu0 0
    %1104 = vmatpush2.bf16.xpose.msra.mxu0 0
    %1105 = vmatprep.subr.bf16.mxu0 0
    %1106 = vmatpush2.bf16.xpose.msra.mxu0 0
    %1107 = vmatprep.subr.bf16.mxu0 0
    %1108 = vmatpush2.bf16.xpose.msra.mxu0 0
    %1109 = vmatprep.subr.bf16.mxu0 0
    %1110 = vmatpush2.bf16.xpose.msra.mxu0 0
    %1111 = vmatprep.mubr.bf16.mxu0 0
    %1112 = vmatmul.mubr.bf16.gmra.mxu0 %v1074
    %v1113 = vpop.f32.mrf.mxu0
    %v1114 = vadd.f32 0.0, %v1113
    %v1115 = vpop.f32.mrf.mxu0
    %v1116 = vpop.f32.mrf.mxu0
    %v1117 = vpop.f32.mrf.mxu0
    %1118 = vdwg.mxu0
    %v1120 = vsel %vm980, %v407, 0
    %v1123 = vsel %vm980, %v687, 0
    %1125 = vmatprep.subr.bf16.mxu0 0
    %1126 = vmatpush1.bf16.xpose.msra.mxu0 0
    %1127 = vmatprep.subr.bf16.mxu0 0
    %1128 = vmatpush1.bf16.xpose.msra.mxu0 0
    %1129 = vmatprep.subr.bf16.mxu0 0
    %1130 = vmatpush1.bf16.xpose.msra.mxu0 0
    %1131 = vmatprep.subr.bf16.mxu0 0
    %1132 = vmatpush1.bf16.xpose.msra.mxu0 0
    %1133 = vmatprep.subr.bf16.mxu0 0
    %1134 = vmatpush1.bf16.xpose.msra.mxu0 0
    %1135 = vmatprep.subr.bf16.mxu0 0
    %1136 = vmatpush1.bf16.xpose.msra.mxu0 0
    %1137 = vmatprep.subr.bf16.mxu0 0
    %1138 = vmatpush1.bf16.xpose.msra.mxu0 0
    %1139 = vmatprep.subr.bf16.mxu0 0
    %1140 = vmatpush1.bf16.xpose.msra.mxu0 %v1123
    %1141 = vmatprep.subr.bf16.mxu0 0
    %1142 = vmatpush2.bf16.xpose.msra.mxu0 0
    %1143 = vmatprep.subr.bf16.mxu0 0
    %1144 = vmatpush2.bf16.xpose.msra.mxu0 0
    %1145 = vmatprep.subr.bf16.mxu0 0
    %1146 = vmatpush2.bf16.xpose.msra.mxu0 0
    %1147 = vmatprep.subr.bf16.mxu0 0
    %1148 = vmatpush2.bf16.xpose.msra.mxu0 0
    %1149 = vmatprep.subr.bf16.mxu0 0
    %1150 = vmatpush2.bf16.xpose.msra.mxu0 0
    %1151 = vmatprep.subr.bf16.mxu0 0
    %1152 = vmatpush2.bf16.xpose.msra.mxu0 0
    %1153 = vmatprep.subr.bf16.mxu0 0
    %1154 = vmatpush2.bf16.xpose.msra.mxu0 0
    %1155 = vmatprep.subr.bf16.mxu0 0
    %1156 = vmatpush2.bf16.xpose.msra.mxu0 0
    %1157 = vmatprep.mubr.bf16.mxu0 0
    %1158 = vmatmul.mubr.bf16.gmra.mxu0 %v1120
    %v1159 = vpop.f32.mrf.mxu0
    %v1160 = vadd.f32 0.0, %v1159
    %v1161 = vpop.f32.mrf.mxu0
    %v1162 = vpop.f32.mrf.mxu0
    %v1163 = vpop.f32.mrf.mxu0
    %1164 = vdwg.mxu0
    %v1166 = vsel %vm980, %v410, 0
    %v1169 = vsel %vm980, %v690, 0
    %1171 = vmatprep.subr.bf16.mxu0 0
    %1172 = vmatpush1.bf16.xpose.msra.mxu0 0
    %1173 = vmatprep.subr.bf16.mxu0 0
    %1174 = vmatpush1.bf16.xpose.msra.mxu0 0
    %1175 = vmatprep.subr.bf16.mxu0 0
    %1176 = vmatpush1.bf16.xpose.msra.mxu0 0
    %1177 = vmatprep.subr.bf16.mxu0 0
    %1178 = vmatpush1.bf16.xpose.msra.mxu0 0
    %1179 = vmatprep.subr.bf16.mxu0 0
    %1180 = vmatpush1.bf16.xpose.msra.mxu0 0
    %1181 = vmatprep.subr.bf16.mxu0 0
    %1182 = vmatpush1.bf16.xpose.msra.mxu0 0
    %1183 = vmatprep.subr.bf16.mxu0 0
    %1184 = vmatpush1.bf16.xpose.msra.mxu0 0
    %1185 = vmatprep.subr.bf16.mxu0 0
    %1186 = vmatpush1.bf16.xpose.msra.mxu0 %v1169
    %1187 = vmatprep.subr.bf16.mxu0 0
    %1188 = vmatpush2.bf16.xpose.msra.mxu0 0
    %1189 = vmatprep.subr.bf16.mxu0 0
    %1190 = vmatpush2.bf16.xpose.msra.mxu0 0
    %1191 = vmatprep.subr.bf16.mxu0 0
    %1192 = vmatpush2.bf16.xpose.msra.mxu0 0
    %1193 = vmatprep.subr.bf16.mxu0 0
    %1194 = vmatpush2.bf16.xpose.msra.mxu0 0
    %1195 = vmatprep.subr.bf16.mxu0 0
    %1196 = vmatpush2.bf16.xpose.msra.mxu0 0
    %1197 = vmatprep.subr.bf16.mxu0 0
    %1198 = vmatpush2.bf16.xpose.msra.mxu0 0
    %1199 = vmatprep.subr.bf16.mxu0 0
    %1200 = vmatpush2.bf16.xpose.msra.mxu0 0
    %1201 = vmatprep.subr.bf16.mxu0 0
    %1202 = vmatpush2.bf16.xpose.msra.mxu0 0
    %1203 = vmatprep.mubr.bf16.mxu0 0
    %1204 = vmatmul.mubr.bf16.gmra.mxu0 %v1166
    %v1205 = vpop.f32.mrf.mxu0
    %v1206 = vadd.f32 0.0, %v1205
    %v1207 = vpop.f32.mrf.mxu0
    %v1208 = vpop.f32.mrf.mxu0
    %v1209 = vpop.f32.mrf.mxu0
    %1210 = vdwg.mxu0
    %v1212 = vsel %vm980, %v413, 0
    %v1215 = vsel %vm980, %v693, 0
    %1217 = vmatprep.subr.bf16.mxu0 0
    %1218 = vmatpush1.bf16.xpose.msra.mxu0 0
    %1219 = vmatprep.subr.bf16.mxu0 0
    %1220 = vmatpush1.bf16.xpose.msra.mxu0 0
    %1221 = vmatprep.subr.bf16.mxu0 0
    %1222 = vmatpush1.bf16.xpose.msra.mxu0 0
    %1223 = vmatprep.subr.bf16.mxu0 0
    %1224 = vmatpush1.bf16.xpose.msra.mxu0 0
    %1225 = vmatprep.subr.bf16.mxu0 0
    %1226 = vmatpush1.bf16.xpose.msra.mxu0 0
    %1227 = vmatprep.subr.bf16.mxu0 0
    %1228 = vmatpush1.bf16.xpose.msra.mxu0 0
    %1229 = vmatprep.subr.bf16.mxu0 0
    %1230 = vmatpush1.bf16.xpose.msra.mxu0 0
    %1231 = vmatprep.subr.bf16.mxu0 0
    %1232 = vmatpush1.bf16.xpose.msra.mxu0 %v1215
    %1233 = vmatprep.subr.bf16.mxu0 0
    %1234 = vmatpush2.bf16.xpose.msra.mxu0 0
    %1235 = vmatprep.subr.bf16.mxu0 0
    %1236 = vmatpush2.bf16.xpose.msra.mxu0 0
    %1237 = vmatprep.subr.bf16.mxu0 0
    %1238 = vmatpush2.bf16.xpose.msra.mxu0 0
    %1239 = vmatprep.subr.bf16.mxu0 0
    %1240 = vmatpush2.bf16.xpose.msra.mxu0 0
    %1241 = vmatprep.subr.bf16.mxu0 0
    %1242 = vmatpush2.bf16.xpose.msra.mxu0 0
    %1243 = vmatprep.subr.bf16.mxu0 0
    %1244 = vmatpush2.bf16.xpose.msra.mxu0 0
    %1245 = vmatprep.subr.bf16.mxu0 0
    %1246 = vmatpush2.bf16.xpose.msra.mxu0 0
    %1247 = vmatprep.subr.bf16.mxu0 0
    %1248 = vmatpush2.bf16.xpose.msra.mxu0 0
    %1249 = vmatprep.mubr.bf16.mxu0 0
    %1250 = vmatmul.mubr.bf16.gmra.mxu0 %v1212
    %v1251 = vpop.f32.mrf.mxu0
    %v1252 = vadd.f32 0.0, %v1251
    %v1253 = vpop.f32.mrf.mxu0
    %v1254 = vpop.f32.mrf.mxu0
    %v1255 = vpop.f32.mrf.mxu0
    %1256 = vdwg.mxu0
    %v1258 = vsel %vm980, %v416, 0
    %v1261 = vsel %vm980, %v696, 0
    %1263 = vmatprep.subr.bf16.mxu0 0
    %1264 = vmatpush1.bf16.xpose.msra.mxu0 0
    %1265 = vmatprep.subr.bf16.mxu0 0
    %1266 = vmatpush1.bf16.xpose.msra.mxu0 0
    %1267 = vmatprep.subr.bf16.mxu0 0
    %1268 = vmatpush1.bf16.xpose.msra.mxu0 0
    %1269 = vmatprep.subr.bf16.mxu0 0
    %1270 = vmatpush1.bf16.xpose.msra.mxu0 0
    %1271 = vmatprep.subr.bf16.mxu0 0
    %1272 = vmatpush1.bf16.xpose.msra.mxu0 0
    %1273 = vmatprep.subr.bf16.mxu0 0
    %1274 = vmatpush1.bf16.xpose.msra.mxu0 0
    %1275 = vmatprep.subr.bf16.mxu0 0
    %1276 = vmatpush1.bf16.xpose.msra.mxu0 0
    %1277 = vmatprep.subr.bf16.mxu0 0
    %1278 = vmatpush1.bf16.xpose.msra.mxu0 %v1261
    %1279 = vmatprep.subr.bf16.mxu0 0
    %1280 = vmatpush2.bf16.xpose.msra.mxu0 0
    %1281 = vmatprep.subr.bf16.mxu0 0
    %1282 = vmatpush2.bf16.xpose.msra.mxu0 0
    %1283 = vmatprep.subr.bf16.mxu0 0
    %1284 = vmatpush2.bf16.xpose.msra.mxu0 0
    %1285 = vmatprep.subr.bf16.mxu0 0
    %1286 = vmatpush2.bf16.xpose.msra.mxu0 0
    %1287 = vmatprep.subr.bf16.mxu0 0
    %1288 = vmatpush2.bf16.xpose.msra.mxu0 0
    %1289 = vmatprep.subr.bf16.mxu0 0
    %1290 = vmatpush2.bf16.xpose.msra.mxu0 0
    %1291 = vmatprep.subr.bf16.mxu0 0
    %1292 = vmatpush2.bf16.xpose.msra.mxu0 0
    %1293 = vmatprep.subr.bf16.mxu0 0
    %1294 = vmatpush2.bf16.xpose.msra.mxu0 0
    %1295 = vmatprep.mubr.bf16.mxu0 0
    %1296 = vmatmul.mubr.bf16.gmra.mxu0 %v1258
    %v1297 = vpop.f32.mrf.mxu0
    %v1298 = vadd.f32 0.0, %v1297
    %v1299 = vpop.f32.mrf.mxu0
    %v1300 = vpop.f32.mrf.mxu0
    %v1301 = vpop.f32.mrf.mxu0
    %1302 = vdwg.mxu0
    %v1304 = vsel %vm980, %v419, 0
    %v1307 = vsel %vm980, %v699, 0
    %1309 = vmatprep.subr.bf16.mxu0 0
    %1310 = vmatpush1.bf16.xpose.msra.mxu0 0
    %1311 = vmatprep.subr.bf16.mxu0 0
    %1312 = vmatpush1.bf16.xpose.msra.mxu0 0
    %1313 = vmatprep.subr.bf16.mxu0 0
    %1314 = vmatpush1.bf16.xpose.msra.mxu0 0
    %1315 = vmatprep.subr.bf16.mxu0 0
    %1316 = vmatpush1.bf16.xpose.msra.mxu0 0
    %1317 = vmatprep.subr.bf16.mxu0 0
    %1318 = vmatpush1.bf16.xpose.msra.mxu0 0
    %1319 = vmatprep.subr.bf16.mxu0 0
    %1320 = vmatpush1.bf16.xpose.msra.mxu0 0
    %1321 = vmatprep.subr.bf16.mxu0 0
    %1322 = vmatpush1.bf16.xpose.msra.mxu0 0
    %1323 = vmatprep.subr.bf16.mxu0 0
    %1324 = vmatpush1.bf16.xpose.msra.mxu0 %v1307
    %1325 = vmatprep.subr.bf16.mxu0 0
    %1326 = vmatpush2.bf16.xpose.msra.mxu0 0
    %1327 = vmatprep.subr.bf16.mxu0 0
    %1328 = vmatpush2.bf16.xpose.msra.mxu0 0
    %1329 = vmatprep.subr.bf16.mxu0 0
    %1330 = vmatpush2.bf16.xpose.msra.mxu0 0
    %1331 = vmatprep.subr.bf16.mxu0 0
    %1332 = vmatpush2.bf16.xpose.msra.mxu0 0
    %1333 = vmatprep.subr.bf16.mxu0 0
    %1334 = vmatpush2.bf16.xpose.msra.mxu0 0
    %1335 = vmatprep.subr.bf16.mxu0 0
    %1336 = vmatpush2.bf16.xpose.msra.mxu0 0
    %1337 = vmatprep.subr.bf16.mxu0 0
    %1338 = vmatpush2.bf16.xpose.msra.mxu0 0
    %1339 = vmatprep.subr.bf16.mxu0 0
    %1340 = vmatpush2.bf16.xpose.msra.mxu0 0
    %1341 = vmatprep.mubr.bf16.mxu0 0
    %1342 = vmatmul.mubr.bf16.gmra.mxu0 %v1304
    %v1343 = vpop.f32.mrf.mxu0
    %v1344 = vadd.f32 0.0, %v1343
    %v1345 = vpop.f32.mrf.mxu0
    %v1346 = vpop.f32.mrf.mxu0
    %v1347 = vpop.f32.mrf.mxu0
    %1348 = vdwg.mxu0
    %v1349 = vsel %vm980, %v1022, -inf
    %1350 = vmax.xlane.f32.xlu0 %v1349
    %v1351 = vpop.xlane.xlu0 %1350
    %v1352 = vsel %vm980, %v1068, -inf
    %1353 = vmax.xlane.f32.xlu0 %v1352
    %v1354 = vpop.xlane.xlu0 %1353
    %v1355 = vsel %vm980, %v1114, -inf
    %1356 = vmax.xlane.f32.xlu0 %v1355
    %v1357 = vpop.xlane.xlu0 %1356
    %v1358 = vsel %vm980, %v1160, -inf
    %1359 = vmax.xlane.f32.xlu0 %v1358
    %v1360 = vpop.xlane.xlu0 %1359
    %v1361 = vsel %vm980, %v1206, -inf
    %1362 = vmax.xlane.f32.xlu0 %v1361
    %v1363 = vpop.xlane.xlu0 %1362
    %v1364 = vsel %vm980, %v1252, -inf
    %1365 = vmax.xlane.f32.xlu0 %v1364
    %v1366 = vpop.xlane.xlu0 %1365
    %v1367 = vsel %vm980, %v1298, -inf
    %1368 = vmax.xlane.f32.xlu0 %v1367
    %v1369 = vpop.xlane.xlu0 %1368
    %v1370 = vsel %vm980, %v1344, -inf
    %1371 = vmax.xlane.f32.xlu0 %v1370
    %v1372 = vpop.xlane.xlu0 %1371
    %v1373 = vsub.f32 %v1022, %v1351
    %v1374 = vsub.f32 %v1068, %v1354
    %v1375 = vsub.f32 %v1114, %v1357
    %v1376 = vsub.f32 %v1160, %v1360
    %v1377 = vsub.f32 %v1206, %v1363
    %v1378 = vsub.f32 %v1252, %v1366
    %v1379 = vsub.f32 %v1298, %v1369
    %v1380 = vsub.f32 %v1344, %v1372
    %v1381 = vmul.f32 %v1373, 1.442695
    %v1382 = vpow.pop %v1381
    %v1383 = vmul.f32 %v1374, 1.442695
    %v1384 = vpow.pop %v1383
    %v1385 = vmul.f32 %v1375, 1.442695
    %v1386 = vpow.pop %v1385
    %v1387 = vmul.f32 %v1376, 1.442695
    %v1388 = vpow.pop %v1387
    %v1389 = vmul.f32 %v1377, 1.442695
    %v1390 = vpow.pop %v1389
    %v1391 = vmul.f32 %v1378, 1.442695
    %v1392 = vpow.pop %v1391
    %v1393 = vmul.f32 %v1379, 1.442695
    %v1394 = vpow.pop %v1393
    %v1395 = vmul.f32 %v1380, 1.442695
    %v1396 = vpow.pop %v1395
    %v1397 = vsel %vm980, %v1382, 0.0
    %1398 = vadd.xlane.f32.xlu0 %v1397
    %v1399 = vpop.xlane.xlu0 %1398
    %v1400 = vsel %vm980, %v1384, 0.0
    %1401 = vadd.xlane.f32.xlu0 %v1400
    %v1402 = vpop.xlane.xlu0 %1401
    %v1403 = vsel %vm980, %v1386, 0.0
    %1404 = vadd.xlane.f32.xlu0 %v1403
    %v1405 = vpop.xlane.xlu0 %1404
    %v1406 = vsel %vm980, %v1388, 0.0
    %1407 = vadd.xlane.f32.xlu0 %v1406
    %v1408 = vpop.xlane.xlu0 %1407
    %v1409 = vsel %vm980, %v1390, 0.0
    %1410 = vadd.xlane.f32.xlu0 %v1409
    %v1411 = vpop.xlane.xlu0 %1410
    %v1412 = vsel %vm980, %v1392, 0.0
    %1413 = vadd.xlane.f32.xlu0 %v1412
    %v1414 = vpop.xlane.xlu0 %1413
    %v1415 = vsel %vm980, %v1394, 0.0
    %1416 = vadd.xlane.f32.xlu0 %v1415
    %v1417 = vpop.xlane.xlu0 %1416
    %v1418 = vsel %vm980, %v1396, 0.0
    %1419 = vadd.xlane.f32.xlu0 %v1418
    %v1420 = vpop.xlane.xlu0 %1419
    %v1421 = vrcp.pop %v1399
    %v1422 = vrcp.pop %v1402
    %v1423 = vrcp.pop %v1405
    %v1424 = vrcp.pop %v1408
    %v1425 = vrcp.pop %v1411
    %v1426 = vrcp.pop %v1414
    %v1427 = vrcp.pop %v1417
    %v1428 = vrcp.pop %v1420
    %v1429 = vmul.f32 %v1382, %v1421
    %v1430 = vmul.f32 %v1384, %v1422
    %v1431 = vmul.f32 %v1386, %v1423
    %v1432 = vmul.f32 %v1388, %v1424
    %v1433 = vmul.f32 %v1390, %v1425
    %v1434 = vmul.f32 %v1392, %v1426
    %v1435 = vmul.f32 %v1394, %v1427
    %v1436 = vmul.f32 %v1396, %v1428
    %v1437 = vpack.c.bf16 %v1429, %v1429
    %v1438 = vpack.c.bf16 %v1430, %v1430
    %v1439 = vpack.c.bf16 %v1431, %v1431
    %v1440 = vpack.c.bf16 %v1432, %v1432
    %v1441 = vpack.c.bf16 %v1433, %v1433
    %v1442 = vpack.c.bf16 %v1434, %v1434
    %v1443 = vpack.c.bf16 %v1435, %v1435
    %v1444 = vpack.c.bf16 %v1436, %v1436
    %v1446 = vsel %vm980, %v1437, 0
    %vm1448 = vcmask 1043456
    %v1450 = vsel %vm1448, %v958, 0
    %1452 = vmatprep.subr.bf16.mxu0 0
    %1453 = vmatpush1.bf16.msra.mxu0 0
    %1454 = vmatprep.subr.bf16.mxu0 0
    %1455 = vmatpush1.bf16.msra.mxu0 0
    %1456 = vmatprep.subr.bf16.mxu0 0
    %1457 = vmatpush1.bf16.msra.mxu0 0
    %1458 = vmatprep.subr.bf16.mxu0 0
    %1459 = vmatpush1.bf16.msra.mxu0 0
    %1460 = vmatprep.subr.bf16.mxu0 0
    %1461 = vmatpush1.bf16.msra.mxu0 0
    %1462 = vmatprep.subr.bf16.mxu0 0
    %1463 = vmatpush1.bf16.msra.mxu0 0
    %1464 = vmatprep.subr.bf16.mxu0 0
    %1465 = vmatpush1.bf16.msra.mxu0 0
    %1466 = vmatprep.subr.bf16.mxu0 0
    %1467 = vmatpush1.bf16.msra.mxu0 %v1450
    %1468 = vmatprep.subr.bf16.mxu0 0
    %1469 = vmatpush2.bf16.msra.mxu0 0
    %1470 = vmatprep.subr.bf16.mxu0 0
    %1471 = vmatpush2.bf16.msra.mxu0 0
    %1472 = vmatprep.subr.bf16.mxu0 0
    %1473 = vmatpush2.bf16.msra.mxu0 0
    %1474 = vmatprep.subr.bf16.mxu0 0
    %1475 = vmatpush2.bf16.msra.mxu0 0
    %1476 = vmatprep.subr.bf16.mxu0 0
    %1477 = vmatpush2.bf16.msra.mxu0 0
    %1478 = vmatprep.subr.bf16.mxu0 0
    %1479 = vmatpush2.bf16.msra.mxu0 0
    %1480 = vmatprep.subr.bf16.mxu0 0
    %1481 = vmatpush2.bf16.msra.mxu0 0
    %1482 = vmatprep.subr.bf16.mxu0 0
    %1483 = vmatpush2.bf16.msra.mxu0 0
    %1484 = vmatprep.mubr.bf16.mxu0 0
    %1485 = vmatmul.mubr.bf16.gmra.mxu0 %v1446
    %v1486 = vpop.f32.mrf.mxu0
    %v1487 = vadd.f32 0.0, %v1486
    %v1488 = vpop.f32.mrf.mxu0
    %v1489 = vpop.f32.mrf.mxu0
    %v1490 = vpop.f32.mrf.mxu0
    %1491 = vdwg.mxu0
    %v1493 = vsel %vm980, %v1438, 0
    %v1496 = vsel %vm1448, %v961, 0
    %1498 = vmatprep.subr.bf16.mxu0 0
    %1499 = vmatpush1.bf16.msra.mxu0 0
    %1500 = vmatprep.subr.bf16.mxu0 0
    %1501 = vmatpush1.bf16.msra.mxu0 0
    %1502 = vmatprep.subr.bf16.mxu0 0
    %1503 = vmatpush1.bf16.msra.mxu0 0
    %1504 = vmatprep.subr.bf16.mxu0 0
    %1505 = vmatpush1.bf16.msra.mxu0 0
    %1506 = vmatprep.subr.bf16.mxu0 0
    %1507 = vmatpush1.bf16.msra.mxu0 0
    %1508 = vmatprep.subr.bf16.mxu0 0
    %1509 = vmatpush1.bf16.msra.mxu0 0
    %1510 = vmatprep.subr.bf16.mxu0 0
    %1511 = vmatpush1.bf16.msra.mxu0 0
    %1512 = vmatprep.subr.bf16.mxu0 0
    %1513 = vmatpush1.bf16.msra.mxu0 %v1496
    %1514 = vmatprep.subr.bf16.mxu0 0
    %1515 = vmatpush2.bf16.msra.mxu0 0
    %1516 = vmatprep.subr.bf16.mxu0 0
    %1517 = vmatpush2.bf16.msra.mxu0 0
    %1518 = vmatprep.subr.bf16.mxu0 0
    %1519 = vmatpush2.bf16.msra.mxu0 0
    %1520 = vmatprep.subr.bf16.mxu0 0
    %1521 = vmatpush2.bf16.msra.mxu0 0
    %1522 = vmatprep.subr.bf16.mxu0 0
    %1523 = vmatpush2.bf16.msra.mxu0 0
    %1524 = vmatprep.subr.bf16.mxu0 0
    %1525 = vmatpush2.bf16.msra.mxu0 0
    %1526 = vmatprep.subr.bf16.mxu0 0
    %1527 = vmatpush2.bf16.msra.mxu0 0
    %1528 = vmatprep.subr.bf16.mxu0 0
    %1529 = vmatpush2.bf16.msra.mxu0 0
    %1530 = vmatprep.mubr.bf16.mxu0 0
    %1531 = vmatmul.mubr.bf16.gmra.mxu0 %v1493
    %v1532 = vpop.f32.mrf.mxu0
    %v1533 = vadd.f32 0.0, %v1532
    %v1534 = vpop.f32.mrf.mxu0
    %v1535 = vpop.f32.mrf.mxu0
    %v1536 = vpop.f32.mrf.mxu0
    %1537 = vdwg.mxu0
    %v1539 = vsel %vm980, %v1439, 0
    %v1542 = vsel %vm1448, %v964, 0
    %1544 = vmatprep.subr.bf16.mxu0 0
    %1545 = vmatpush1.bf16.msra.mxu0 0
    %1546 = vmatprep.subr.bf16.mxu0 0
    %1547 = vmatpush1.bf16.msra.mxu0 0
    %1548 = vmatprep.subr.bf16.mxu0 0
    %1549 = vmatpush1.bf16.msra.mxu0 0
    %1550 = vmatprep.subr.bf16.mxu0 0
    %1551 = vmatpush1.bf16.msra.mxu0 0
    %1552 = vmatprep.subr.bf16.mxu0 0
    %1553 = vmatpush1.bf16.msra.mxu0 0
    %1554 = vmatprep.subr.bf16.mxu0 0
    %1555 = vmatpush1.bf16.msra.mxu0 0
    %1556 = vmatprep.subr.bf16.mxu0 0
    %1557 = vmatpush1.bf16.msra.mxu0 0
    %1558 = vmatprep.subr.bf16.mxu0 0
    %1559 = vmatpush1.bf16.msra.mxu0 %v1542
    %1560 = vmatprep.subr.bf16.mxu0 0
    %1561 = vmatpush2.bf16.msra.mxu0 0
    %1562 = vmatprep.subr.bf16.mxu0 0
    %1563 = vmatpush2.bf16.msra.mxu0 0
    %1564 = vmatprep.subr.bf16.mxu0 0
    %1565 = vmatpush2.bf16.msra.mxu0 0
    %1566 = vmatprep.subr.bf16.mxu0 0
    %1567 = vmatpush2.bf16.msra.mxu0 0
    %1568 = vmatprep.subr.bf16.mxu0 0
    %1569 = vmatpush2.bf16.msra.mxu0 0
    %1570 = vmatprep.subr.bf16.mxu0 0
    %1571 = vmatpush2.bf16.msra.mxu0 0
    %1572 = vmatprep.subr.bf16.mxu0 0
    %1573 = vmatpush2.bf16.msra.mxu0 0
    %1574 = vmatprep.subr.bf16.mxu0 0
    %1575 = vmatpush2.bf16.msra.mxu0 0
    %1576 = vmatprep.mubr.bf16.mxu0 0
    %1577 = vmatmul.mubr.bf16.gmra.mxu0 %v1539
    %v1578 = vpop.f32.mrf.mxu0
    %v1579 = vadd.f32 0.0, %v1578
    %v1580 = vpop.f32.mrf.mxu0
    %v1581 = vpop.f32.mrf.mxu0
    %v1582 = vpop.f32.mrf.mxu0
    %1583 = vdwg.mxu0
    %v1585 = vsel %vm980, %v1440, 0
    %v1588 = vsel %vm1448, %v967, 0
    %1590 = vmatprep.subr.bf16.mxu0 0
    %1591 = vmatpush1.bf16.msra.mxu0 0
    %1592 = vmatprep.subr.bf16.mxu0 0
    %1593 = vmatpush1.bf16.msra.mxu0 0
    %1594 = vmatprep.subr.bf16.mxu0 0
    %1595 = vmatpush1.bf16.msra.mxu0 0
    %1596 = vmatprep.subr.bf16.mxu0 0
    %1597 = vmatpush1.bf16.msra.mxu0 0
    %1598 = vmatprep.subr.bf16.mxu0 0
    %1599 = vmatpush1.bf16.msra.mxu0 0
    %1600 = vmatprep.subr.bf16.mxu0 0
    %1601 = vmatpush1.bf16.msra.mxu0 0
    %1602 = vmatprep.subr.bf16.mxu0 0
    %1603 = vmatpush1.bf16.msra.mxu0 0
    %1604 = vmatprep.subr.bf16.mxu0 0
    %1605 = vmatpush1.bf16.msra.mxu0 %v1588
    %1606 = vmatprep.subr.bf16.mxu0 0
    %1607 = vmatpush2.bf16.msra.mxu0 0
    %1608 = vmatprep.subr.bf16.mxu0 0
    %1609 = vmatpush2.bf16.msra.mxu0 0
    %1610 = vmatprep.subr.bf16.mxu0 0
    %1611 = vmatpush2.bf16.msra.mxu0 0
    %1612 = vmatprep.subr.bf16.mxu0 0
    %1613 = vmatpush2.bf16.msra.mxu0 0
    %1614 = vmatprep.subr.bf16.mxu0 0
    %1615 = vmatpush2.bf16.msra.mxu0 0
    %1616 = vmatprep.subr.bf16.mxu0 0
    %1617 = vmatpush2.bf16.msra.mxu0 0
    %1618 = vmatprep.subr.bf16.mxu0 0
    %1619 = vmatpush2.bf16.msra.mxu0 0
    %1620 = vmatprep.subr.bf16.mxu0 0
    %1621 = vmatpush2.bf16.msra.mxu0 0
    %1622 = vmatprep.mubr.bf16.mxu0 0
    %1623 = vmatmul.mubr.bf16.gmra.mxu0 %v1585
    %v1624 = vpop.f32.mrf.mxu0
    %v1625 = vadd.f32 0.0, %v1624
    %v1626 = vpop.f32.mrf.mxu0
    %v1627 = vpop.f32.mrf.mxu0
    %v1628 = vpop.f32.mrf.mxu0
    %1629 = vdwg.mxu0
    %v1631 = vsel %vm980, %v1441, 0
    %v1634 = vsel %vm1448, %v970, 0
    %1636 = vmatprep.subr.bf16.mxu0 0
    %1637 = vmatpush1.bf16.msra.mxu0 0
    %1638 = vmatprep.subr.bf16.mxu0 0
    %1639 = vmatpush1.bf16.msra.mxu0 0
    %1640 = vmatprep.subr.bf16.mxu0 0
    %1641 = vmatpush1.bf16.msra.mxu0 0
    %1642 = vmatprep.subr.bf16.mxu0 0
    %1643 = vmatpush1.bf16.msra.mxu0 0
    %1644 = vmatprep.subr.bf16.mxu0 0
    %1645 = vmatpush1.bf16.msra.mxu0 0
    %1646 = vmatprep.subr.bf16.mxu0 0
    %1647 = vmatpush1.bf16.msra.mxu0 0
    %1648 = vmatprep.subr.bf16.mxu0 0
    %1649 = vmatpush1.bf16.msra.mxu0 0
    %1650 = vmatprep.subr.bf16.mxu0 0
    %1651 = vmatpush1.bf16.msra.mxu0 %v1634
    %1652 = vmatprep.subr.bf16.mxu0 0
    %1653 = vmatpush2.bf16.msra.mxu0 0
    %1654 = vmatprep.subr.bf16.mxu0 0
    %1655 = vmatpush2.bf16.msra.mxu0 0
    %1656 = vmatprep.subr.bf16.mxu0 0
    %1657 = vmatpush2.bf16.msra.mxu0 0
    %1658 = vmatprep.subr.bf16.mxu0 0
    %1659 = vmatpush2.bf16.msra.mxu0 0
    %1660 = vmatprep.subr.bf16.mxu0 0
    %1661 = vmatpush2.bf16.msra.mxu0 0
    %1662 = vmatprep.subr.bf16.mxu0 0
    %1663 = vmatpush2.bf16.msra.mxu0 0
    %1664 = vmatprep.subr.bf16.mxu0 0
    %1665 = vmatpush2.bf16.msra.mxu0 0
    %1666 = vmatprep.subr.bf16.mxu0 0
    %1667 = vmatpush2.bf16.msra.mxu0 0
    %1668 = vmatprep.mubr.bf16.mxu0 0
    %1669 = vmatmul.mubr.bf16.gmra.mxu0 %v1631
    %v1670 = vpop.f32.mrf.mxu0
    %v1671 = vadd.f32 0.0, %v1670
    %v1672 = vpop.f32.mrf.mxu0
    %v1673 = vpop.f32.mrf.mxu0
    %v1674 = vpop.f32.mrf.mxu0
    %1675 = vdwg.mxu0
    %v1677 = vsel %vm980, %v1442, 0
    %v1680 = vsel %vm1448, %v973, 0
    %1682 = vmatprep.subr.bf16.mxu0 0
    %1683 = vmatpush1.bf16.msra.mxu0 0
    %1684 = vmatprep.subr.bf16.mxu0 0
    %1685 = vmatpush1.bf16.msra.mxu0 0
    %1686 = vmatprep.subr.bf16.mxu0 0
    %1687 = vmatpush1.bf16.msra.mxu0 0
    %1688 = vmatprep.subr.bf16.mxu0 0
    %1689 = vmatpush1.bf16.msra.mxu0 0
    %1690 = vmatprep.subr.bf16.mxu0 0
    %1691 = vmatpush1.bf16.msra.mxu0 0
    %1692 = vmatprep.subr.bf16.mxu0 0
    %1693 = vmatpush1.bf16.msra.mxu0 0
    %1694 = vmatprep.subr.bf16.mxu0 0
    %1695 = vmatpush1.bf16.msra.mxu0 0
    %1696 = vmatprep.subr.bf16.mxu0 0
    %1697 = vmatpush1.bf16.msra.mxu0 %v1680
    %1698 = vmatprep.subr.bf16.mxu0 0
    %1699 = vmatpush2.bf16.msra.mxu0 0
    %1700 = vmatprep.subr.bf16.mxu0 0
    %1701 = vmatpush2.bf16.msra.mxu0 0
    %1702 = vmatprep.subr.bf16.mxu0 0
    %1703 = vmatpush2.bf16.msra.mxu0 0
    %1704 = vmatprep.subr.bf16.mxu0 0
    %1705 = vmatpush2.bf16.msra.mxu0 0
    %1706 = vmatprep.subr.bf16.mxu0 0
    %1707 = vmatpush2.bf16.msra.mxu0 0
    %1708 = vmatprep.subr.bf16.mxu0 0
    %1709 = vmatpush2.bf16.msra.mxu0 0
    %1710 = vmatprep.subr.bf16.mxu0 0
    %1711 = vmatpush2.bf16.msra.mxu0 0
    %1712 = vmatprep.subr.bf16.mxu0 0
    %1713 = vmatpush2.bf16.msra.mxu0 0
    %1714 = vmatprep.mubr.bf16.mxu0 0
    %1715 = vmatmul.mubr.bf16.gmra.mxu0 %v1677
    %v1716 = vpop.f32.mrf.mxu0
    %v1717 = vadd.f32 0.0, %v1716
    %v1718 = vpop.f32.mrf.mxu0
    %v1719 = vpop.f32.mrf.mxu0
    %v1720 = vpop.f32.mrf.mxu0
    %1721 = vdwg.mxu0
    %v1723 = vsel %vm980, %v1443, 0
    %v1726 = vsel %vm1448, %v976, 0
    %1728 = vmatprep.subr.bf16.mxu0 0
    %1729 = vmatpush1.bf16.msra.mxu0 0
    %1730 = vmatprep.subr.bf16.mxu0 0
    %1731 = vmatpush1.bf16.msra.mxu0 0
    %1732 = vmatprep.subr.bf16.mxu0 0
    %1733 = vmatpush1.bf16.msra.mxu0 0
    %1734 = vmatprep.subr.bf16.mxu0 0
    %1735 = vmatpush1.bf16.msra.mxu0 0
    %1736 = vmatprep.subr.bf16.mxu0 0
    %1737 = vmatpush1.bf16.msra.mxu0 0
    %1738 = vmatprep.subr.bf16.mxu0 0
    %1739 = vmatpush1.bf16.msra.mxu0 0
    %1740 = vmatprep.subr.bf16.mxu0 0
    %1741 = vmatpush1.bf16.msra.mxu0 0
    %1742 = vmatprep.subr.bf16.mxu0 0
    %1743 = vmatpush1.bf16.msra.mxu0 %v1726
    %1744 = vmatprep.subr.bf16.mxu0 0
    %1745 = vmatpush2.bf16.msra.mxu0 0
    %1746 = vmatprep.subr.bf16.mxu0 0
    %1747 = vmatpush2.bf16.msra.mxu0 0
    %1748 = vmatprep.subr.bf16.mxu0 0
    %1749 = vmatpush2.bf16.msra.mxu0 0
    %1750 = vmatprep.subr.bf16.mxu0 0
    %1751 = vmatpush2.bf16.msra.mxu0 0
    %1752 = vmatprep.subr.bf16.mxu0 0
    %1753 = vmatpush2.bf16.msra.mxu0 0
    %1754 = vmatprep.subr.bf16.mxu0 0
    %1755 = vmatpush2.bf16.msra.mxu0 0
    %1756 = vmatprep.subr.bf16.mxu0 0
    %1757 = vmatpush2.bf16.msra.mxu0 0
    %1758 = vmatprep.subr.bf16.mxu0 0
    %1759 = vmatpush2.bf16.msra.mxu0 0
    %1760 = vmatprep.mubr.bf16.mxu0 0
    %1761 = vmatmul.mubr.bf16.gmra.mxu0 %v1723
    %v1762 = vpop.f32.mrf.mxu0
    %v1763 = vadd.f32 0.0, %v1762
    %v1764 = vpop.f32.mrf.mxu0
    %v1765 = vpop.f32.mrf.mxu0
    %v1766 = vpop.f32.mrf.mxu0
    %1767 = vdwg.mxu0
    %v1769 = vsel %vm980, %v1444, 0
    %v1772 = vsel %vm1448, %v979, 0
    %1774 = vmatprep.subr.bf16.mxu0 0
    %1775 = vmatpush1.bf16.msra.mxu0 0
    %1776 = vmatprep.subr.bf16.mxu0 0
    %1777 = vmatpush1.bf16.msra.mxu0 0
    %1778 = vmatprep.subr.bf16.mxu0 0
    %1779 = vmatpush1.bf16.msra.mxu0 0
    %1780 = vmatprep.subr.bf16.mxu0 0
    %1781 = vmatpush1.bf16.msra.mxu0 0
    %1782 = vmatprep.subr.bf16.mxu0 0
    %1783 = vmatpush1.bf16.msra.mxu0 0
    %1784 = vmatprep.subr.bf16.mxu0 0
    %1785 = vmatpush1.bf16.msra.mxu0 0
    %1786 = vmatprep.subr.bf16.mxu0 0
    %1787 = vmatpush1.bf16.msra.mxu0 0
    %1788 = vmatprep.subr.bf16.mxu0 0
    %1789 = vmatpush1.bf16.msra.mxu0 %v1772
    %1790 = vmatprep.subr.bf16.mxu0 0
    %1791 = vmatpush2.bf16.msra.mxu0 0
    %1792 = vmatprep.subr.bf16.mxu0 0
    %1793 = vmatpush2.bf16.msra.mxu0 0
    %1794 = vmatprep.subr.bf16.mxu0 0
    %1795 = vmatpush2.bf16.msra.mxu0 0
    %1796 = vmatprep.subr.bf16.mxu0 0
    %1797 = vmatpush2.bf16.msra.mxu0 0
    %1798 = vmatprep.subr.bf16.mxu0 0
    %1799 = vmatpush2.bf16.msra.mxu0 0
    %1800 = vmatprep.subr.bf16.mxu0 0
    %1801 = vmatpush2.bf16.msra.mxu0 0
    %1802 = vmatprep.subr.bf16.mxu0 0
    %1803 = vmatpush2.bf16.msra.mxu0 0
    %1804 = vmatprep.subr.bf16.mxu0 0
    %1805 = vmatpush2.bf16.msra.mxu0 0
    %1806 = vmatprep.mubr.bf16.mxu0 0
    %1807 = vmatmul.mubr.bf16.gmra.mxu0 %v1769
    %v1808 = vpop.f32.mrf.mxu0
    %v1809 = vadd.f32 0.0, %v1808
    %v1810 = vpop.f32.mrf.mxu0
    %v1811 = vpop.f32.mrf.mxu0
    %v1812 = vpop.f32.mrf.mxu0
    %1813 = vdwg.mxu0
    %v1814 = vpack.c.bf16 %v1487, %v1487
    %v1816 = vunpack.c.l.s4 1983009808
    %v1817 = vunpack.c.0.s8 %v1816
    %v1818 = vlaneseq
    %v1819 = vshrl.u32 %v1818, 7
    %v1820 = vsub.s32 %v1817, %v1819
    %v1821 = vrot.slane %v1814, %v1820
    %v1822 = vpack.c.bf16 %v1579, %v1579
    %v1824 = vunpack.c.l.s4 1983009808
    %v1825 = vunpack.c.0.s8 %v1824
    %v1826 = vlaneseq
    %v1827 = vshrl.u32 %v1826, 7
    %v1828 = vsub.s32 %v1825, %v1827
    %v1829 = vrot.slane %v1822, %v1828
    %v1830 = vcombine.low %v1821, %v1829
    %v1831 = vcombine.high %v1821, %v1829
    %v1833 = vunpack.c.l.s4 1934713408
    %v1834 = vunpack.c.0.s8 %v1833
    %v1835 = vlaneseq
    %v1836 = vshrl.u32 %v1835, 7
    %v1837 = vsub.s32 %v1834, %v1836
    %v1838 = vrot.slane %v1830, %v1837
    %v1840 = vunpack.c.l.s4 1934713408
    %v1841 = vunpack.c.0.s8 %v1840
    %v1842 = vlaneseq
    %v1843 = vshrl.u32 %v1842, 7
    %v1844 = vsub.s32 %v1841, %v1843
    %v1845 = vrot.slane %v1831, %v1844
    %v1846 = vcombine.high %v1838, 0
    %v1847 = vcombine.high %v1845, 0
    %v1848 = vpack.c.bf16 %v1533, %v1533
    %v1850 = vunpack.c.l.s4 1983009808
    %v1851 = vunpack.c.0.s8 %v1850
    %v1852 = vlaneseq
    %v1853 = vshrl.u32 %v1852, 7
    %v1854 = vsub.s32 %v1851, %v1853
    %v1855 = vrot.slane %v1848, %v1854
    %v1856 = vpack.c.bf16 %v1625, %v1625
    %v1858 = vunpack.c.l.s4 1983009808
    %v1859 = vunpack.c.0.s8 %v1858
    %v1860 = vlaneseq
    %v1861 = vshrl.u32 %v1860, 7
    %v1862 = vsub.s32 %v1859, %v1861
    %v1863 = vrot.slane %v1856, %v1862
    %v1864 = vcombine.low %v1855, %v1863
    %v1865 = vcombine.high %v1855, %v1863
    %v1867 = vunpack.c.l.s4 1934713408
    %v1868 = vunpack.c.0.s8 %v1867
    %v1869 = vlaneseq
    %v1870 = vshrl.u32 %v1869, 7
    %v1871 = vsub.s32 %v1868, %v1870
    %v1872 = vrot.slane %v1864, %v1871
    %v1874 = vunpack.c.l.s4 1934713408
    %v1875 = vunpack.c.0.s8 %v1874
    %v1876 = vlaneseq
    %v1877 = vshrl.u32 %v1876, 7
    %v1878 = vsub.s32 %v1875, %v1877
    %v1879 = vrot.slane %v1865, %v1878
    %v1880 = vcombine.high %v1872, 0
    %v1881 = vcombine.high %v1879, 0
    %v1882 = vpack.c.bf16 %v1671, %v1671
    %v1884 = vunpack.c.l.s4 1983009808
    %v1885 = vunpack.c.0.s8 %v1884
    %v1886 = vlaneseq
    %v1887 = vshrl.u32 %v1886, 7
    %v1888 = vsub.s32 %v1885, %v1887
    %v1889 = vrot.slane %v1882, %v1888
    %v1890 = vpack.c.bf16 %v1763, %v1763
    %v1892 = vunpack.c.l.s4 1983009808
    %v1893 = vunpack.c.0.s8 %v1892
    %v1894 = vlaneseq
    %v1895 = vshrl.u32 %v1894, 7
    %v1896 = vsub.s32 %v1893, %v1895
    %v1897 = vrot.slane %v1890, %v1896
    %v1898 = vcombine.low %v1889, %v1897
    %v1899 = vcombine.high %v1889, %v1897
    %v1901 = vunpack.c.l.s4 1934713408
    %v1902 = vunpack.c.0.s8 %v1901
    %v1903 = vlaneseq
    %v1904 = vshrl.u32 %v1903, 7
    %v1905 = vsub.s32 %v1902, %v1904
    %v1906 = vrot.slane %v1898, %v1905
    %v1908 = vunpack.c.l.s4 1934713408
    %v1909 = vunpack.c.0.s8 %v1908
    %v1910 = vlaneseq
    %v1911 = vshrl.u32 %v1910, 7
    %v1912 = vsub.s32 %v1909, %v1911
    %v1913 = vrot.slane %v1899, %v1912
    %v1914 = vcombine.high %v1906, 0
    %v1915 = vcombine.high %v1913, 0
    %v1916 = vpack.c.bf16 %v1717, %v1717
    %v1918 = vunpack.c.l.s4 1983009808
    %v1919 = vunpack.c.0.s8 %v1918
    %v1920 = vlaneseq
    %v1921 = vshrl.u32 %v1920, 7
    %v1922 = vsub.s32 %v1919, %v1921
    %v1923 = vrot.slane %v1916, %v1922
    %v1924 = vpack.c.bf16 %v1809, %v1809
    %v1926 = vunpack.c.l.s4 1983009808
    %v1927 = vunpack.c.0.s8 %v1926
    %v1928 = vlaneseq
    %v1929 = vshrl.u32 %v1928, 7
    %v1930 = vsub.s32 %v1927, %v1929
    %v1931 = vrot.slane %v1924, %v1930
    %v1932 = vcombine.low %v1923, %v1931
    %v1933 = vcombine.high %v1923, %v1931
    %v1935 = vunpack.c.l.s4 1934713408
    %v1936 = vunpack.c.0.s8 %v1935
    %v1937 = vlaneseq
    %v1938 = vshrl.u32 %v1937, 7
    %v1939 = vsub.s32 %v1936, %v1938
    %v1940 = vrot.slane %v1932, %v1939
    %v1942 = vunpack.c.l.s4 1934713408
    %v1943 = vunpack.c.0.s8 %v1942
    %v1944 = vlaneseq
    %v1945 = vshrl.u32 %v1944, 7
    %v1946 = vsub.s32 %v1943, %v1945
    %v1947 = vrot.slane %v1933, %v1946
    %v1948 = vcombine.high %v1940, 0
    %v1949 = vcombine.high %v1947, 0
    %v1952 = vpack.i.b16 %v1872, %v1838
    %v1954 = vshrl.u32 %v1838, 16
    %v1955 = vshrl.u32 %v1872, 16
    %v1956 = vpack.i.b16 %v1955, %v1954
    %v1960 = vpack.i.b16 %v1880, %v1846
    %v1962 = vshrl.u32 %v1846, 16
    %v1963 = vshrl.u32 %v1880, 16
    %v1964 = vpack.i.b16 %v1963, %v1962
    %v1968 = vpack.i.b16 %v1879, %v1845
    %v1970 = vshrl.u32 %v1845, 16
    %v1971 = vshrl.u32 %v1879, 16
    %v1972 = vpack.i.b16 %v1971, %v1970
    %v1976 = vpack.i.b16 %v1881, %v1847
    %v1978 = vshrl.u32 %v1847, 16
    %v1979 = vshrl.u32 %v1881, 16
    %v1980 = vpack.i.b16 %v1979, %v1978
    %v1984 = vpack.i.b16 %v1940, %v1906
    %v1986 = vshrl.u32 %v1906, 16
    %v1987 = vshrl.u32 %v1940, 16
    %v1988 = vpack.i.b16 %v1987, %v1986
    %v1992 = vpack.i.b16 %v1948, %v1914
    %v1994 = vshrl.u32 %v1914, 16
    %v1995 = vshrl.u32 %v1948, 16
    %v1996 = vpack.i.b16 %v1995, %v1994
    %v2000 = vpack.i.b16 %v1947, %v1913
    %v2002 = vshrl.u32 %v1913, 16
    %v2003 = vshrl.u32 %v1947, 16
    %v2004 = vpack.i.b16 %v2003, %v2002
    %v2008 = vpack.i.b16 %v1949, %v1915
    %v2010 = vshrl.u32 %v1915, 16
    %v2011 = vshrl.u32 %v1949, 16
    %v2012 = vpack.i.b16 %v2011, %v2010
    %v2014 = vcombine.low %v1952, %v1968
    %v2016 = vunpack.c.l.s4 1983009808
    %v2017 = vunpack.c.0.s8 %v2016
    %v2018 = vlaneseq
    %v2019 = vshrl.u32 %v2018, 7
    %v2020 = vsub.s32 %v2017, %v2019
    %v2021 = vrot.slane %v2014, %v2020
    %v2022 = vcombine.low %v1960, %v1976
    %v2024 = vunpack.c.l.s4 1983009808
    %v2025 = vunpack.c.0.s8 %v2024
    %v2026 = vlaneseq
    %v2027 = vshrl.u32 %v2026, 7
    %v2028 = vsub.s32 %v2025, %v2027
    %v2029 = vrot.slane %v2022, %v2028
    %v2030 = vcombine.low %v1984, %v2000
    %v2032 = vunpack.c.l.s4 1983009808
    %v2033 = vunpack.c.0.s8 %v2032
    %v2034 = vlaneseq
    %v2035 = vshrl.u32 %v2034, 7
    %v2036 = vsub.s32 %v2033, %v2035
    %v2037 = vrot.slane %v2030, %v2036
    %v2038 = vcombine.low %v1992, %v2008
    %v2040 = vunpack.c.l.s4 1983009808
    %v2041 = vunpack.c.0.s8 %v2040
    %v2042 = vlaneseq
    %v2043 = vshrl.u32 %v2042, 7
    %v2044 = vsub.s32 %v2041, %v2043
    %v2045 = vrot.slane %v2038, %v2044
    %v2046 = vcombine.low %v2021, %v2029
    %v2048 = vunpack.c.l.s4 1934713408
    %v2049 = vunpack.c.0.s8 %v2048
    %v2050 = vlaneseq
    %v2051 = vshrl.u32 %v2050, 7
    %v2052 = vsub.s32 %v2049, %v2051
    %v2053 = vrot.slane %v2046, %v2052
    %v2054 = vcombine.low %v2037, %v2045
    %v2056 = vunpack.c.l.s4 1934713408
    %v2057 = vunpack.c.0.s8 %v2056
    %v2058 = vlaneseq
    %v2059 = vshrl.u32 %v2058, 7
    %v2060 = vsub.s32 %v2057, %v2059
    %v2061 = vrot.slane %v2054, %v2060
    %v2062 = vcombine.low %v2053, %v2061
    %v2063 = vcombine.high %v2053, %v2061
    %v2064 = vcombine.low %v1956, %v1972
    %v2066 = vunpack.c.l.s4 1983009808
    %v2067 = vunpack.c.0.s8 %v2066
    %v2068 = vlaneseq
    %v2069 = vshrl.u32 %v2068, 7
    %v2070 = vsub.s32 %v2067, %v2069
    %v2071 = vrot.slane %v2064, %v2070
    %v2072 = vcombine.low %v1964, %v1980
    %v2074 = vunpack.c.l.s4 1983009808
    %v2075 = vunpack.c.0.s8 %v2074
    %v2076 = vlaneseq
    %v2077 = vshrl.u32 %v2076, 7
    %v2078 = vsub.s32 %v2075, %v2077
    %v2079 = vrot.slane %v2072, %v2078
    %v2080 = vcombine.low %v1988, %v2004
    %v2082 = vunpack.c.l.s4 1983009808
    %v2083 = vunpack.c.0.s8 %v2082
    %v2084 = vlaneseq
    %v2085 = vshrl.u32 %v2084, 7
    %v2086 = vsub.s32 %v2083, %v2085
    %v2087 = vrot.slane %v2080, %v2086
    %v2088 = vcombine.low %v1996, %v2012
    %v2090 = vunpack.c.l.s4 1983009808
    %v2091 = vunpack.c.0.s8 %v2090
    %v2092 = vlaneseq
    %v2093 = vshrl.u32 %v2092, 7
    %v2094 = vsub.s32 %v2091, %v2093
    %v2095 = vrot.slane %v2088, %v2094
    %v2096 = vcombine.low %v2071, %v2079
    %v2098 = vunpack.c.l.s4 1934713408
    %v2099 = vunpack.c.0.s8 %v2098
    %v2100 = vlaneseq
    %v2101 = vshrl.u32 %v2100, 7
    %v2102 = vsub.s32 %v2099, %v2101
    %v2103 = vrot.slane %v2096, %v2102
    %v2104 = vcombine.low %v2087, %v2095
    %v2106 = vunpack.c.l.s4 1934713408
    %v2107 = vunpack.c.0.s8 %v2106
    %v2108 = vlaneseq
    %v2109 = vshrl.u32 %v2108, 7
    %v2110 = vsub.s32 %v2107, %v2109
    %v2111 = vrot.slane %v2104, %v2110
    %v2112 = vcombine.low %v2103, %v2111
    %v2113 = vcombine.high %v2103, %v2111
    %v2116 = vpack.i.b16 %v2112, %v2062
    %v2117 = vshrl.u32 %v2062, 16
    %v2118 = vshrl.u32 %v2112, 16
    %v2119 = vpack.i.b16 %v2118, %v2117
    %v2122 = vpack.i.b16 %v2113, %v2063
    %v2123 = vshrl.u32 %v2063, 16
    %v2124 = vshrl.u32 %v2113, 16
    %v2125 = vpack.i.b16 %v2124, %v2123
    %2126 = vrot.lane.b32.xlu0 %v2119, 8
    %v2127 = vpop.permute.xlu0 %2126
    %2128 = vrot.lane.b32.xlu0 %v2122, 16
    %v2129 = vpop.permute.xlu0 %2128
    %2130 = vrot.lane.b32.xlu0 %v2125, 24
    %v2131 = vpop.permute.xlu0 %2130
    %v2134 = vsel %vm980, %v2116, %v2127
    %vm2135 = vcmask 130048
    %v2137 = vsel %vm2135, %v2134, %v2129
    %vm2138 = vcmask 195584
    %v2140 = vsel %vm2138, %v2137, %v2131
    %v2141 = vld [vmem:[#allocation7] sm:$0xf]
    %v2142 = vld [vmem:[#allocation7 + $0x4] sm:$0xf]
    %v2143 = vld [vmem:[#allocation7 + $0x8] sm:$0xf]
    %v2144 = vld [vmem:[#allocation7 + $0xc] sm:$0xf]
    %v2145 = vld [vmem:[%s4] sm:$0x1]
    %v2147 = vlaneseq
    %v2148 = vshrl.u32 %v2147, 7
    %v2149 = vsub.s32 0, %v2148
    %v2150 = vrot.slane %v2145, %v2149
    %v2156 = vunpack.c.l.b16 %v2141
    %v2157 = vunpack.c.l.b16 %v2142
    %v2158 = vunpack.c.l.b16 %v2143
    %v2159 = vunpack.c.l.b16 %v2144
    %v2160 = vpack.c.b16 %v2157, %v2156
    %v2161 = vpack.c.b16 %v2159, %v2158
    %v2164 = vsel %vm89, %v2140, 0
    %2166 = vmatprep.subr.bf16.mxu0 0
    %2167 = vmatpush1.bf16.msra.mxu0 0
    %2168 = vmatprep.subr.bf16.mxu0 0
    %2169 = vmatpush1.bf16.msra.mxu0 0
    %2170 = vmatprep.subr.bf16.mxu0 0
    %2171 = vmatpush1.bf16.msra.mxu0 0
    %2172 = vmatprep.subr.bf16.mxu0 0
    %2173 = vmatpush1.bf16.msra.mxu0 0
    %2174 = vmatprep.subr.bf16.mxu0 0
    %2175 = vmatpush1.bf16.msra.mxu0 0
    %2176 = vmatprep.subr.bf16.mxu0 0
    %2177 = vmatpush1.bf16.msra.mxu0 0
    %2178 = vmatprep.subr.bf16.mxu0 0
    %2179 = vmatpush1.bf16.msra.mxu0 %v2161
    %2180 = vmatprep.subr.bf16.mxu0 0
    %2181 = vmatpush1.bf16.msra.mxu0 %v2160
    %2182 = vmatprep.subr.bf16.mxu0 0
    %2183 = vmatpush2.bf16.msra.mxu0 0
    %2184 = vmatprep.subr.bf16.mxu0 0
    %2185 = vmatpush2.bf16.msra.mxu0 0
    %2186 = vmatprep.subr.bf16.mxu0 0
    %2187 = vmatpush2.bf16.msra.mxu0 0
    %2188 = vmatprep.subr.bf16.mxu0 0
    %2189 = vmatpush2.bf16.msra.mxu0 0
    %2190 = vmatprep.subr.bf16.mxu0 0
    %2191 = vmatpush2.bf16.msra.mxu0 0
    %2192 = vmatprep.subr.bf16.mxu0 0
    %2193 = vmatpush2.bf16.msra.mxu0 0
    %2194 = vmatprep.subr.bf16.mxu0 0
    %2195 = vmatpush2.bf16.msra.mxu0 0
    %2196 = vmatprep.subr.bf16.mxu0 0
    %2197 = vmatpush2.bf16.msra.mxu0 0
    %2198 = vmatprep.mubr.bf16.mxu0 0
    %2199 = vmatmul.mubr.bf16.gmra.mxu0 %v2164
    %v2200 = vpop.f32.mrf.mxu0
    %v2201 = vadd.f32 %v2150, %v2200
    %v2202 = vpop.f32.mrf.mxu0
    %v2203 = vpop.f32.mrf.mxu0
    %v2204 = vadd.f32 %v2150, %v2203
    %v2205 = vpop.f32.mrf.mxu0
    %2206 = vdwg.mxu0
    %2207 = vst.msk [vmem:[#allocation8] sm:$0xff] %vm89, %v2201
    %2208 = vst.msk [vmem:[#allocation8 + $0x8] sm:$0xff] %vm89, %v2204
    // Predicated region
    $region34: #{tpu_custom_call.1} parent=1 // pred_check
      _
    $region35: #{tpu_custom_call.1} parent=1 // pred_check_branch
      %2210 = sbr.rel (0) target = $region37
    $region36: #{tpu_custom_call.1} parent=1 // pred_region
      %s2212 = ssub.s32 256, 256
      %2213 = vsyncadd [#allocation4], %s2212
      %s2214 = sshll.u32 [#allocation8], 4
      %s2215 = int_to_ptr.vmem [resolvable:$true] %s2214
      %2220 = dma.vmem_to_hbm [thread:$0]  %s2215, 256, %s5, [#allocation4], 128, 128, 8
    $region37: #{tpu_custom_call.1} parent=1 // pred_fallthru
      _
    // Predicated region
    $region38: #{tpu_custom_call.1} parent=1 // pred_check
      _
    $region39: #{tpu_custom_call.1} parent=1 // pred_check_branch
      %2222 = sbr.rel (0) target = $region41
    $region40: #{tpu_custom_call.1} parent=1 // pred_region
      %2223 = dma.done [#allocation4], 256
    $region41: #{tpu_custom_call.1} parent=1 // pred_fallthru
      _
    %2224 = vsyncpa [#allocation3], 1
    %2225 = vsyncpa [#allocation6], 1
    %2226 = vsyncpa [#allocation4], 1

</llo_original>
